<compile_context>
chip_gen: v7x
topology: tpu7x:2x2x1
jax: 0.10.0
libtpu: 0.0.40
codegen_flags: <defaults>
</compile_context>

<pallas_src>
import functools
import math

import jax
import jax.numpy as jnp
from jax.experimental import pallas as pl
from jax.experimental.pallas import tpu as pltpu

LN_EPS = 1e-6


# ----------------------------- in-kernel helpers -----------------------------

def _layernorm(x, g, b):
    # One-pass statistics: E[x], E[x^2]; rsqrt maps to the EUP slot.
    m = jnp.mean(x, axis=-1, keepdims=True)
    msq = jnp.mean(x * x, axis=-1, keepdims=True)
    var = jnp.maximum(msq - m * m, 0.0)
    return (x - m) * jax.lax.rsqrt(var + LN_EPS) * g + b


def _bf16_dot(a_f32, w_bf16):
    # bf16 MXU operands, f32 accumulation.
    return jnp.dot(a_f32.astype(jnp.bfloat16), w_bf16,
                   preferred_element_type=jnp.float32)


# --------------------------------- kernels -----------------------------------

def _conv_stack_kernel(x_ref, pe_ref, g_ref, b_ref, dw_ref, dwb_ref,
                       pww_ref, pwb_ref, o_ref, xpad_ref, *,
                       num_blocks, ksize):
    # Fused: position-encoding add, then num_blocks x
    #        Residual( LN -> depthwise conv ("same" pad) -> pointwise conv -> ReLU )
    T, D = x_ref.shape
    pad = ksize // 2

    x = x_ref[...] + pe_ref[...]                       # position encoding (f32)

    g_all = g_ref[...]                                 # (N, D)
    b_all = b_ref[...]
    dw_all = dw_ref[...]                               # (N, K, D)
    dwb_all = dwb_ref[...]                             # (N, D)
    pwb_all = pwb_ref[...]                             # (N, D)

    # Zero the halo rows of the padded scratch once; xn is rewritten per block.
    xpad_ref[0:pad, :] = jnp.zeros((pad, D), jnp.float32)
    xpad_ref[pad + T:pad + T + pad, :] = jnp.zeros((pad, D), jnp.float32)

    for n in range(num_blocks):
        xn = _layernorm(x, g_all[n], b_all[n])
        xpad_ref[pad:pad + T, :] = xn                  # write once per block

        # depthwise conv: out[t] = sum_k w[k] * x[t + k - pad]
        acc = jnp.zeros((T, D), jnp.float32)
        for k in range(ksize):
            acc = acc + xpad_ref[k:k + T, :] * dw_all[n, k][None, :]
        acc = acc + dwb_all[n][None, :]
        # TODO(synk): verify depthwise-conv bias flag against claf's DepSepConv
        # (bias param kept, initialized to zero, so it is a no-op by default).

        y = _bf16_dot(acc, pww_ref[n]) + pwb_all[n][None, :]   # pointwise (1x1)
        y = jnp.maximum(y, 0.0)                                # ReLU
        x = x + y                                              # residual

    o_ref[...] = x


def _attn_kernel(x_ref, g_ref, b_ref, wqkv_ref, bqkv_ref, wo_ref, bo_ref,
                 o_ref, *, num_head):
    # Residual( LN -> multi-head self-attention (mask=None) )
    # TODO(synk): attention mask omitted (forward is exercised with mask=None);
    #             for long T, a flash-style KV-tiled online softmax would be needed.
    x = x_ref[...]                                     # (T, D) f32
    T, D = x.shape
    dh = D // num_head
    scale = 1.0 / math.sqrt(dh)

    xn = _layernorm(x, g_ref[...], b_ref[...])

    # Single fused QKV projection: (T, D) @ (D, 3D).
    qkv = _bf16_dot(xn, wqkv_ref[...]) + bqkv_ref[...]          # (T, 3D) f32

    ctx = []
    for h in range(num_head):
        q_h = qkv[:, h * dh:(h + 1) * dh] * scale
        k_h = qkv[:, D + h * dh:D + (h + 1) * dh]
        v_h = qkv[:, 2 * D + h * dh:2 * D + (h + 1) * dh]

        s = jnp.einsum("td,sd->ts",
                       q_h.astype(jnp.bfloat16), k_h.astype(jnp.bfloat16),
                       preferred_element_type=jnp.float32)      # (T, T) f32
        s = s - jnp.max(s, axis=-1, keepdims=True)
        p = jnp.exp(s)
        p = p * pl.reciprocal(jnp.sum(p, axis=-1, keepdims=True), approx=True)

        ctx.append(jnp.einsum("ts,sd->td",
                              p.astype(jnp.bfloat16), v_h.astype(jnp.bfloat16),
                              preferred_element_type=jnp.float32))  # (T, dh)

    ctx = jnp.concatenate(ctx, axis=-1)                # (T, D)
    y = _bf16_dot(ctx, wo_ref[...]) + bo_ref[...]      # single full-D out proj
    o_ref[...] = x + y


def _ffn_kernel(x_ref, g_ref, b_ref, w1_ref, b1_ref, w2_ref, b2_ref, o_ref):
    # Residual( LN -> Linear(D, 4D) -> ReLU -> Linear(4D, D) ), position-wise,
    # tiled over T so only a (tq, 4D) hidden slab ever lives in VMEM.
    x = x_ref[...]
    xn = _layernorm(x, g_ref[...], b_ref[...])
    h = _bf16_dot(xn, w1_ref[...]) + b1_ref[...]
    h = jnp.maximum(h, 0.0)
    y = _bf16_dot(h, w2_ref[...]) + b2_ref[...]
    o_ref[...] = x + y


# ----------------------------- pallas_call glue -------------------------------

def _full_spec(shape, n_grid):
    # Weight-style spec: full array, same block for every grid step (DMA'd once).
    ndim = len(shape)
    return pl.BlockSpec(shape, lambda *g: (0,) * ndim)


def _choose_t_tile(T):
    for c in (256, 128, 64, 32, 16, 8):
        if T % c == 0:
            return c
    return T


def conv_stack_call(x, pe, cp, *, kernel_size):
    B, T, D = x.shape
    N = cp["ln_g"].shape[0]
    pad = kernel_size // 2
    kernel = functools.partial(_conv_stack_kernel, num_blocks=N, ksize=kernel_size)
    return pl.pallas_call(
        kernel,
        out_shape=jax.ShapeDtypeStruct((B, T, D), jnp.float32),
        grid=(B,),
        in_specs=[
            pl.BlockSpec((None, T, D), lambda bidx: (bidx, 0, 0)),
            _full_spec(pe.shape, 1),
            _full_spec(cp["ln_g"].shape, 1),
            _full_spec(cp["ln_b"].shape, 1),
            _full_spec(cp["dw"].shape, 1),
            _full_spec(cp["dw_b"].shape, 1),
            _full_spec(cp["pw_w"].shape, 1),
            _full_spec(cp["pw_b"].shape, 1),
        ],
        out_specs=pl.BlockSpec((None, T, D), lambda bidx: (bidx, 0, 0)),
        scratch_shapes=[pltpu.VMEM((T + 2 * pad, D), jnp.float32)],
        input_output_aliases={0: 0},
        compiler_params=pltpu.CompilerParams(dimension_semantics=("parallel",)),
    )(x, pe, cp["ln_g"], cp["ln_b"], cp["dw"], cp["dw_b"], cp["pw_w"], cp["pw_b"])


def attention_call(x, ap, *, num_head):
    B, T, D = x.shape
    kernel = functools.partial(_attn_kernel, num_head=num_head)
    return pl.pallas_call(
        kernel,
        out_shape=jax.ShapeDtypeStruct((B, T, D), jnp.float32),
        grid=(B,),
        in_specs=[
            pl.BlockSpec((None, T, D), lambda bidx: (bidx, 0, 0)),
            _full_spec(ap["ln_g"].shape, 1),
            _full_spec(ap["ln_b"].shape, 1),
            _full_spec(ap["w_qkv"].shape, 1),
            _full_spec(ap["b_qkv"].shape, 1),
            _full_spec(ap["wo"].shape, 1),
            _full_spec(ap["bo"].shape, 1),
        ],
        out_specs=pl.BlockSpec((None, T, D), lambda bidx: (bidx, 0, 0)),
        input_output_aliases={0: 0},
        compiler_params=pltpu.CompilerParams(dimension_semantics=("parallel",)),
    )(x, ap["ln_g"], ap["ln_b"], ap["w_qkv"], ap["b_qkv"], ap["wo"], ap["bo"])


def ffn_call(x, fp):
    B, T, D = x.shape
    tq = _choose_t_tile(T)
    return pl.pallas_call(
        _ffn_kernel,
        out_shape=jax.ShapeDtypeStruct((B, T, D), jnp.float32),
        grid=(B, T // tq),
        in_specs=[
            pl.BlockSpec((None, tq, D), lambda bidx, tidx: (bidx, tidx, 0)),
            _full_spec(fp["ln_g"].shape, 2),
            _full_spec(fp["ln_b"].shape, 2),
            _full_spec(fp["w1"].shape, 2),
            _full_spec(fp["b1"].shape, 2),
            _full_spec(fp["w2"].shape, 2),
            _full_spec(fp["b2"].shape, 2),
        ],
        out_specs=pl.BlockSpec((None, tq, D), lambda bidx, tidx: (bidx, tidx, 0)),
        input_output_aliases={0: 0},
        compiler_params=pltpu.CompilerParams(
            dimension_semantics=("parallel", "parallel")),
    )(x, fp["ln_g"], fp["ln_b"], fp["w1"], fp["b1"], fp["w2"], fp["b2"])


# ------------------------------- module glue ----------------------------------

def sinusoidal_pe(T, D):
    position = jnp.arange(T, dtype=jnp.float32)[:, None]
    div_term = jnp.exp(
        jnp.arange(0, D, 2, dtype=jnp.float32) * -(math.log(10000.0) / D))
    pe = jnp.zeros((T, D), jnp.float32)
    pe = pe.at[:, 0::2].set(jnp.sin(position * div_term))
    pe = pe.at[:, 1::2].set(jnp.cos(position * div_term))
    return pe


def init_params(key, D, num_head, kernel_size, num_conv_block):
    keys = iter(jax.random.split(key, 32))

    def nrm(shape, scale=0.05):
        return scale * jax.random.normal(next(keys), shape, jnp.float32)

    N, K = num_conv_block, kernel_size
    params = {
        "conv": dict(
            ln_g=jnp.ones((N, D), jnp.float32),
            ln_b=jnp.zeros((N, D), jnp.float32),
            dw=nrm((N, K, D)),                              # depthwise weights (f32, VPU)
            dw_b=jnp.zeros((N, D), jnp.float32),            # depthwise bias (zero by default)
            pw_w=nrm((N, D, D)).astype(jnp.bfloat16),       # pointwise weights (bf16, MXU)
            pw_b=jnp.zeros((N, D), jnp.float32),
        ),
        "attn": dict(
            ln_g=jnp.ones((1, D), jnp.float32),
            ln_b=jnp.zeros((1, D), jnp.float32),
            w_qkv=nrm((D, 3 * D)).astype(jnp.bfloat16),     # fused [Wq | Wk | Wv]
            b_qkv=jnp.zeros((1, 3 * D), jnp.float32),
            wo=nrm((D, D)).astype(jnp.bfloat16),
            bo=jnp.zeros((1, D), jnp.float32),
        ),
        "ffn": dict(
            ln_g=jnp.ones((1, D), jnp.float32),
            ln_b=jnp.zeros((1, D), jnp.float32),
            w1=nrm((D, 4 * D)).astype(jnp.bfloat16),
            b1=jnp.zeros((1, 4 * D), jnp.float32),
            w2=nrm((4 * D, D)).astype(jnp.bfloat16),
            b2=jnp.zeros((1, D), jnp.float32),
        ),
    }
    return params


@functools.partial(jax.jit, static_argnames=("num_head",))
def encoder_block_forward(x, params, *, num_head):
    B, T, D = x.shape
    kernel_size = params["conv"]["dw"].shape[1]
    pe = sinusoidal_pe(T, D)

    # PE add + [depthwise-separable conv] x N (LN-residual each) -- one kernel.
    x = conv_stack_call(x, pe, params["conv"], kernel_size=kernel_size)
    # Multi-head self-attention, LN-residual.
    x = attention_call(x, params["attn"], num_head=num_head)
    # Position-wise feed-forward, LN-residual.
    x = ffn_call(x, params["ffn"])
    return x


if __name__ == "__main__":
    # Small shapes consistent with the module defaults (model_dim=128, num_head=8);
    # D is kept lane-dense (multiple of 128).
    B, T, D = 2, 16, 128
    num_head, kernel_size, num_conv_block = 8, 5, 4

    key = jax.random.PRNGKey(0)
    k_x, k_p = jax.random.split(key)
    x = jax.random.normal(k_x, (B, T, D), jnp.float32)
    params = init_params(k_p, D, num_head, kernel_size, num_conv_block)

    y = encoder_block_forward(x, params, num_head=num_head)
    y = jax.block_until_ready(y)
    assert y.shape == (B, T, D) and y.dtype == jnp.float32
    assert bool(jnp.all(jnp.isfinite(y)))
    print("KERNEL_OK")
</pallas_src>

<mosaic_0001>
module attributes {stable_mosaic.version = 11 : i64} {
  func.func @_attn_kernel(%arg0: i32, %arg1: memref<1x16x128xf32, #tpu.memory_space<vmem>>, %arg2: memref<1x128xf32, #tpu.memory_space<vmem>>, %arg3: memref<1x128xf32, #tpu.memory_space<vmem>>, %arg4: memref<128x384xbf16, #tpu.memory_space<vmem>>, %arg5: memref<1x384xf32, #tpu.memory_space<vmem>>, %arg6: memref<128x128xbf16, #tpu.memory_space<vmem>>, %arg7: memref<1x128xf32, #tpu.memory_space<vmem>>, %arg8: memref<1x16x128xf32, #tpu.memory_space<vmem>>) attributes {dimension_semantics = [#tpu.dimension_semantics<parallel>], iteration_bounds = array<i64: 2>, scalar_prefetch = 0 : i64, scratch_operands = 0 : i64, tpu.core_type = #tpu.core_type<tc>, window_params = [{transform_indices = @transform_0, window_bounds = array<i64: 1, 16, 128>}, {pipeline_mode = #tpu.pipeline_mode<synchronous>, transform_indices = @transform_1, window_bounds = array<i64: 1, 128>}, {pipeline_mode = #tpu.pipeline_mode<synchronous>, transform_indices = @transform_2, window_bounds = array<i64: 1, 128>}, {pipeline_mode = #tpu.pipeline_mode<synchronous>, transform_indices = @transform_3, window_bounds = array<i64: 128, 384>}, {pipeline_mode = #tpu.pipeline_mode<synchronous>, transform_indices = @transform_4, window_bounds = array<i64: 1, 384>}, {pipeline_mode = #tpu.pipeline_mode<synchronous>, transform_indices = @transform_5, window_bounds = array<i64: 128, 128>}, {pipeline_mode = #tpu.pipeline_mode<synchronous>, transform_indices = @transform_6, window_bounds = array<i64: 1, 128>}, {transform_indices = @transform_7, window_bounds = array<i64: 1, 16, 128>}]} {
    %c0 = arith.constant 0 : index
    %c0_0 = arith.constant 0 : index
    %c0_1 = arith.constant 0 : index
    %0 = vector.load %arg1[%c0, %c0_0, %c0_1] : memref<1x16x128xf32, #tpu.memory_space<vmem>>, vector<1x16x128xf32>
    %1 = vector.shape_cast %0 : vector<1x16x128xf32> to vector<16x128xf32>
    %c0_2 = arith.constant 0 : index
    %c0_3 = arith.constant 0 : index
    %2 = vector.load %arg2[%c0_2, %c0_3] : memref<1x128xf32, #tpu.memory_space<vmem>>, vector<1x128xf32>
    %c0_4 = arith.constant 0 : index
    %c0_5 = arith.constant 0 : index
    %3 = vector.load %arg3[%c0_4, %c0_5] : memref<1x128xf32, #tpu.memory_space<vmem>>, vector<1x128xf32>
    %cst = arith.constant dense<0.000000e+00> : vector<16xf32>
    %4 = vector.multi_reduction <add>, %1, %cst [1] : vector<16x128xf32> to vector<16xf32>
    %5 = vector.shape_cast %4 : vector<16xf32> to vector<16x1xf32>
    %cst_6 = arith.constant 1.280000e+02 : f32
    %6 = vector.broadcast %cst_6 : f32 to vector<16x1xf32>
    %7 = arith.divf %5, %6 : vector<16x1xf32>
    %8 = arith.mulf %1, %1 : vector<16x128xf32>
    %cst_7 = arith.constant dense<0.000000e+00> : vector<16xf32>
    %9 = vector.multi_reduction <add>, %8, %cst_7 [1] : vector<16x128xf32> to vector<16xf32>
    %10 = vector.shape_cast %9 : vector<16xf32> to vector<16x1xf32>
    %cst_8 = arith.constant 1.280000e+02 : f32
    %11 = vector.broadcast %cst_8 : f32 to vector<16x1xf32>
    %12 = arith.divf %10, %11 : vector<16x1xf32>
    %13 = arith.mulf %7, %7 : vector<16x1xf32>
    %14 = arith.subf %12, %13 : vector<16x1xf32>
    %cst_9 = arith.constant 0.000000e+00 : f32
    %15 = vector.broadcast %cst_9 : f32 to vector<16x1xf32>
    %16 = arith.maximumf %14, %15 : vector<16x1xf32>
    %17 = vector.broadcast %7 : vector<16x1xf32> to vector<16x128xf32>
    %18 = arith.subf %1, %17 : vector<16x128xf32>
    %cst_10 = arith.constant 9.99999997E-7 : f32
    %19 = vector.broadcast %cst_10 : f32 to vector<16x1xf32>
    %20 = arith.addf %16, %19 : vector<16x1xf32>
    %21 = math.rsqrt %20 : vector<16x1xf32>
    %22 = vector.broadcast %21 : vector<16x1xf32> to vector<16x128xf32>
    %23 = arith.mulf %18, %22 : vector<16x128xf32>
    %24 = vector.broadcast %2 : vector<1x128xf32> to vector<16x128xf32>
    %25 = arith.mulf %23, %24 : vector<16x128xf32>
    %26 = vector.broadcast %3 : vector<1x128xf32> to vector<16x128xf32>
    %27 = arith.addf %25, %26 : vector<16x128xf32>
    %c0_11 = arith.constant 0 : index
    %c0_12 = arith.constant 0 : index
    %28 = vector.load %arg4[%c0_11, %c0_12] : memref<128x384xbf16, #tpu.memory_space<vmem>>, vector<128x384xbf16>
    %29 = arith.truncf %27 : vector<16x128xf32> to vector<16x128xbf16>
    %cst_13 = arith.constant dense<0.000000e+00> : vector<16x384xf32>
    %30 = tpu.matmul %29, %28, %cst_13 {dimension_numbers = #tpu.dot_dimension_numbers<[1], [0], [0], [1], [0, 0, 1, 1], [], []>} : vector<16x128xbf16>, vector<128x384xbf16>, vector<16x384xf32> -> vector<16x384xf32>
    %c0_14 = arith.constant 0 : index
    %c0_15 = arith.constant 0 : index
    %31 = vector.load %arg5[%c0_14, %c0_15] : memref<1x384xf32, #tpu.memory_space<vmem>>, vector<1x384xf32>
    %32 = vector.broadcast %31 : vector<1x384xf32> to vector<16x384xf32>
    %33 = arith.addf %30, %32 : vector<16x384xf32>
    %34 = vector.extract_strided_slice %33 {offsets = [0, 0], sizes = [16, 16], strides = [1, 1]} : vector<16x384xf32> to vector<16x16xf32>
    %cst_16 = arith.constant 2.500000e-01 : f32
    %35 = vector.broadcast %cst_16 : f32 to vector<16x16xf32>
    %36 = arith.mulf %34, %35 : vector<16x16xf32>
    %37 = vector.extract_strided_slice %33 {offsets = [0, 128], sizes = [16, 16], strides = [1, 1]} : vector<16x384xf32> to vector<16x16xf32>
    %38 = vector.extract_strided_slice %33 {offsets = [0, 256], sizes = [16, 16], strides = [1, 1]} : vector<16x384xf32> to vector<16x16xf32>
    %39 = arith.truncf %36 : vector<16x16xf32> to vector<16x16xbf16>
    %40 = arith.truncf %37 : vector<16x16xf32> to vector<16x16xbf16>
    "tpu.trace_start"() <{level = 10 : i32, message = "td,sd->ts"}> : () -> ()
    %cst_17 = arith.constant dense<0.000000e+00> : vector<16x16xf32>
    %41 = tpu.matmul %39, %40, %cst_17 {dimension_numbers = #tpu.dot_dimension_numbers<[1], [1], [0], [0], [0, 0, 1, 0], [], []>} : vector<16x16xbf16>, vector<16x16xbf16>, vector<16x16xf32> -> vector<16x16xf32>
    "tpu.trace_stop"() : () -> ()
    %cst_18 = arith.constant dense<0xFF800000> : vector<16xf32>
    %42 = vector.multi_reduction <maximumf>, %41, %cst_18 [1] : vector<16x16xf32> to vector<16xf32>
    %43 = vector.shape_cast %42 : vector<16xf32> to vector<16x1xf32>
    %44 = vector.broadcast %43 : vector<16x1xf32> to vector<16x16xf32>
    %45 = arith.subf %41, %44 : vector<16x16xf32>
    %46 = math.exp %45 : vector<16x16xf32>
    %cst_19 = arith.constant dense<0.000000e+00> : vector<16xf32>
    %47 = vector.multi_reduction <add>, %46, %cst_19 [1] : vector<16x16xf32> to vector<16xf32>
    %48 = vector.shape_cast %47 : vector<16xf32> to vector<16x1xf32>
    %49 = tpu.reciprocal %48 {approx = true} : vector<16x1xf32> -> vector<16x1xf32>
    %50 = vector.broadcast %49 : vector<16x1xf32> to vector<16x16xf32>
    %51 = arith.mulf %46, %50 : vector<16x16xf32>
    %52 = arith.truncf %51 : vector<16x16xf32> to vector<16x16xbf16>
    %53 = arith.truncf %38 : vector<16x16xf32> to vector<16x16xbf16>
    "tpu.trace_start"() <{level = 10 : i32, message = "ts,sd->td"}> : () -> ()
    %cst_20 = arith.constant dense<0.000000e+00> : vector<16x16xf32>
    %54 = tpu.matmul %52, %53, %cst_20 {dimension_numbers = #tpu.dot_dimension_numbers<[1], [0], [0], [1], [0, 0, 1, 1], [], []>} : vector<16x16xbf16>, vector<16x16xbf16>, vector<16x16xf32> -> vector<16x16xf32>
    "tpu.trace_stop"() : () -> ()
    %55 = vector.extract_strided_slice %33 {offsets = [0, 16], sizes = [16, 16], strides = [1, 1]} : vector<16x384xf32> to vector<16x16xf32>
    %cst_21 = arith.constant 2.500000e-01 : f32
    %56 = vector.broadcast %cst_21 : f32 to vector<16x16xf32>
    %57 = arith.mulf %55, %56 : vector<16x16xf32>
    %58 = vector.extract_strided_slice %33 {offsets = [0, 144], sizes = [16, 16], strides = [1, 1]} : vector<16x384xf32> to vector<16x16xf32>
    %59 = vector.extract_strided_slice %33 {offsets = [0, 272], sizes = [16, 16], strides = [1, 1]} : vector<16x384xf32> to vector<16x16xf32>
    %60 = arith.truncf %57 : vector<16x16xf32> to vector<16x16xbf16>
    %61 = arith.truncf %58 : vector<16x16xf32> to vector<16x16xbf16>
    "tpu.trace_start"() <{level = 10 : i32, message = "td,sd->ts"}> : () -> ()
    %cst_22 = arith.constant dense<0.000000e+00> : vector<16x16xf32>
    %62 = tpu.matmul %60, %61, %cst_22 {dimension_numbers = #tpu.dot_dimension_numbers<[1], [1], [0], [0], [0, 0, 1, 0], [], []>} : vector<16x16xbf16>, vector<16x16xbf16>, vector<16x16xf32> -> vector<16x16xf32>
    "tpu.trace_stop"() : () -> ()
    %cst_23 = arith.constant dense<0xFF800000> : vector<16xf32>
    %63 = vector.multi_reduction <maximumf>, %62, %cst_23 [1] : vector<16x16xf32> to vector<16xf32>
    %64 = vector.shape_cast %63 : vector<16xf32> to vector<16x1xf32>
    %65 = vector.broadcast %64 : vector<16x1xf32> to vector<16x16xf32>
    %66 = arith.subf %62, %65 : vector<16x16xf32>
    %67 = math.exp %66 : vector<16x16xf32>
    %cst_24 = arith.constant dense<0.000000e+00> : vector<16xf32>
    %68 = vector.multi_reduction <add>, %67, %cst_24 [1] : vector<16x16xf32> to vector<16xf32>
    %69 = vector.shape_cast %68 : vector<16xf32> to vector<16x1xf32>
    %70 = tpu.reciprocal %69 {approx = true} : vector<16x1xf32> -> vector<16x1xf32>
    %71 = vector.broadcast %70 : vector<16x1xf32> to vector<16x16xf32>
    %72 = arith.mulf %67, %71 : vector<16x16xf32>
    %73 = arith.truncf %72 : vector<16x16xf32> to vector<16x16xbf16>
    %74 = arith.truncf %59 : vector<16x16xf32> to vector<16x16xbf16>
    "tpu.trace_start"() <{level = 10 : i32, message = "ts,sd->td"}> : () -> ()
    %cst_25 = arith.constant dense<0.000000e+00> : vector<16x16xf32>
    %75 = tpu.matmul %73, %74, %cst_25 {dimension_numbers = #tpu.dot_dimension_numbers<[1], [0], [0], [1], [0, 0, 1, 1], [], []>} : vector<16x16xbf16>, vector<16x16xbf16>, vector<16x16xf32> -> vector<16x16xf32>
    "tpu.trace_stop"() : () -> ()
    %76 = vector.extract_strided_slice %33 {offsets = [0, 32], sizes = [16, 16], strides = [1, 1]} : vector<16x384xf32> to vector<16x16xf32>
    %cst_26 = arith.constant 2.500000e-01 : f32
    %77 = vector.broadcast %cst_26 : f32 to vector<16x16xf32>
    %78 = arith.mulf %76, %77 : vector<16x16xf32>
    %79 = vector.extract_strided_slice %33 {offsets = [0, 160], sizes = [16, 16], strides = [1, 1]} : vector<16x384xf32> to vector<16x16xf32>
    %80 = vector.extract_strided_slice %33 {offsets = [0, 288], sizes = [16, 16], strides = [1, 1]} : vector<16x384xf32> to vector<16x16xf32>
    %81 = arith.truncf %78 : vector<16x16xf32> to vector<16x16xbf16>
    %82 = arith.truncf %79 : vector<16x16xf32> to vector<16x16xbf16>
    "tpu.trace_start"() <{level = 10 : i32, message = "td,sd->ts"}> : () -> ()
    %cst_27 = arith.constant dense<0.000000e+00> : vector<16x16xf32>
    %83 = tpu.matmul %81, %82, %cst_27 {dimension_numbers = #tpu.dot_dimension_numbers<[1], [1], [0], [0], [0, 0, 1, 0], [], []>} : vector<16x16xbf16>, vector<16x16xbf16>, vector<16x16xf32> -> vector<16x16xf32>
    "tpu.trace_stop"() : () -> ()
    %cst_28 = arith.constant dense<0xFF800000> : vector<16xf32>
    %84 = vector.multi_reduction <maximumf>, %83, %cst_28 [1] : vector<16x16xf32> to vector<16xf32>
    %85 = vector.shape_cast %84 : vector<16xf32> to vector<16x1xf32>
    %86 = vector.broadcast %85 : vector<16x1xf32> to vector<16x16xf32>
    %87 = arith.subf %83, %86 : vector<16x16xf32>
    %88 = math.exp %87 : vector<16x16xf32>
    %cst_29 = arith.constant dense<0.000000e+00> : vector<16xf32>
    %89 = vector.multi_reduction <add>, %88, %cst_29 [1] : vector<16x16xf32> to vector<16xf32>
    %90 = vector.shape_cast %89 : vector<16xf32> to vector<16x1xf32>
    %91 = tpu.reciprocal %90 {approx = true} : vector<16x1xf32> -> vector<16x1xf32>
    %92 = vector.broadcast %91 : vector<16x1xf32> to vector<16x16xf32>
    %93 = arith.mulf %88, %92 : vector<16x16xf32>
    %94 = arith.truncf %93 : vector<16x16xf32> to vector<16x16xbf16>
    %95 = arith.truncf %80 : vector<16x16xf32> to vector<16x16xbf16>
    "tpu.trace_start"() <{level = 10 : i32, message = "ts,sd->td"}> : () -> ()
    %cst_30 = arith.constant dense<0.000000e+00> : vector<16x16xf32>
    %96 = tpu.matmul %94, %95, %cst_30 {dimension_numbers = #tpu.dot_dimension_numbers<[1], [0], [0], [1], [0, 0, 1, 1], [], []>} : vector<16x16xbf16>, vector<16x16xbf16>, vector<16x16xf32> -> vector<16x16xf32>
    "tpu.trace_stop"() : () -> ()
    %97 = vector.extract_strided_slice %33 {offsets = [0, 48], sizes = [16, 16], strides = [1, 1]} : vector<16x384xf32> to vector<16x16xf32>
    %cst_31 = arith.constant 2.500000e-01 : f32
    %98 = vector.broadcast %cst_31 : f32 to vector<16x16xf32>
    %99 = arith.mulf %97, %98 : vector<16x16xf32>
    %100 = vector.extract_strided_slice %33 {offsets = [0, 176], sizes = [16, 16], strides = [1, 1]} : vector<16x384xf32> to vector<16x16xf32>
    %101 = vector.extract_strided_slice %33 {offsets = [0, 304], sizes = [16, 16], strides = [1, 1]} : vector<16x384xf32> to vector<16x16xf32>
    %102 = arith.truncf %99 : vector<16x16xf32> to vector<16x16xbf16>
    %103 = arith.truncf %100 : vector<16x16xf32> to vector<16x16xbf16>
    "tpu.trace_start"() <{level = 10 : i32, message = "td,sd->ts"}> : () -> ()
    %cst_32 = arith.constant dense<0.000000e+00> : vector<16x16xf32>
    %104 = tpu.matmul %102, %103, %cst_32 {dimension_numbers = #tpu.dot_dimension_numbers<[1], [1], [0], [0], [0, 0, 1, 0], [], []>} : vector<16x16xbf16>, vector<16x16xbf16>, vector<16x16xf32> -> vector<16x16xf32>
    "tpu.trace_stop"() : () -> ()
    %cst_33 = arith.constant dense<0xFF800000> : vector<16xf32>
    %105 = vector.multi_reduction <maximumf>, %104, %cst_33 [1] : vector<16x16xf32> to vector<16xf32>
    %106 = vector.shape_cast %105 : vector<16xf32> to vector<16x1xf32>
    %107 = vector.broadcast %106 : vector<16x1xf32> to vector<16x16xf32>
    %108 = arith.subf %104, %107 : vector<16x16xf32>
    %109 = math.exp %108 : vector<16x16xf32>
    %cst_34 = arith.constant dense<0.000000e+00> : vector<16xf32>
    %110 = vector.multi_reduction <add>, %109, %cst_34 [1] : vector<16x16xf32> to vector<16xf32>
    %111 = vector.shape_cast %110 : vector<16xf32> to vector<16x1xf32>
    %112 = tpu.reciprocal %111 {approx = true} : vector<16x1xf32> -> vector<16x1xf32>
    %113 = vector.broadcast %112 : vector<16x1xf32> to vector<16x16xf32>
    %114 = arith.mulf %109, %113 : vector<16x16xf32>
    %115 = arith.truncf %114 : vector<16x16xf32> to vector<16x16xbf16>
    %116 = arith.truncf %101 : vector<16x16xf32> to vector<16x16xbf16>
    "tpu.trace_start"() <{level = 10 : i32, message = "ts,sd->td"}> : () -> ()
    %cst_35 = arith.constant dense<0.000000e+00> : vector<16x16xf32>
    %117 = tpu.matmul %115, %116, %cst_35 {dimension_numbers = #tpu.dot_dimension_numbers<[1], [0], [0], [1], [0, 0, 1, 1], [], []>} : vector<16x16xbf16>, vector<16x16xbf16>, vector<16x16xf32> -> vector<16x16xf32>
    "tpu.trace_stop"() : () -> ()
    %118 = vector.extract_strided_slice %33 {offsets = [0, 64], sizes = [16, 16], strides = [1, 1]} : vector<16x384xf32> to vector<16x16xf32>
    %cst_36 = arith.constant 2.500000e-01 : f32
    %119 = vector.broadcast %cst_36 : f32 to vector<16x16xf32>
    %120 = arith.mulf %118, %119 : vector<16x16xf32>
    %121 = vector.extract_strided_slice %33 {offsets = [0, 192], sizes = [16, 16], strides = [1, 1]} : vector<16x384xf32> to vector<16x16xf32>
    %122 = vector.extract_strided_slice %33 {offsets = [0, 320], sizes = [16, 16], strides = [1, 1]} : vector<16x384xf32> to vector<16x16xf32>
    %123 = arith.truncf %120 : vector<16x16xf32> to vector<16x16xbf16>
    %124 = arith.truncf %121 : vector<16x16xf32> to vector<16x16xbf16>
    "tpu.trace_start"() <{level = 10 : i32, message = "td,sd->ts"}> : () -> ()
    %cst_37 = arith.constant dense<0.000000e+00> : vector<16x16xf32>
    %125 = tpu.matmul %123, %124, %cst_37 {dimension_numbers = #tpu.dot_dimension_numbers<[1], [1], [0], [0], [0, 0, 1, 0], [], []>} : vector<16x16xbf16>, vector<16x16xbf16>, vector<16x16xf32> -> vector<16x16xf32>
    "tpu.trace_stop"() : () -> ()
    %cst_38 = arith.constant dense<0xFF800000> : vector<16xf32>
    %126 = vector.multi_reduction <maximumf>, %125, %cst_38 [1] : vector<16x16xf32> to vector<16xf32>
    %127 = vector.shape_cast %126 : vector<16xf32> to vector<16x1xf32>
    %128 = vector.broadcast %127 : vector<16x1xf32> to vector<16x16xf32>
    %129 = arith.subf %125, %128 : vector<16x16xf32>
    %130 = math.exp %129 : vector<16x16xf32>
    %cst_39 = arith.constant dense<0.000000e+00> : vector<16xf32>
    %131 = vector.multi_reduction <add>, %130, %cst_39 [1] : vector<16x16xf32> to vector<16xf32>
    %132 = vector.shape_cast %131 : vector<16xf32> to vector<16x1xf32>
    %133 = tpu.reciprocal %132 {approx = true} : vector<16x1xf32> -> vector<16x1xf32>
    %134 = vector.broadcast %133 : vector<16x1xf32> to vector<16x16xf32>
    %135 = arith.mulf %130, %134 : vector<16x16xf32>
    %136 = arith.truncf %135 : vector<16x16xf32> to vector<16x16xbf16>
    %137 = arith.truncf %122 : vector<16x16xf32> to vector<16x16xbf16>
    "tpu.trace_start"() <{level = 10 : i32, message = "ts,sd->td"}> : () -> ()
    %cst_40 = arith.constant dense<0.000000e+00> : vector<16x16xf32>
    %138 = tpu.matmul %136, %137, %cst_40 {dimension_numbers = #tpu.dot_dimension_numbers<[1], [0], [0], [1], [0, 0, 1, 1], [], []>} : vector<16x16xbf16>, vector<16x16xbf16>, vector<16x16xf32> -> vector<16x16xf32>
    "tpu.trace_stop"() : () -> ()
    %139 = vector.extract_strided_slice %33 {offsets = [0, 80], sizes = [16, 16], strides = [1, 1]} : vector<16x384xf32> to vector<16x16xf32>
    %cst_41 = arith.constant 2.500000e-01 : f32
    %140 = vector.broadcast %cst_41 : f32 to vector<16x16xf32>
    %141 = arith.mulf %139, %140 : vector<16x16xf32>
    %142 = vector.extract_strided_slice %33 {offsets = [0, 208], sizes = [16, 16], strides = [1, 1]} : vector<16x384xf32> to vector<16x16xf32>
    %143 = vector.extract_strided_slice %33 {offsets = [0, 336], sizes = [16, 16], strides = [1, 1]} : vector<16x384xf32> to vector<16x16xf32>
    %144 = arith.truncf %141 : vector<16x16xf32> to vector<16x16xbf16>
    %145 = arith.truncf %142 : vector<16x16xf32> to vector<16x16xbf16>
    "tpu.trace_start"() <{level = 10 : i32, message = "td,sd->ts"}> : () -> ()
    %cst_42 = arith.constant dense<0.000000e+00> : vector<16x16xf32>
    %146 = tpu.matmul %144, %145, %cst_42 {dimension_numbers = #tpu.dot_dimension_numbers<[1], [1], [0], [0], [0, 0, 1, 0], [], []>} : vector<16x16xbf16>, vector<16x16xbf16>, vector<16x16xf32> -> vector<16x16xf32>
    "tpu.trace_stop"() : () -> ()
    %cst_43 = arith.constant dense<0xFF800000> : vector<16xf32>
    %147 = vector.multi_reduction <maximumf>, %146, %cst_43 [1] : vector<16x16xf32> to vector<16xf32>
    %148 = vector.shape_cast %147 : vector<16xf32> to vector<16x1xf32>
    %149 = vector.broadcast %148 : vector<16x1xf32> to vector<16x16xf32>
    %150 = arith.subf %146, %149 : vector<16x16xf32>
    %151 = math.exp %150 : vector<16x16xf32>
    %cst_44 = arith.constant dense<0.000000e+00> : vector<16xf32>
    %152 = vector.multi_reduction <add>, %151, %cst_44 [1] : vector<16x16xf32> to vector<16xf32>
    %153 = vector.shape_cast %152 : vector<16xf32> to vector<16x1xf32>
    %154 = tpu.reciprocal %153 {approx = true} : vector<16x1xf32> -> vector<16x1xf32>
    %155 = vector.broadcast %154 : vector<16x1xf32> to vector<16x16xf32>
    %156 = arith.mulf %151, %155 : vector<16x16xf32>
    %157 = arith.truncf %156 : vector<16x16xf32> to vector<16x16xbf16>
    %158 = arith.truncf %143 : vector<16x16xf32> to vector<16x16xbf16>
    "tpu.trace_start"() <{level = 10 : i32, message = "ts,sd->td"}> : () -> ()
    %cst_45 = arith.constant dense<0.000000e+00> : vector<16x16xf32>
    %159 = tpu.matmul %157, %158, %cst_45 {dimension_numbers = #tpu.dot_dimension_numbers<[1], [0], [0], [1], [0, 0, 1, 1], [], []>} : vector<16x16xbf16>, vector<16x16xbf16>, vector<16x16xf32> -> vector<16x16xf32>
    "tpu.trace_stop"() : () -> ()
    %160 = vector.extract_strided_slice %33 {offsets = [0, 96], sizes = [16, 16], strides = [1, 1]} : vector<16x384xf32> to vector<16x16xf32>
    %cst_46 = arith.constant 2.500000e-01 : f32
    %161 = vector.broadcast %cst_46 : f32 to vector<16x16xf32>
    %162 = arith.mulf %160, %161 : vector<16x16xf32>
    %163 = vector.extract_strided_slice %33 {offsets = [0, 224], sizes = [16, 16], strides = [1, 1]} : vector<16x384xf32> to vector<16x16xf32>
    %164 = vector.extract_strided_slice %33 {offsets = [0, 352], sizes = [16, 16], strides = [1, 1]} : vector<16x384xf32> to vector<16x16xf32>
    %165 = arith.truncf %162 : vector<16x16xf32> to vector<16x16xbf16>
    %166 = arith.truncf %163 : vector<16x16xf32> to vector<16x16xbf16>
    "tpu.trace_start"() <{level = 10 : i32, message = "td,sd->ts"}> : () -> ()
    %cst_47 = arith.constant dense<0.000000e+00> : vector<16x16xf32>
    %167 = tpu.matmul %165, %166, %cst_47 {dimension_numbers = #tpu.dot_dimension_numbers<[1], [1], [0], [0], [0, 0, 1, 0], [], []>} : vector<16x16xbf16>, vector<16x16xbf16>, vector<16x16xf32> -> vector<16x16xf32>
    "tpu.trace_stop"() : () -> ()
    %cst_48 = arith.constant dense<0xFF800000> : vector<16xf32>
    %168 = vector.multi_reduction <maximumf>, %167, %cst_48 [1] : vector<16x16xf32> to vector<16xf32>
    %169 = vector.shape_cast %168 : vector<16xf32> to vector<16x1xf32>
    %170 = vector.broadcast %169 : vector<16x1xf32> to vector<16x16xf32>
    %171 = arith.subf %167, %170 : vector<16x16xf32>
    %172 = math.exp %171 : vector<16x16xf32>
    %cst_49 = arith.constant dense<0.000000e+00> : vector<16xf32>
    %173 = vector.multi_reduction <add>, %172, %cst_49 [1] : vector<16x16xf32> to vector<16xf32>
    %174 = vector.shape_cast %173 : vector<16xf32> to vector<16x1xf32>
    %175 = tpu.reciprocal %174 {approx = true} : vector<16x1xf32> -> vector<16x1xf32>
    %176 = vector.broadcast %175 : vector<16x1xf32> to vector<16x16xf32>
    %177 = arith.mulf %172, %176 : vector<16x16xf32>
    %178 = arith.truncf %177 : vector<16x16xf32> to vector<16x16xbf16>
    %179 = arith.truncf %164 : vector<16x16xf32> to vector<16x16xbf16>
    "tpu.trace_start"() <{level = 10 : i32, message = "ts,sd->td"}> : () -> ()
    %cst_50 = arith.constant dense<0.000000e+00> : vector<16x16xf32>
    %180 = tpu.matmul %178, %179, %cst_50 {dimension_numbers = #tpu.dot_dimension_numbers<[1], [0], [0], [1], [0, 0, 1, 1], [], []>} : vector<16x16xbf16>, vector<16x16xbf16>, vector<16x16xf32> -> vector<16x16xf32>
    "tpu.trace_stop"() : () -> ()
    %181 = vector.extract_strided_slice %33 {offsets = [0, 112], sizes = [16, 16], strides = [1, 1]} : vector<16x384xf32> to vector<16x16xf32>
    %cst_51 = arith.constant 2.500000e-01 : f32
    %182 = vector.broadcast %cst_51 : f32 to vector<16x16xf32>
    %183 = arith.mulf %181, %182 : vector<16x16xf32>
    %184 = vector.extract_strided_slice %33 {offsets = [0, 240], sizes = [16, 16], strides = [1, 1]} : vector<16x384xf32> to vector<16x16xf32>
    %185 = vector.extract_strided_slice %33 {offsets = [0, 368], sizes = [16, 16], strides = [1, 1]} : vector<16x384xf32> to vector<16x16xf32>
    %186 = arith.truncf %183 : vector<16x16xf32> to vector<16x16xbf16>
    %187 = arith.truncf %184 : vector<16x16xf32> to vector<16x16xbf16>
    "tpu.trace_start"() <{level = 10 : i32, message = "td,sd->ts"}> : () -> ()
    %cst_52 = arith.constant dense<0.000000e+00> : vector<16x16xf32>
    %188 = tpu.matmul %186, %187, %cst_52 {dimension_numbers = #tpu.dot_dimension_numbers<[1], [1], [0], [0], [0, 0, 1, 0], [], []>} : vector<16x16xbf16>, vector<16x16xbf16>, vector<16x16xf32> -> vector<16x16xf32>
    "tpu.trace_stop"() : () -> ()
    %cst_53 = arith.constant dense<0xFF800000> : vector<16xf32>
    %189 = vector.multi_reduction <maximumf>, %188, %cst_53 [1] : vector<16x16xf32> to vector<16xf32>
    %190 = vector.shape_cast %189 : vector<16xf32> to vector<16x1xf32>
    %191 = vector.broadcast %190 : vector<16x1xf32> to vector<16x16xf32>
    %192 = arith.subf %188, %191 : vector<16x16xf32>
    %193 = math.exp %192 : vector<16x16xf32>
    %cst_54 = arith.constant dense<0.000000e+00> : vector<16xf32>
    %194 = vector.multi_reduction <add>, %193, %cst_54 [1] : vector<16x16xf32> to vector<16xf32>
    %195 = vector.shape_cast %194 : vector<16xf32> to vector<16x1xf32>
    %196 = tpu.reciprocal %195 {approx = true} : vector<16x1xf32> -> vector<16x1xf32>
    %197 = vector.broadcast %196 : vector<16x1xf32> to vector<16x16xf32>
    %198 = arith.mulf %193, %197 : vector<16x16xf32>
    %199 = arith.truncf %198 : vector<16x16xf32> to vector<16x16xbf16>
    %200 = arith.truncf %185 : vector<16x16xf32> to vector<16x16xbf16>
    "tpu.trace_start"() <{level = 10 : i32, message = "ts,sd->td"}> : () -> ()
    %cst_55 = arith.constant dense<0.000000e+00> : vector<16x16xf32>
    %201 = tpu.matmul %199, %200, %cst_55 {dimension_numbers = #tpu.dot_dimension_numbers<[1], [0], [0], [1], [0, 0, 1, 1], [], []>} : vector<16x16xbf16>, vector<16x16xbf16>, vector<16x16xf32> -> vector<16x16xf32>
    "tpu.trace_stop"() : () -> ()
    %202 = tpu.concatenate %54, %75, %96, %117, %138, %159, %180, %201 in 1 : vector<16x16xf32>, vector<16x16xf32>, vector<16x16xf32>, vector<16x16xf32>, vector<16x16xf32>, vector<16x16xf32>, vector<16x16xf32>, vector<16x16xf32> -> vector<16x128xf32>
    %c0_56 = arith.constant 0 : index
    %c0_57 = arith.constant 0 : index
    %203 = vector.load %arg6[%c0_56, %c0_57] : memref<128x128xbf16, #tpu.memory_space<vmem>>, vector<128x128xbf16>
    %204 = arith.truncf %202 : vector<16x128xf32> to vector<16x128xbf16>
    %cst_58 = arith.constant dense<0.000000e+00> : vector<16x128xf32>
    %205 = tpu.matmul %204, %203, %cst_58 {dimension_numbers = #tpu.dot_dimension_numbers<[1], [0], [0], [1], [0, 0, 1, 1], [], []>} : vector<16x128xbf16>, vector<128x128xbf16>, vector<16x128xf32> -> vector<16x128xf32>
    %c0_59 = arith.constant 0 : index
    %c0_60 = arith.constant 0 : index
    %206 = vector.load %arg7[%c0_59, %c0_60] : memref<1x128xf32, #tpu.memory_space<vmem>>, vector<1x128xf32>
    %207 = vector.broadcast %206 : vector<1x128xf32> to vector<16x128xf32>
    %208 = arith.addf %205, %207 : vector<16x128xf32>
    %209 = arith.addf %1, %208 : vector<16x128xf32>
    %c0_61 = arith.constant 0 : index
    %c0_62 = arith.constant 0 : index
    %c0_63 = arith.constant 0 : index
    %210 = vector.load %arg8[%c0_61, %c0_62, %c0_63] : memref<1x16x128xf32, #tpu.memory_space<vmem>>, vector<1x16x128xf32>
    %211 = vector.shape_cast %210 : vector<1x16x128xf32> to vector<16x128xf32>
    %212 = vector.shape_cast %209 : vector<16x128xf32> to vector<1x16x128xf32>
    tpu.vector_store %arg8[%c0_61, %c0_62, %c0_63], %212 {strides = array<i32>} : memref<1x16x128xf32, #tpu.memory_space<vmem>>, vector<1x16x128xf32>,
    return
  }
  func.func @transform_0(%arg0: i32) -> (i32, i32, i32) {
    %c0_i32 = arith.constant 0 : i32
    %c0_i32_0 = arith.constant 0 : i32
    %c0_i32_1 = arith.constant 0 : i32
    return %arg0, %c0_i32, %c0_i32_0 : i32, i32, i32
  }
  func.func @transform_1(%arg0: i32) -> (i32, i32) {
    %c0_i32 = arith.constant 0 : i32
    %c0_i32_0 = arith.constant 0 : i32
    %c0_i32_1 = arith.constant 0 : i32
    return %c0_i32, %c0_i32_0 : i32, i32
  }
  func.func @transform_2(%arg0: i32) -> (i32, i32) {
    %c0_i32 = arith.constant 0 : i32
    %c0_i32_0 = arith.constant 0 : i32
    %c0_i32_1 = arith.constant 0 : i32
    return %c0_i32, %c0_i32_0 : i32, i32
  }
  func.func @transform_3(%arg0: i32) -> (i32, i32) {
    %c0_i32 = arith.constant 0 : i32
    %c0_i32_0 = arith.constant 0 : i32
    %c0_i32_1 = arith.constant 0 : i32
    return %c0_i32, %c0_i32_0 : i32, i32
  }
  func.func @transform_4(%arg0: i32) -> (i32, i32) {
    %c0_i32 = arith.constant 0 : i32
    %c0_i32_0 = arith.constant 0 : i32
    %c0_i32_1 = arith.constant 0 : i32
    return %c0_i32, %c0_i32_0 : i32, i32
  }
  func.func @transform_5(%arg0: i32) -> (i32, i32) {
    %c0_i32 = arith.constant 0 : i32
    %c0_i32_0 = arith.constant 0 : i32
    %c0_i32_1 = arith.constant 0 : i32
    return %c0_i32, %c0_i32_0 : i32, i32
  }
  func.func @transform_6(%arg0: i32) -> (i32, i32) {
    %c0_i32 = arith.constant 0 : i32
    %c0_i32_0 = arith.constant 0 : i32
    %c0_i32_1 = arith.constant 0 : i32
    return %c0_i32, %c0_i32_0 : i32, i32
  }
  func.func @transform_7(%arg0: i32) -> (i32, i32, i32) {
    %c0_i32 = arith.constant 0 : i32
    %c0_i32_0 = arith.constant 0 : i32
    %c0_i32_1 = arith.constant 0 : i32
    return %arg0, %c0_i32, %c0_i32_0 : i32, i32, i32
  }
}

module attributes {stable_mosaic.version = 11 : i64} {
  func.func @_conv_stack_kernel(%arg0: i32, %arg1: memref<1x16x128xf32, #tpu.memory_space<vmem>>, %arg2: memref<16x128xf32, #tpu.memory_space<vmem>>, %arg3: memref<4x128xf32, #tpu.memory_space<vmem>>, %arg4: memref<4x128xf32, #tpu.memory_space<vmem>>, %arg5: memref<4x5x128xf32, #tpu.memory_space<vmem>>, %arg6: memref<4x128xf32, #tpu.memory_space<vmem>>, %arg7: memref<4x128x128xbf16, #tpu.memory_space<vmem>>, %arg8: memref<4x128xf32, #tpu.memory_space<vmem>>, %arg9: memref<1x16x128xf32, #tpu.memory_space<vmem>>, %arg10: memref<20x128xf32, #tpu.memory_space<vmem>>) attributes {dimension_semantics = [#tpu.dimension_semantics<parallel>], iteration_bounds = array<i64: 2>, scalar_prefetch = 0 : i64, scratch_operands = 1 : i64, tpu.core_type = #tpu.core_type<tc>, window_params = [{transform_indices = @transform_0, window_bounds = array<i64: 1, 16, 128>}, {pipeline_mode = #tpu.pipeline_mode<synchronous>, transform_indices = @transform_1, window_bounds = array<i64: 16, 128>}, {pipeline_mode = #tpu.pipeline_mode<synchronous>, transform_indices = @transform_2, window_bounds = array<i64: 4, 128>}, {pipeline_mode = #tpu.pipeline_mode<synchronous>, transform_indices = @transform_3, window_bounds = array<i64: 4, 128>}, {pipeline_mode = #tpu.pipeline_mode<synchronous>, transform_indices = @transform_4, window_bounds = array<i64: 4, 5, 128>}, {pipeline_mode = #tpu.pipeline_mode<synchronous>, transform_indices = @transform_5, window_bounds = array<i64: 4, 128>}, {pipeline_mode = #tpu.pipeline_mode<synchronous>, transform_indices = @transform_6, window_bounds = array<i64: 4, 128, 128>}, {pipeline_mode = #tpu.pipeline_mode<synchronous>, transform_indices = @transform_7, window_bounds = array<i64: 4, 128>}, {transform_indices = @transform_8, window_bounds = array<i64: 1, 16, 128>}]} {
    %c0 = arith.constant 0 : index
    %c0_0 = arith.constant 0 : index
    %c0_1 = arith.constant 0 : index
    %0 = vector.load %arg1[%c0, %c0_0, %c0_1] : memref<1x16x128xf32, #tpu.memory_space<vmem>>, vector<1x16x128xf32>
    %1 = vector.shape_cast %0 : vector<1x16x128xf32> to vector<16x128xf32>
    %c0_2 = arith.constant 0 : index
    %c0_3 = arith.constant 0 : index
    %2 = vector.load %arg2[%c0_2, %c0_3] : memref<16x128xf32, #tpu.memory_space<vmem>>, vector<16x128xf32>
    %3 = arith.addf %1, %2 : vector<16x128xf32>
    %c0_4 = arith.constant 0 : index
    %c0_5 = arith.constant 0 : index
    %4 = vector.load %arg3[%c0_4, %c0_5] : memref<4x128xf32, #tpu.memory_space<vmem>>, vector<4x128xf32>
    %c0_6 = arith.constant 0 : index
    %c0_7 = arith.constant 0 : index
    %5 = vector.load %arg4[%c0_6, %c0_7] : memref<4x128xf32, #tpu.memory_space<vmem>>, vector<4x128xf32>
    %c0_8 = arith.constant 0 : index
    %c0_9 = arith.constant 0 : index
    %c0_10 = arith.constant 0 : index
    %6 = vector.load %arg5[%c0_8, %c0_9, %c0_10] : memref<4x5x128xf32, #tpu.memory_space<vmem>>, vector<4x5x128xf32>
    %c0_11 = arith.constant 0 : index
    %c0_12 = arith.constant 0 : index
    %7 = vector.load %arg6[%c0_11, %c0_12] : memref<4x128xf32, #tpu.memory_space<vmem>>, vector<4x128xf32>
    %c0_13 = arith.constant 0 : index
    %c0_14 = arith.constant 0 : index
    %8 = vector.load %arg8[%c0_13, %c0_14] : memref<4x128xf32, #tpu.memory_space<vmem>>, vector<4x128xf32>
    %cst = arith.constant 0.000000e+00 : f32
    %9 = vector.broadcast %cst : f32 to vector<2x128xf32>
    %c0_15 = arith.constant 0 : index
    %c0_16 = arith.constant 0 : index
    %10 = vector.load %arg10[%c0_15, %c0_16] : memref<20x128xf32, #tpu.memory_space<vmem>>, vector<2x128xf32>
    tpu.vector_store %arg10[%c0_15, %c0_16], %9 {strides = array<i32>} : memref<20x128xf32, #tpu.memory_space<vmem>>, vector<2x128xf32>,
    %cst_17 = arith.constant 0.000000e+00 : f32
    %11 = vector.broadcast %cst_17 : f32 to vector<2x128xf32>
    %c18 = arith.constant 18 : index
    %c0_18 = arith.constant 0 : index
    %12 = vector.load %arg10[%c18, %c0_18] : memref<20x128xf32, #tpu.memory_space<vmem>>, vector<2x128xf32>
    tpu.vector_store %arg10[%c18, %c0_18], %11 {strides = array<i32>} : memref<20x128xf32, #tpu.memory_space<vmem>>, vector<2x128xf32>,
    %13 = vector.extract_strided_slice %4 {offsets = [0, 0], sizes = [1, 128], strides = [1, 1]} : vector<4x128xf32> to vector<1x128xf32>
    %14 = vector.shape_cast %13 : vector<1x128xf32> to vector<128xf32>
    %15 = vector.extract_strided_slice %5 {offsets = [0, 0], sizes = [1, 128], strides = [1, 1]} : vector<4x128xf32> to vector<1x128xf32>
    %16 = vector.shape_cast %15 : vector<1x128xf32> to vector<128xf32>
    %cst_19 = arith.constant dense<0.000000e+00> : vector<16xf32>
    %17 = vector.multi_reduction <add>, %3, %cst_19 [1] : vector<16x128xf32> to vector<16xf32>
    %18 = vector.shape_cast %17 : vector<16xf32> to vector<16x1xf32>
    %cst_20 = arith.constant 1.280000e+02 : f32
    %19 = vector.broadcast %cst_20 : f32 to vector<16x1xf32>
    %20 = arith.divf %18, %19 : vector<16x1xf32>
    %21 = arith.mulf %3, %3 : vector<16x128xf32>
    %cst_21 = arith.constant dense<0.000000e+00> : vector<16xf32>
    %22 = vector.multi_reduction <add>, %21, %cst_21 [1] : vector<16x128xf32> to vector<16xf32>
    %23 = vector.shape_cast %22 : vector<16xf32> to vector<16x1xf32>
    %cst_22 = arith.constant 1.280000e+02 : f32
    %24 = vector.broadcast %cst_22 : f32 to vector<16x1xf32>
    %25 = arith.divf %23, %24 : vector<16x1xf32>
    %26 = arith.mulf %20, %20 : vector<16x1xf32>
    %27 = arith.subf %25, %26 : vector<16x1xf32>
    %cst_23 = arith.constant 0.000000e+00 : f32
    %28 = vector.broadcast %cst_23 : f32 to vector<16x1xf32>
    %29 = arith.maximumf %27, %28 : vector<16x1xf32>
    %30 = vector.broadcast %20 : vector<16x1xf32> to vector<16x128xf32>
    %31 = arith.subf %3, %30 : vector<16x128xf32>
    %cst_24 = arith.constant 9.99999997E-7 : f32
    %32 = vector.broadcast %cst_24 : f32 to vector<16x1xf32>
    %33 = arith.addf %29, %32 : vector<16x1xf32>
    %34 = math.rsqrt %33 : vector<16x1xf32>
    %35 = vector.broadcast %34 : vector<16x1xf32> to vector<16x128xf32>
    %36 = arith.mulf %31, %35 : vector<16x128xf32>
    %37 = vector.shape_cast %14 : vector<128xf32> to vector<1x128xf32>
    %38 = vector.broadcast %37 : vector<1x128xf32> to vector<16x128xf32>
    %39 = arith.mulf %36, %38 : vector<16x128xf32>
    %40 = vector.shape_cast %16 : vector<128xf32> to vector<1x128xf32>
    %41 = vector.broadcast %40 : vector<1x128xf32> to vector<16x128xf32>
    %42 = arith.addf %39, %41 : vector<16x128xf32>
    %c2 = arith.constant 2 : index
    %c0_25 = arith.constant 0 : index
    %43 = vector.load %arg10[%c2, %c0_25] : memref<20x128xf32, #tpu.memory_space<vmem>>, vector<16x128xf32>
    tpu.vector_store %arg10[%c2, %c0_25], %42 {strides = array<i32>} : memref<20x128xf32, #tpu.memory_space<vmem>>, vector<16x128xf32>,
    %cst_26 = arith.constant 0.000000e+00 : f32
    %44 = vector.broadcast %cst_26 : f32 to vector<16x128xf32>
    %c0_27 = arith.constant 0 : index
    %c0_28 = arith.constant 0 : index
    %45 = vector.load %arg10[%c0_27, %c0_28] : memref<20x128xf32, #tpu.memory_space<vmem>>, vector<16x128xf32>
    %46 = vector.extract_strided_slice %6 {offsets = [0, 0, 0], sizes = [1, 1, 128], strides = [1, 1, 1]} : vector<4x5x128xf32> to vector<1x1x128xf32>
    %47 = vector.shape_cast %46 : vector<1x1x128xf32> to vector<128xf32>
    %48 = vector.shape_cast %47 : vector<128xf32> to vector<1x128xf32>
    %49 = vector.broadcast %48 : vector<1x128xf32> to vector<16x128xf32>
    %50 = arith.mulf %45, %49 : vector<16x128xf32>
    %51 = arith.addf %44, %50 : vector<16x128xf32>
    %c1 = arith.constant 1 : index
    %c0_29 = arith.constant 0 : index
    %52 = vector.load %arg10[%c1, %c0_29] : memref<20x128xf32, #tpu.memory_space<vmem>>, vector<16x128xf32>
    %53 = vector.extract_strided_slice %6 {offsets = [0, 1, 0], sizes = [1, 1, 128], strides = [1, 1, 1]} : vector<4x5x128xf32> to vector<1x1x128xf32>
    %54 = vector.shape_cast %53 : vector<1x1x128xf32> to vector<128xf32>
    %55 = vector.shape_cast %54 : vector<128xf32> to vector<1x128xf32>
    %56 = vector.broadcast %55 : vector<1x128xf32> to vector<16x128xf32>
    %57 = arith.mulf %52, %56 : vector<16x128xf32>
    %58 = arith.addf %51, %57 : vector<16x128xf32>
    %c2_30 = arith.constant 2 : index
    %c0_31 = arith.constant 0 : index
    %59 = vector.load %arg10[%c2_30, %c0_31] : memref<20x128xf32, #tpu.memory_space<vmem>>, vector<16x128xf32>
    %60 = vector.extract_strided_slice %6 {offsets = [0, 2, 0], sizes = [1, 1, 128], strides = [1, 1, 1]} : vector<4x5x128xf32> to vector<1x1x128xf32>
    %61 = vector.shape_cast %60 : vector<1x1x128xf32> to vector<128xf32>
    %62 = vector.shape_cast %61 : vector<128xf32> to vector<1x128xf32>
    %63 = vector.broadcast %62 : vector<1x128xf32> to vector<16x128xf32>
    %64 = arith.mulf %59, %63 : vector<16x128xf32>
    %65 = arith.addf %58, %64 : vector<16x128xf32>
    %c3 = arith.constant 3 : index
    %c0_32 = arith.constant 0 : index
    %66 = vector.load %arg10[%c3, %c0_32] : memref<20x128xf32, #tpu.memory_space<vmem>>, vector<16x128xf32>
    %67 = vector.extract_strided_slice %6 {offsets = [0, 3, 0], sizes = [1, 1, 128], strides = [1, 1, 1]} : vector<4x5x128xf32> to vector<1x1x128xf32>
    %68 = vector.shape_cast %67 : vector<1x1x128xf32> to vector<128xf32>
    %69 = vector.shape_cast %68 : vector<128xf32> to vector<1x128xf32>
    %70 = vector.broadcast %69 : vector<1x128xf32> to vector<16x128xf32>
    %71 = arith.mulf %66, %70 : vector<16x128xf32>
    %72 = arith.addf %65, %71 : vector<16x128xf32>
    %c4 = arith.constant 4 : index
    %c0_33 = arith.constant 0 : index
    %73 = vector.load %arg10[%c4, %c0_33] : memref<20x128xf32, #tpu.memory_space<vmem>>, vector<16x128xf32>
    %74 = vector.extract_strided_slice %6 {offsets = [0, 4, 0], sizes = [1, 1, 128], strides = [1, 1, 1]} : vector<4x5x128xf32> to vector<1x1x128xf32>
    %75 = vector.shape_cast %74 : vector<1x1x128xf32> to vector<128xf32>
    %76 = vector.shape_cast %75 : vector<128xf32> to vector<1x128xf32>
    %77 = vector.broadcast %76 : vector<1x128xf32> to vector<16x128xf32>
    %78 = arith.mulf %73, %77 : vector<16x128xf32>
    %79 = arith.addf %72, %78 : vector<16x128xf32>
    %80 = vector.extract_strided_slice %7 {offsets = [0, 0], sizes = [1, 128], strides = [1, 1]} : vector<4x128xf32> to vector<1x128xf32>
    %81 = vector.shape_cast %80 : vector<1x128xf32> to vector<128xf32>
    %82 = vector.shape_cast %81 : vector<128xf32> to vector<1x128xf32>
    %83 = vector.broadcast %82 : vector<1x128xf32> to vector<16x128xf32>
    %84 = arith.addf %79, %83 : vector<16x128xf32>
    %c0_34 = arith.constant 0 : index
    %c0_35 = arith.constant 0 : index
    %c0_36 = arith.constant 0 : index
    %85 = vector.load %arg7[%c0_34, %c0_35, %c0_36] : memref<4x128x128xbf16, #tpu.memory_space<vmem>>, vector<1x128x128xbf16>
    %86 = vector.shape_cast %85 : vector<1x128x128xbf16> to vector<128x128xbf16>
    %87 = arith.truncf %84 : vector<16x128xf32> to vector<16x128xbf16>
    %cst_37 = arith.constant dense<0.000000e+00> : vector<16x128xf32>
    %88 = tpu.matmul %87, %86, %cst_37 {dimension_numbers = #tpu.dot_dimension_numbers<[1], [0], [0], [1], [0, 0, 1, 1], [], []>} : vector<16x128xbf16>, vector<128x128xbf16>, vector<16x128xf32> -> vector<16x128xf32>
    %89 = vector.extract_strided_slice %8 {offsets = [0, 0], sizes = [1, 128], strides = [1, 1]} : vector<4x128xf32> to vector<1x128xf32>
    %90 = vector.shape_cast %89 : vector<1x128xf32> to vector<128xf32>
    %91 = vector.shape_cast %90 : vector<128xf32> to vector<1x128xf32>
    %92 = vector.broadcast %91 : vector<1x128xf32> to vector<16x128xf32>
    %93 = arith.addf %88, %92 : vector<16x128xf32>
    %cst_38 = arith.constant 0.000000e+00 : f32
    %94 = vector.broadcast %cst_38 : f32 to vector<16x128xf32>
    %95 = arith.maximumf %93, %94 : vector<16x128xf32>
    %96 = arith.addf %3, %95 : vector<16x128xf32>
    %97 = vector.extract_strided_slice %4 {offsets = [1, 0], sizes = [1, 128], strides = [1, 1]} : vector<4x128xf32> to vector<1x128xf32>
    %98 = vector.shape_cast %97 : vector<1x128xf32> to vector<128xf32>
    %99 = vector.extract_strided_slice %5 {offsets = [1, 0], sizes = [1, 128], strides = [1, 1]} : vector<4x128xf32> to vector<1x128xf32>
    %100 = vector.shape_cast %99 : vector<1x128xf32> to vector<128xf32>
    %cst_39 = arith.constant dense<0.000000e+00> : vector<16xf32>
    %101 = vector.multi_reduction <add>, %96, %cst_39 [1] : vector<16x128xf32> to vector<16xf32>
    %102 = vector.shape_cast %101 : vector<16xf32> to vector<16x1xf32>
    %cst_40 = arith.constant 1.280000e+02 : f32
    %103 = vector.broadcast %cst_40 : f32 to vector<16x1xf32>
    %104 = arith.divf %102, %103 : vector<16x1xf32>
    %105 = arith.mulf %96, %96 : vector<16x128xf32>
    %cst_41 = arith.constant dense<0.000000e+00> : vector<16xf32>
    %106 = vector.multi_reduction <add>, %105, %cst_41 [1] : vector<16x128xf32> to vector<16xf32>
    %107 = vector.shape_cast %106 : vector<16xf32> to vector<16x1xf32>
    %cst_42 = arith.constant 1.280000e+02 : f32
    %108 = vector.broadcast %cst_42 : f32 to vector<16x1xf32>
    %109 = arith.divf %107, %108 : vector<16x1xf32>
    %110 = arith.mulf %104, %104 : vector<16x1xf32>
    %111 = arith.subf %109, %110 : vector<16x1xf32>
    %cst_43 = arith.constant 0.000000e+00 : f32
    %112 = vector.broadcast %cst_43 : f32 to vector<16x1xf32>
    %113 = arith.maximumf %111, %112 : vector<16x1xf32>
    %114 = vector.broadcast %104 : vector<16x1xf32> to vector<16x128xf32>
    %115 = arith.subf %96, %114 : vector<16x128xf32>
    %cst_44 = arith.constant 9.99999997E-7 : f32
    %116 = vector.broadcast %cst_44 : f32 to vector<16x1xf32>
    %117 = arith.addf %113, %116 : vector<16x1xf32>
    %118 = math.rsqrt %117 : vector<16x1xf32>
    %119 = vector.broadcast %118 : vector<16x1xf32> to vector<16x128xf32>
    %120 = arith.mulf %115, %119 : vector<16x128xf32>
    %121 = vector.shape_cast %98 : vector<128xf32> to vector<1x128xf32>
    %122 = vector.broadcast %121 : vector<1x128xf32> to vector<16x128xf32>
    %123 = arith.mulf %120, %122 : vector<16x128xf32>
    %124 = vector.shape_cast %100 : vector<128xf32> to vector<1x128xf32>
    %125 = vector.broadcast %124 : vector<1x128xf32> to vector<16x128xf32>
    %126 = arith.addf %123, %125 : vector<16x128xf32>
    %c2_45 = arith.constant 2 : index
    %c0_46 = arith.constant 0 : index
    %127 = vector.load %arg10[%c2_45, %c0_46] : memref<20x128xf32, #tpu.memory_space<vmem>>, vector<16x128xf32>
    tpu.vector_store %arg10[%c2_45, %c0_46], %126 {strides = array<i32>} : memref<20x128xf32, #tpu.memory_space<vmem>>, vector<16x128xf32>,
    %cst_47 = arith.constant 0.000000e+00 : f32
    %128 = vector.broadcast %cst_47 : f32 to vector<16x128xf32>
    %c0_48 = arith.constant 0 : index
    %c0_49 = arith.constant 0 : index
    %129 = vector.load %arg10[%c0_48, %c0_49] : memref<20x128xf32, #tpu.memory_space<vmem>>, vector<16x128xf32>
    %130 = vector.extract_strided_slice %6 {offsets = [1, 0, 0], sizes = [1, 1, 128], strides = [1, 1, 1]} : vector<4x5x128xf32> to vector<1x1x128xf32>
    %131 = vector.shape_cast %130 : vector<1x1x128xf32> to vector<128xf32>
    %132 = vector.shape_cast %131 : vector<128xf32> to vector<1x128xf32>
    %133 = vector.broadcast %132 : vector<1x128xf32> to vector<16x128xf32>
    %134 = arith.mulf %129, %133 : vector<16x128xf32>
    %135 = arith.addf %128, %134 : vector<16x128xf32>
    %c1_50 = arith.constant 1 : index
    %c0_51 = arith.constant 0 : index
    %136 = vector.load %arg10[%c1_50, %c0_51] : memref<20x128xf32, #tpu.memory_space<vmem>>, vector<16x128xf32>
    %137 = vector.extract_strided_slice %6 {offsets = [1, 1, 0], sizes = [1, 1, 128], strides = [1, 1, 1]} : vector<4x5x128xf32> to vector<1x1x128xf32>
    %138 = vector.shape_cast %137 : vector<1x1x128xf32> to vector<128xf32>
    %139 = vector.shape_cast %138 : vector<128xf32> to vector<1x128xf32>
    %140 = vector.broadcast %139 : vector<1x128xf32> to vector<16x128xf32>
    %141 = arith.mulf %136, %140 : vector<16x128xf32>
    %142 = arith.addf %135, %141 : vector<16x128xf32>
    %c2_52 = arith.constant 2 : index
    %c0_53 = arith.constant 0 : index
    %143 = vector.load %arg10[%c2_52, %c0_53] : memref<20x128xf32, #tpu.memory_space<vmem>>, vector<16x128xf32>
    %144 = vector.extract_strided_slice %6 {offsets = [1, 2, 0], sizes = [1, 1, 128], strides = [1, 1, 1]} : vector<4x5x128xf32> to vector<1x1x128xf32>
    %145 = vector.shape_cast %144 : vector<1x1x128xf32> to vector<128xf32>
    %146 = vector.shape_cast %145 : vector<128xf32> to vector<1x128xf32>
    %147 = vector.broadcast %146 : vector<1x128xf32> to vector<16x128xf32>
    %148 = arith.mulf %143, %147 : vector<16x128xf32>
    %149 = arith.addf %142, %148 : vector<16x128xf32>
    %c3_54 = arith.constant 3 : index
    %c0_55 = arith.constant 0 : index
    %150 = vector.load %arg10[%c3_54, %c0_55] : memref<20x128xf32, #tpu.memory_space<vmem>>, vector<16x128xf32>
    %151 = vector.extract_strided_slice %6 {offsets = [1, 3, 0], sizes = [1, 1, 128], strides = [1, 1, 1]} : vector<4x5x128xf32> to vector<1x1x128xf32>
    %152 = vector.shape_cast %151 : vector<1x1x128xf32> to vector<128xf32>
    %153 = vector.shape_cast %152 : vector<128xf32> to vector<1x128xf32>
    %154 = vector.broadcast %153 : vector<1x128xf32> to vector<16x128xf32>
    %155 = arith.mulf %150, %154 : vector<16x128xf32>
    %156 = arith.addf %149, %155 : vector<16x128xf32>
    %c4_56 = arith.constant 4 : index
    %c0_57 = arith.constant 0 : index
    %157 = vector.load %arg10[%c4_56, %c0_57] : memref<20x128xf32, #tpu.memory_space<vmem>>, vector<16x128xf32>
    %158 = vector.extract_strided_slice %6 {offsets = [1, 4, 0], sizes = [1, 1, 128], strides = [1, 1, 1]} : vector<4x5x128xf32> to vector<1x1x128xf32>
    %159 = vector.shape_cast %158 : vector<1x1x128xf32> to vector<128xf32>
    %160 = vector.shape_cast %159 : vector<128xf32> to vector<1x128xf32>
    %161 = vector.broadcast %160 : vector<1x128xf32> to vector<16x128xf32>
    %162 = arith.mulf %157, %161 : vector<16x128xf32>
    %163 = arith.addf %156, %162 : vector<16x128xf32>
    %164 = vector.extract_strided_slice %7 {offsets = [1, 0], sizes = [1, 128], strides = [1, 1]} : vector<4x128xf32> to vector<1x128xf32>
    %165 = vector.shape_cast %164 : vector<1x128xf32> to vector<128xf32>
    %166 = vector.shape_cast %165 : vector<128xf32> to vector<1x128xf32>
    %167 = vector.broadcast %166 : vector<1x128xf32> to vector<16x128xf32>
    %168 = arith.addf %163, %167 : vector<16x128xf32>
    %c1_58 = arith.constant 1 : index
    %c0_59 = arith.constant 0 : index
    %c0_60 = arith.constant 0 : index
    %169 = vector.load %arg7[%c1_58, %c0_59, %c0_60] : memref<4x128x128xbf16, #tpu.memory_space<vmem>>, vector<1x128x128xbf16>
    %170 = vector.shape_cast %169 : vector<1x128x128xbf16> to vector<128x128xbf16>
    %171 = arith.truncf %168 : vector<16x128xf32> to vector<16x128xbf16>
    %cst_61 = arith.constant dense<0.000000e+00> : vector<16x128xf32>
    %172 = tpu.matmul %171, %170, %cst_61 {dimension_numbers = #tpu.dot_dimension_numbers<[1], [0], [0], [1], [0, 0, 1, 1], [], []>} : vector<16x128xbf16>, vector<128x128xbf16>, vector<16x128xf32> -> vector<16x128xf32>
    %173 = vector.extract_strided_slice %8 {offsets = [1, 0], sizes = [1, 128], strides = [1, 1]} : vector<4x128xf32> to vector<1x128xf32>
    %174 = vector.shape_cast %173 : vector<1x128xf32> to vector<128xf32>
    %175 = vector.shape_cast %174 : vector<128xf32> to vector<1x128xf32>
    %176 = vector.broadcast %175 : vector<1x128xf32> to vector<16x128xf32>
    %177 = arith.addf %172, %176 : vector<16x128xf32>
    %cst_62 = arith.constant 0.000000e+00 : f32
    %178 = vector.broadcast %cst_62 : f32 to vector<16x128xf32>
    %179 = arith.maximumf %177, %178 : vector<16x128xf32>
    %180 = arith.addf %96, %179 : vector<16x128xf32>
    %181 = vector.extract_strided_slice %4 {offsets = [2, 0], sizes = [1, 128], strides = [1, 1]} : vector<4x128xf32> to vector<1x128xf32>
    %182 = vector.shape_cast %181 : vector<1x128xf32> to vector<128xf32>
    %183 = vector.extract_strided_slice %5 {offsets = [2, 0], sizes = [1, 128], strides = [1, 1]} : vector<4x128xf32> to vector<1x128xf32>
    %184 = vector.shape_cast %183 : vector<1x128xf32> to vector<128xf32>
    %cst_63 = arith.constant dense<0.000000e+00> : vector<16xf32>
    %185 = vector.multi_reduction <add>, %180, %cst_63 [1] : vector<16x128xf32> to vector<16xf32>
    %186 = vector.shape_cast %185 : vector<16xf32> to vector<16x1xf32>
    %cst_64 = arith.constant 1.280000e+02 : f32
    %187 = vector.broadcast %cst_64 : f32 to vector<16x1xf32>
    %188 = arith.divf %186, %187 : vector<16x1xf32>
    %189 = arith.mulf %180, %180 : vector<16x128xf32>
    %cst_65 = arith.constant dense<0.000000e+00> : vector<16xf32>
    %190 = vector.multi_reduction <add>, %189, %cst_65 [1] : vector<16x128xf32> to vector<16xf32>
    %191 = vector.shape_cast %190 : vector<16xf32> to vector<16x1xf32>
    %cst_66 = arith.constant 1.280000e+02 : f32
    %192 = vector.broadcast %cst_66 : f32 to vector<16x1xf32>
    %193 = arith.divf %191, %192 : vector<16x1xf32>
    %194 = arith.mulf %188, %188 : vector<16x1xf32>
    %195 = arith.subf %193, %194 : vector<16x1xf32>
    %cst_67 = arith.constant 0.000000e+00 : f32
    %196 = vector.broadcast %cst_67 : f32 to vector<16x1xf32>
    %197 = arith.maximumf %195, %196 : vector<16x1xf32>
    %198 = vector.broadcast %188 : vector<16x1xf32> to vector<16x128xf32>
    %199 = arith.subf %180, %198 : vector<16x128xf32>
    %cst_68 = arith.constant 9.99999997E-7 : f32
    %200 = vector.broadcast %cst_68 : f32 to vector<16x1xf32>
    %201 = arith.addf %197, %200 : vector<16x1xf32>
    %202 = math.rsqrt %201 : vector<16x1xf32>
    %203 = vector.broadcast %202 : vector<16x1xf32> to vector<16x128xf32>
    %204 = arith.mulf %199, %203 : vector<16x128xf32>
    %205 = vector.shape_cast %182 : vector<128xf32> to vector<1x128xf32>
    %206 = vector.broadcast %205 : vector<1x128xf32> to vector<16x128xf32>
    %207 = arith.mulf %204, %206 : vector<16x128xf32>
    %208 = vector.shape_cast %184 : vector<128xf32> to vector<1x128xf32>
    %209 = vector.broadcast %208 : vector<1x128xf32> to vector<16x128xf32>
    %210 = arith.addf %207, %209 : vector<16x128xf32>
    %c2_69 = arith.constant 2 : index
    %c0_70 = arith.constant 0 : index
    %211 = vector.load %arg10[%c2_69, %c0_70] : memref<20x128xf32, #tpu.memory_space<vmem>>, vector<16x128xf32>
    tpu.vector_store %arg10[%c2_69, %c0_70], %210 {strides = array<i32>} : memref<20x128xf32, #tpu.memory_space<vmem>>, vector<16x128xf32>,
    %cst_71 = arith.constant 0.000000e+00 : f32
    %212 = vector.broadcast %cst_71 : f32 to vector<16x128xf32>
    %c0_72 = arith.constant 0 : index
    %c0_73 = arith.constant 0 : index
    %213 = vector.load %arg10[%c0_72, %c0_73] : memref<20x128xf32, #tpu.memory_space<vmem>>, vector<16x128xf32>
    %214 = vector.extract_strided_slice %6 {offsets = [2, 0, 0], sizes = [1, 1, 128], strides = [1, 1, 1]} : vector<4x5x128xf32> to vector<1x1x128xf32>
    %215 = vector.shape_cast %214 : vector<1x1x128xf32> to vector<128xf32>
    %216 = vector.shape_cast %215 : vector<128xf32> to vector<1x128xf32>
    %217 = vector.broadcast %216 : vector<1x128xf32> to vector<16x128xf32>
    %218 = arith.mulf %213, %217 : vector<16x128xf32>
    %219 = arith.addf %212, %218 : vector<16x128xf32>
    %c1_74 = arith.constant 1 : index
    %c0_75 = arith.constant 0 : index
    %220 = vector.load %arg10[%c1_74, %c0_75] : memref<20x128xf32, #tpu.memory_space<vmem>>, vector<16x128xf32>
    %221 = vector.extract_strided_slice %6 {offsets = [2, 1, 0], sizes = [1, 1, 128], strides = [1, 1, 1]} : vector<4x5x128xf32> to vector<1x1x128xf32>
    %222 = vector.shape_cast %221 : vector<1x1x128xf32> to vector<128xf32>
    %223 = vector.shape_cast %222 : vector<128xf32> to vector<1x128xf32>
    %224 = vector.broadcast %223 : vector<1x128xf32> to vector<16x128xf32>
    %225 = arith.mulf %220, %224 : vector<16x128xf32>
    %226 = arith.addf %219, %225 : vector<16x128xf32>
    %c2_76 = arith.constant 2 : index
    %c0_77 = arith.constant 0 : index
    %227 = vector.load %arg10[%c2_76, %c0_77] : memref<20x128xf32, #tpu.memory_space<vmem>>, vector<16x128xf32>
    %228 = vector.extract_strided_slice %6 {offsets = [2, 2, 0], sizes = [1, 1, 128], strides = [1, 1, 1]} : vector<4x5x128xf32> to vector<1x1x128xf32>
    %229 = vector.shape_cast %228 : vector<1x1x128xf32> to vector<128xf32>
    %230 = vector.shape_cast %229 : vector<128xf32> to vector<1x128xf32>
    %231 = vector.broadcast %230 : vector<1x128xf32> to vector<16x128xf32>
    %232 = arith.mulf %227, %231 : vector<16x128xf32>
    %233 = arith.addf %226, %232 : vector<16x128xf32>
    %c3_78 = arith.constant 3 : index
    %c0_79 = arith.constant 0 : index
    %234 = vector.load %arg10[%c3_78, %c0_79] : memref<20x128xf32, #tpu.memory_space<vmem>>, vector<16x128xf32>
    %235 = vector.extract_strided_slice %6 {offsets = [2, 3, 0], sizes = [1, 1, 128], strides = [1, 1, 1]} : vector<4x5x128xf32> to vector<1x1x128xf32>
    %236 = vector.shape_cast %235 : vector<1x1x128xf32> to vector<128xf32>
    %237 = vector.shape_cast %236 : vector<128xf32> to vector<1x128xf32>
    %238 = vector.broadcast %237 : vector<1x128xf32> to vector<16x128xf32>
    %239 = arith.mulf %234, %238 : vector<16x128xf32>
    %240 = arith.addf %233, %239 : vector<16x128xf32>
    %c4_80 = arith.constant 4 : index
    %c0_81 = arith.constant 0 : index
    %241 = vector.load %arg10[%c4_80, %c0_81] : memref<20x128xf32, #tpu.memory_space<vmem>>, vector<16x128xf32>
    %242 = vector.extract_strided_slice %6 {offsets = [2, 4, 0], sizes = [1, 1, 128], strides = [1, 1, 1]} : vector<4x5x128xf32> to vector<1x1x128xf32>
    %243 = vector.shape_cast %242 : vector<1x1x128xf32> to vector<128xf32>
    %244 = vector.shape_cast %243 : vector<128xf32> to vector<1x128xf32>
    %245 = vector.broadcast %244 : vector<1x128xf32> to vector<16x128xf32>
    %246 = arith.mulf %241, %245 : vector<16x128xf32>
    %247 = arith.addf %240, %246 : vector<16x128xf32>
    %248 = vector.extract_strided_slice %7 {offsets = [2, 0], sizes = [1, 128], strides = [1, 1]} : vector<4x128xf32> to vector<1x128xf32>
    %249 = vector.shape_cast %248 : vector<1x128xf32> to vector<128xf32>
    %250 = vector.shape_cast %249 : vector<128xf32> to vector<1x128xf32>
    %251 = vector.broadcast %250 : vector<1x128xf32> to vector<16x128xf32>
    %252 = arith.addf %247, %251 : vector<16x128xf32>
    %c2_82 = arith.constant 2 : index
    %c0_83 = arith.constant 0 : index
    %c0_84 = arith.constant 0 : index
    %253 = vector.load %arg7[%c2_82, %c0_83, %c0_84] : memref<4x128x128xbf16, #tpu.memory_space<vmem>>, vector<1x128x128xbf16>
    %254 = vector.shape_cast %253 : vector<1x128x128xbf16> to vector<128x128xbf16>
    %255 = arith.truncf %252 : vector<16x128xf32> to vector<16x128xbf16>
    %cst_85 = arith.constant dense<0.000000e+00> : vector<16x128xf32>
    %256 = tpu.matmul %255, %254, %cst_85 {dimension_numbers = #tpu.dot_dimension_numbers<[1], [0], [0], [1], [0, 0, 1, 1], [], []>} : vector<16x128xbf16>, vector<128x128xbf16>, vector<16x128xf32> -> vector<16x128xf32>
    %257 = vector.extract_strided_slice %8 {offsets = [2, 0], sizes = [1, 128], strides = [1, 1]} : vector<4x128xf32> to vector<1x128xf32>
    %258 = vector.shape_cast %257 : vector<1x128xf32> to vector<128xf32>
    %259 = vector.shape_cast %258 : vector<128xf32> to vector<1x128xf32>
    %260 = vector.broadcast %259 : vector<1x128xf32> to vector<16x128xf32>
    %261 = arith.addf %256, %260 : vector<16x128xf32>
    %cst_86 = arith.constant 0.000000e+00 : f32
    %262 = vector.broadcast %cst_86 : f32 to vector<16x128xf32>
    %263 = arith.maximumf %261, %262 : vector<16x128xf32>
    %264 = arith.addf %180, %263 : vector<16x128xf32>
    %265 = vector.extract_strided_slice %4 {offsets = [3, 0], sizes = [1, 128], strides = [1, 1]} : vector<4x128xf32> to vector<1x128xf32>
    %266 = vector.shape_cast %265 : vector<1x128xf32> to vector<128xf32>
    %267 = vector.extract_strided_slice %5 {offsets = [3, 0], sizes = [1, 128], strides = [1, 1]} : vector<4x128xf32> to vector<1x128xf32>
    %268 = vector.shape_cast %267 : vector<1x128xf32> to vector<128xf32>
    %cst_87 = arith.constant dense<0.000000e+00> : vector<16xf32>
    %269 = vector.multi_reduction <add>, %264, %cst_87 [1] : vector<16x128xf32> to vector<16xf32>
    %270 = vector.shape_cast %269 : vector<16xf32> to vector<16x1xf32>
    %cst_88 = arith.constant 1.280000e+02 : f32
    %271 = vector.broadcast %cst_88 : f32 to vector<16x1xf32>
    %272 = arith.divf %270, %271 : vector<16x1xf32>
    %273 = arith.mulf %264, %264 : vector<16x128xf32>
    %cst_89 = arith.constant dense<0.000000e+00> : vector<16xf32>
    %274 = vector.multi_reduction <add>, %273, %cst_89 [1] : vector<16x128xf32> to vector<16xf32>
    %275 = vector.shape_cast %274 : vector<16xf32> to vector<16x1xf32>
    %cst_90 = arith.constant 1.280000e+02 : f32
    %276 = vector.broadcast %cst_90 : f32 to vector<16x1xf32>
    %277 = arith.divf %275, %276 : vector<16x1xf32>
    %278 = arith.mulf %272, %272 : vector<16x1xf32>
    %279 = arith.subf %277, %278 : vector<16x1xf32>
    %cst_91 = arith.constant 0.000000e+00 : f32
    %280 = vector.broadcast %cst_91 : f32 to vector<16x1xf32>
    %281 = arith.maximumf %279, %280 : vector<16x1xf32>
    %282 = vector.broadcast %272 : vector<16x1xf32> to vector<16x128xf32>
    %283 = arith.subf %264, %282 : vector<16x128xf32>
    %cst_92 = arith.constant 9.99999997E-7 : f32
    %284 = vector.broadcast %cst_92 : f32 to vector<16x1xf32>
    %285 = arith.addf %281, %284 : vector<16x1xf32>
    %286 = math.rsqrt %285 : vector<16x1xf32>
    %287 = vector.broadcast %286 : vector<16x1xf32> to vector<16x128xf32>
    %288 = arith.mulf %283, %287 : vector<16x128xf32>
    %289 = vector.shape_cast %266 : vector<128xf32> to vector<1x128xf32>
    %290 = vector.broadcast %289 : vector<1x128xf32> to vector<16x128xf32>
    %291 = arith.mulf %288, %290 : vector<16x128xf32>
    %292 = vector.shape_cast %268 : vector<128xf32> to vector<1x128xf32>
    %293 = vector.broadcast %292 : vector<1x128xf32> to vector<16x128xf32>
    %294 = arith.addf %291, %293 : vector<16x128xf32>
    %c2_93 = arith.constant 2 : index
    %c0_94 = arith.constant 0 : index
    %295 = vector.load %arg10[%c2_93, %c0_94] : memref<20x128xf32, #tpu.memory_space<vmem>>, vector<16x128xf32>
    tpu.vector_store %arg10[%c2_93, %c0_94], %294 {strides = array<i32>} : memref<20x128xf32, #tpu.memory_space<vmem>>, vector<16x128xf32>,
    %cst_95 = arith.constant 0.000000e+00 : f32
    %296 = vector.broadcast %cst_95 : f32 to vector<16x128xf32>
    %c0_96 = arith.constant 0 : index
    %c0_97 = arith.constant 0 : index
    %297 = vector.load %arg10[%c0_96, %c0_97] : memref<20x128xf32, #tpu.memory_space<vmem>>, vector<16x128xf32>
    %298 = vector.extract_strided_slice %6 {offsets = [3, 0, 0], sizes = [1, 1, 128], strides = [1, 1, 1]} : vector<4x5x128xf32> to vector<1x1x128xf32>
    %299 = vector.shape_cast %298 : vector<1x1x128xf32> to vector<128xf32>
    %300 = vector.shape_cast %299 : vector<128xf32> to vector<1x128xf32>
    %301 = vector.broadcast %300 : vector<1x128xf32> to vector<16x128xf32>
    %302 = arith.mulf %297, %301 : vector<16x128xf32>
    %303 = arith.addf %296, %302 : vector<16x128xf32>
    %c1_98 = arith.constant 1 : index
    %c0_99 = arith.constant 0 : index
    %304 = vector.load %arg10[%c1_98, %c0_99] : memref<20x128xf32, #tpu.memory_space<vmem>>, vector<16x128xf32>
    %305 = vector.extract_strided_slice %6 {offsets = [3, 1, 0], sizes = [1, 1, 128], strides = [1, 1, 1]} : vector<4x5x128xf32> to vector<1x1x128xf32>
    %306 = vector.shape_cast %305 : vector<1x1x128xf32> to vector<128xf32>
    %307 = vector.shape_cast %306 : vector<128xf32> to vector<1x128xf32>
    %308 = vector.broadcast %307 : vector<1x128xf32> to vector<16x128xf32>
    %309 = arith.mulf %304, %308 : vector<16x128xf32>
    %310 = arith.addf %303, %309 : vector<16x128xf32>
    %c2_100 = arith.constant 2 : index
    %c0_101 = arith.constant 0 : index
    %311 = vector.load %arg10[%c2_100, %c0_101] : memref<20x128xf32, #tpu.memory_space<vmem>>, vector<16x128xf32>
    %312 = vector.extract_strided_slice %6 {offsets = [3, 2, 0], sizes = [1, 1, 128], strides = [1, 1, 1]} : vector<4x5x128xf32> to vector<1x1x128xf32>
    %313 = vector.shape_cast %312 : vector<1x1x128xf32> to vector<128xf32>
    %314 = vector.shape_cast %313 : vector<128xf32> to vector<1x128xf32>
    %315 = vector.broadcast %314 : vector<1x128xf32> to vector<16x128xf32>
    %316 = arith.mulf %311, %315 : vector<16x128xf32>
    %317 = arith.addf %310, %316 : vector<16x128xf32>
    %c3_102 = arith.constant 3 : index
    %c0_103 = arith.constant 0 : index
    %318 = vector.load %arg10[%c3_102, %c0_103] : memref<20x128xf32, #tpu.memory_space<vmem>>, vector<16x128xf32>
    %319 = vector.extract_strided_slice %6 {offsets = [3, 3, 0], sizes = [1, 1, 128], strides = [1, 1, 1]} : vector<4x5x128xf32> to vector<1x1x128xf32>
    %320 = vector.shape_cast %319 : vector<1x1x128xf32> to vector<128xf32>
    %321 = vector.shape_cast %320 : vector<128xf32> to vector<1x128xf32>
    %322 = vector.broadcast %321 : vector<1x128xf32> to vector<16x128xf32>
    %323 = arith.mulf %318, %322 : vector<16x128xf32>
    %324 = arith.addf %317, %323 : vector<16x128xf32>
    %c4_104 = arith.constant 4 : index
    %c0_105 = arith.constant 0 : index
    %325 = vector.load %arg10[%c4_104, %c0_105] : memref<20x128xf32, #tpu.memory_space<vmem>>, vector<16x128xf32>
    %326 = vector.extract_strided_slice %6 {offsets = [3, 4, 0], sizes = [1, 1, 128], strides = [1, 1, 1]} : vector<4x5x128xf32> to vector<1x1x128xf32>
    %327 = vector.shape_cast %326 : vector<1x1x128xf32> to vector<128xf32>
    %328 = vector.shape_cast %327 : vector<128xf32> to vector<1x128xf32>
    %329 = vector.broadcast %328 : vector<1x128xf32> to vector<16x128xf32>
    %330 = arith.mulf %325, %329 : vector<16x128xf32>
    %331 = arith.addf %324, %330 : vector<16x128xf32>
    %332 = vector.extract_strided_slice %7 {offsets = [3, 0], sizes = [1, 128], strides = [1, 1]} : vector<4x128xf32> to vector<1x128xf32>
    %333 = vector.shape_cast %332 : vector<1x128xf32> to vector<128xf32>
    %334 = vector.shape_cast %333 : vector<128xf32> to vector<1x128xf32>
    %335 = vector.broadcast %334 : vector<1x128xf32> to vector<16x128xf32>
    %336 = arith.addf %331, %335 : vector<16x128xf32>
    %c3_106 = arith.constant 3 : index
    %c0_107 = arith.constant 0 : index
    %c0_108 = arith.constant 0 : index
    %337 = vector.load %arg7[%c3_106, %c0_107, %c0_108] : memref<4x128x128xbf16, #tpu.memory_space<vmem>>, vector<1x128x128xbf16>
    %338 = vector.shape_cast %337 : vector<1x128x128xbf16> to vector<128x128xbf16>
    %339 = arith.truncf %336 : vector<16x128xf32> to vector<16x128xbf16>
    %cst_109 = arith.constant dense<0.000000e+00> : vector<16x128xf32>
    %340 = tpu.matmul %339, %338, %cst_109 {dimension_numbers = #tpu.dot_dimension_numbers<[1], [0], [0], [1], [0, 0, 1, 1], [], []>} : vector<16x128xbf16>, vector<128x128xbf16>, vector<16x128xf32> -> vector<16x128xf32>
    %341 = vector.extract_strided_slice %8 {offsets = [3, 0], sizes = [1, 128], strides = [1, 1]} : vector<4x128xf32> to vector<1x128xf32>
    %342 = vector.shape_cast %341 : vector<1x128xf32> to vector<128xf32>
    %343 = vector.shape_cast %342 : vector<128xf32> to vector<1x128xf32>
    %344 = vector.broadcast %343 : vector<1x128xf32> to vector<16x128xf32>
    %345 = arith.addf %340, %344 : vector<16x128xf32>
    %cst_110 = arith.constant 0.000000e+00 : f32
    %346 = vector.broadcast %cst_110 : f32 to vector<16x128xf32>
    %347 = arith.maximumf %345, %346 : vector<16x128xf32>
    %348 = arith.addf %264, %347 : vector<16x128xf32>
    %c0_111 = arith.constant 0 : index
    %c0_112 = arith.constant 0 : index
    %c0_113 = arith.constant 0 : index
    %349 = vector.load %arg9[%c0_111, %c0_112, %c0_113] : memref<1x16x128xf32, #tpu.memory_space<vmem>>, vector<1x16x128xf32>
    %350 = vector.shape_cast %349 : vector<1x16x128xf32> to vector<16x128xf32>
    %351 = vector.shape_cast %348 : vector<16x128xf32> to vector<1x16x128xf32>
    tpu.vector_store %arg9[%c0_111, %c0_112, %c0_113], %351 {strides = array<i32>} : memref<1x16x128xf32, #tpu.memory_space<vmem>>, vector<1x16x128xf32>,
    return
  }
  func.func @transform_0(%arg0: i32) -> (i32, i32, i32) {
    %c0_i32 = arith.constant 0 : i32
    %c0_i32_0 = arith.constant 0 : i32
    %c0_i32_1 = arith.constant 0 : i32
    return %arg0, %c0_i32, %c0_i32_0 : i32, i32, i32
  }
  func.func @transform_1(%arg0: i32) -> (i32, i32) {
    %c0_i32 = arith.constant 0 : i32
    %c0_i32_0 = arith.constant 0 : i32
    %c0_i32_1 = arith.constant 0 : i32
    return %c0_i32, %c0_i32_0 : i32, i32
  }
  func.func @transform_2(%arg0: i32) -> (i32, i32) {
    %c0_i32 = arith.constant 0 : i32
    %c0_i32_0 = arith.constant 0 : i32
    %c0_i32_1 = arith.constant 0 : i32
    return %c0_i32, %c0_i32_0 : i32, i32
  }
  func.func @transform_3(%arg0: i32) -> (i32, i32) {
    %c0_i32 = arith.constant 0 : i32
    %c0_i32_0 = arith.constant 0 : i32
    %c0_i32_1 = arith.constant 0 : i32
    return %c0_i32, %c0_i32_0 : i32, i32
  }
  func.func @transform_4(%arg0: i32) -> (i32, i32, i32) {
    %c0_i32 = arith.constant 0 : i32
    %c0_i32_0 = arith.constant 0 : i32
    %c0_i32_1 = arith.constant 0 : i32
    %c0_i32_2 = arith.constant 0 : i32
    return %c0_i32, %c0_i32_0, %c0_i32_1 : i32, i32, i32
  }
  func.func @transform_5(%arg0: i32) -> (i32, i32) {
    %c0_i32 = arith.constant 0 : i32
    %c0_i32_0 = arith.constant 0 : i32
    %c0_i32_1 = arith.constant 0 : i32
    return %c0_i32, %c0_i32_0 : i32, i32
  }
  func.func @transform_6(%arg0: i32) -> (i32, i32, i32) {
    %c0_i32 = arith.constant 0 : i32
    %c0_i32_0 = arith.constant 0 : i32
    %c0_i32_1 = arith.constant 0 : i32
    %c0_i32_2 = arith.constant 0 : i32
    return %c0_i32, %c0_i32_0, %c0_i32_1 : i32, i32, i32
  }
  func.func @transform_7(%arg0: i32) -> (i32, i32) {
    %c0_i32 = arith.constant 0 : i32
    %c0_i32_0 = arith.constant 0 : i32
    %c0_i32_1 = arith.constant 0 : i32
    return %c0_i32, %c0_i32_0 : i32, i32
  }
  func.func @transform_8(%arg0: i32) -> (i32, i32, i32) {
    %c0_i32 = arith.constant 0 : i32
    %c0_i32_0 = arith.constant 0 : i32
    %c0_i32_1 = arith.constant 0 : i32
    return %arg0, %c0_i32, %c0_i32_0 : i32, i32, i32
  }
}

module attributes {stable_mosaic.version = 11 : i64} {
  func.func @_ffn_kernel(%arg0: i32, %arg1: i32, %arg2: memref<1x16x128xf32, #tpu.memory_space<vmem>>, %arg3: memref<1x128xf32, #tpu.memory_space<vmem>>, %arg4: memref<1x128xf32, #tpu.memory_space<vmem>>, %arg5: memref<128x512xbf16, #tpu.memory_space<vmem>>, %arg6: memref<1x512xf32, #tpu.memory_space<vmem>>, %arg7: memref<512x128xbf16, #tpu.memory_space<vmem>>, %arg8: memref<1x128xf32, #tpu.memory_space<vmem>>, %arg9: memref<1x16x128xf32, #tpu.memory_space<vmem>>) attributes {dimension_semantics = [#tpu.dimension_semantics<parallel>, #tpu.dimension_semantics<parallel>], iteration_bounds = array<i64: 2, 1>, scalar_prefetch = 0 : i64, scratch_operands = 0 : i64, tpu.core_type = #tpu.core_type<tc>, window_params = [{transform_indices = @transform_0, window_bounds = array<i64: 1, 16, 128>}, {pipeline_mode = #tpu.pipeline_mode<synchronous>, transform_indices = @transform_1, window_bounds = array<i64: 1, 128>}, {pipeline_mode = #tpu.pipeline_mode<synchronous>, transform_indices = @transform_2, window_bounds = array<i64: 1, 128>}, {pipeline_mode = #tpu.pipeline_mode<synchronous>, transform_indices = @transform_3, window_bounds = array<i64: 128, 512>}, {pipeline_mode = #tpu.pipeline_mode<synchronous>, transform_indices = @transform_4, window_bounds = array<i64: 1, 512>}, {pipeline_mode = #tpu.pipeline_mode<synchronous>, transform_indices = @transform_5, window_bounds = array<i64: 512, 128>}, {pipeline_mode = #tpu.pipeline_mode<synchronous>, transform_indices = @transform_6, window_bounds = array<i64: 1, 128>}, {transform_indices = @transform_7, window_bounds = array<i64: 1, 16, 128>}]} {
    %c0 = arith.constant 0 : index
    %c0_0 = arith.constant 0 : index
    %c0_1 = arith.constant 0 : index
    %0 = vector.load %arg2[%c0, %c0_0, %c0_1] : memref<1x16x128xf32, #tpu.memory_space<vmem>>, vector<1x16x128xf32>
    %1 = vector.shape_cast %0 : vector<1x16x128xf32> to vector<16x128xf32>
    %c0_2 = arith.constant 0 : index
    %c0_3 = arith.constant 0 : index
    %2 = vector.load %arg3[%c0_2, %c0_3] : memref<1x128xf32, #tpu.memory_space<vmem>>, vector<1x128xf32>
    %c0_4 = arith.constant 0 : index
    %c0_5 = arith.constant 0 : index
    %3 = vector.load %arg4[%c0_4, %c0_5] : memref<1x128xf32, #tpu.memory_space<vmem>>, vector<1x128xf32>
    %cst = arith.constant dense<0.000000e+00> : vector<16xf32>
    %4 = vector.multi_reduction <add>, %1, %cst [1] : vector<16x128xf32> to vector<16xf32>
    %5 = vector.shape_cast %4 : vector<16xf32> to vector<16x1xf32>
    %cst_6 = arith.constant 1.280000e+02 : f32
    %6 = vector.broadcast %cst_6 : f32 to vector<16x1xf32>
    %7 = arith.divf %5, %6 : vector<16x1xf32>
    %8 = arith.mulf %1, %1 : vector<16x128xf32>
    %cst_7 = arith.constant dense<0.000000e+00> : vector<16xf32>
    %9 = vector.multi_reduction <add>, %8, %cst_7 [1] : vector<16x128xf32> to vector<16xf32>
    %10 = vector.shape_cast %9 : vector<16xf32> to vector<16x1xf32>
    %cst_8 = arith.constant 1.280000e+02 : f32
    %11 = vector.broadcast %cst_8 : f32 to vector<16x1xf32>
    %12 = arith.divf %10, %11 : vector<16x1xf32>
    %13 = arith.mulf %7, %7 : vector<16x1xf32>
    %14 = arith.subf %12, %13 : vector<16x1xf32>
    %cst_9 = arith.constant 0.000000e+00 : f32
    %15 = vector.broadcast %cst_9 : f32 to vector<16x1xf32>
    %16 = arith.maximumf %14, %15 : vector<16x1xf32>
    %17 = vector.broadcast %7 : vector<16x1xf32> to vector<16x128xf32>
    %18 = arith.subf %1, %17 : vector<16x128xf32>
    %cst_10 = arith.constant 9.99999997E-7 : f32
    %19 = vector.broadcast %cst_10 : f32 to vector<16x1xf32>
    %20 = arith.addf %16, %19 : vector<16x1xf32>
    %21 = math.rsqrt %20 : vector<16x1xf32>
    %22 = vector.broadcast %21 : vector<16x1xf32> to vector<16x128xf32>
    %23 = arith.mulf %18, %22 : vector<16x128xf32>
    %24 = vector.broadcast %2 : vector<1x128xf32> to vector<16x128xf32>
    %25 = arith.mulf %23, %24 : vector<16x128xf32>
    %26 = vector.broadcast %3 : vector<1x128xf32> to vector<16x128xf32>
    %27 = arith.addf %25, %26 : vector<16x128xf32>
    %c0_11 = arith.constant 0 : index
    %c0_12 = arith.constant 0 : index
    %28 = vector.load %arg5[%c0_11, %c0_12] : memref<128x512xbf16, #tpu.memory_space<vmem>>, vector<128x512xbf16>
    %29 = arith.truncf %27 : vector<16x128xf32> to vector<16x128xbf16>
    %cst_13 = arith.constant dense<0.000000e+00> : vector<16x512xf32>
    %30 = tpu.matmul %29, %28, %cst_13 {dimension_numbers = #tpu.dot_dimension_numbers<[1], [0], [0], [1], [0, 0, 1, 1], [], []>} : vector<16x128xbf16>, vector<128x512xbf16>, vector<16x512xf32> -> vector<16x512xf32>
    %c0_14 = arith.constant 0 : index
    %c0_15 = arith.constant 0 : index
    %31 = vector.load %arg6[%c0_14, %c0_15] : memref<1x512xf32, #tpu.memory_space<vmem>>, vector<1x512xf32>
    %32 = vector.broadcast %31 : vector<1x512xf32> to vector<16x512xf32>
    %33 = arith.addf %30, %32 : vector<16x512xf32>
    %cst_16 = arith.constant 0.000000e+00 : f32
    %34 = vector.broadcast %cst_16 : f32 to vector<16x512xf32>
    %35 = arith.maximumf %33, %34 : vector<16x512xf32>
    %c0_17 = arith.constant 0 : index
    %c0_18 = arith.constant 0 : index
    %36 = vector.load %arg7[%c0_17, %c0_18] : memref<512x128xbf16, #tpu.memory_space<vmem>>, vector<512x128xbf16>
    %37 = arith.truncf %35 : vector<16x512xf32> to vector<16x512xbf16>
    %cst_19 = arith.constant dense<0.000000e+00> : vector<16x128xf32>
    %38 = tpu.matmul %37, %36, %cst_19 {dimension_numbers = #tpu.dot_dimension_numbers<[1], [0], [0], [1], [0, 0, 1, 1], [], []>} : vector<16x512xbf16>, vector<512x128xbf16>, vector<16x128xf32> -> vector<16x128xf32>
    %c0_20 = arith.constant 0 : index
    %c0_21 = arith.constant 0 : index
    %39 = vector.load %arg8[%c0_20, %c0_21] : memref<1x128xf32, #tpu.memory_space<vmem>>, vector<1x128xf32>
    %40 = vector.broadcast %39 : vector<1x128xf32> to vector<16x128xf32>
    %41 = arith.addf %38, %40 : vector<16x128xf32>
    %42 = arith.addf %1, %41 : vector<16x128xf32>
    %c0_22 = arith.constant 0 : index
    %c0_23 = arith.constant 0 : index
    %c0_24 = arith.constant 0 : index
    %43 = vector.load %arg9[%c0_22, %c0_23, %c0_24] : memref<1x16x128xf32, #tpu.memory_space<vmem>>, vector<1x16x128xf32>
    %44 = vector.shape_cast %43 : vector<1x16x128xf32> to vector<16x128xf32>
    %45 = vector.shape_cast %42 : vector<16x128xf32> to vector<1x16x128xf32>
    tpu.vector_store %arg9[%c0_22, %c0_23, %c0_24], %45 {strides = array<i32>} : memref<1x16x128xf32, #tpu.memory_space<vmem>>, vector<1x16x128xf32>,
    return
  }
  func.func @transform_0(%arg0: i32, %arg1: i32) -> (i32, i32, i32) {
    %c0_i32 = arith.constant 0 : i32
    %c0_i32_0 = arith.constant 0 : i32
    return %arg0, %arg1, %c0_i32 : i32, i32, i32
  }
  func.func @transform_1(%arg0: i32, %arg1: i32) -> (i32, i32) {
    %c0_i32 = arith.constant 0 : i32
    %c0_i32_0 = arith.constant 0 : i32
    %c0_i32_1 = arith.constant 0 : i32
    return %c0_i32, %c0_i32_0 : i32, i32
  }
  func.func @transform_2(%arg0: i32, %arg1: i32) -> (i32, i32) {
    %c0_i32 = arith.constant 0 : i32
    %c0_i32_0 = arith.constant 0 : i32
    %c0_i32_1 = arith.constant 0 : i32
    return %c0_i32, %c0_i32_0 : i32, i32
  }
  func.func @transform_3(%arg0: i32, %arg1: i32) -> (i32, i32) {
    %c0_i32 = arith.constant 0 : i32
    %c0_i32_0 = arith.constant 0 : i32
    %c0_i32_1 = arith.constant 0 : i32
    return %c0_i32, %c0_i32_0 : i32, i32
  }
  func.func @transform_4(%arg0: i32, %arg1: i32) -> (i32, i32) {
    %c0_i32 = arith.constant 0 : i32
    %c0_i32_0 = arith.constant 0 : i32
    %c0_i32_1 = arith.constant 0 : i32
    return %c0_i32, %c0_i32_0 : i32, i32
  }
  func.func @transform_5(%arg0: i32, %arg1: i32) -> (i32, i32) {
    %c0_i32 = arith.constant 0 : i32
    %c0_i32_0 = arith.constant 0 : i32
    %c0_i32_1 = arith.constant 0 : i32
    return %c0_i32, %c0_i32_0 : i32, i32
  }
  func.func @transform_6(%arg0: i32, %arg1: i32) -> (i32, i32) {
    %c0_i32 = arith.constant 0 : i32
    %c0_i32_0 = arith.constant 0 : i32
    %c0_i32_1 = arith.constant 0 : i32
    return %c0_i32, %c0_i32_0 : i32, i32
  }
  func.func @transform_7(%arg0: i32, %arg1: i32) -> (i32, i32, i32) {
    %c0_i32 = arith.constant 0 : i32
    %c0_i32_0 = arith.constant 0 : i32
    return %arg0, %arg1, %c0_i32 : i32, i32, i32
  }
}

</mosaic_0001>

<llo_original>
// kernel: encoder_block_forward.5
$region0: #{encoder_block_forward.5}
  #allocation0 [shape = 'u32[]', space=smem, size = 0x4, offset = 0x4, fixed_abs, tag = 'smem constant byte address 0x4 - core index']
  #allocation1 [shape = 'u32[144,128]{1,0:T(1,128)}', space=vmem, size = 0x12000, scoped, tag = 'internal scratch']
  %s0 = inlined_call_operand.hbm [shape: f32[2,16,128], index: 0, kind: input, shape index: {}, may-alias: {0,7}]
  %s1 = inlined_call_operand.vmem [shape: f32[1,128], index: 1, kind: input, shape index: {}]
  %s2 = inlined_call_operand.vmem [shape: f32[1,128], index: 2, kind: input, shape index: {}]
  %s3 = inlined_call_operand.vmem [shape: bf16[128,512], index: 3, kind: input, shape index: {}]
  %s4 = inlined_call_operand.vmem [shape: f32[1,512], index: 4, kind: input, shape index: {}]
  %s5 = inlined_call_operand.vmem [shape: bf16[512,128], index: 5, kind: input, shape index: {}]
  %s6 = inlined_call_operand.vmem [shape: f32[1,128], index: 6, kind: input, shape index: {}]
  %s7 = inlined_call_operand.hbm [shape: f32[2,16,128], index: 7, kind: output, shape index: {}, may-alias: {0,7}]
  %s8 = sld [smem:[#allocation0]]
  $region65: #{encoder_block_forward.5} parent=0
    _
  %s10 = ssub.s32 1, %s8
  %s11 = scalar_select 0, %s10, %s8
  $region1: #{encoder_block_forward.5} parent=0
    #allocation2 [shape = 'u8[16384]{0}', space=vmem, size = 0x4000, scoped, tag = 'input window, operand 0']
    #allocation3 [shape = 's32[2]{0}', space=sflag, size = 0x8, scoped, tag = 'scoped memory for encoder_block_forward.5']
    #allocation4 [shape = 's32[2]{0}', space=sflag, size = 0x8, scoped, tag = 'scoped memory for encoder_block_forward.5']
    #allocation5 [shape = 'u8[16384]{0}', space=vmem, size = 0x4000, scoped, tag = 'output window, operand 0']
    %12 = vsyncpa [#allocation3], 0
    %s13 = scalar_lea.sflag [#allocation3], 1
    %14 = vsyncpa %s13, 0
    %15 = vsyncpa [#allocation4], 0
    %s16 = scalar_lea.sflag [#allocation4], 1
    %17 = vsyncpa %s16, 0
    loop: start=0, step=1, limit=4
    $region2: #{encoder_block_forward.5} parent=1 // loop_pre_header
      _
    $region3: #{encoder_block_forward.5} parent=1 // loop_header
      %s19 = sphi 0, %s23
      %p20 = scmp.ge.s32.totalorder %s19, 4
      %s26 = sphi 0, %s38
      %s27 = sphi 0, %s34
      %s28 = sphi 0, %s26
      %s29 = sphi 0, %s27
      %s30 = sphi 0, %s28
      %s31 = sphi 0, %s29
      %s43 = sphi 0, %s45
      %s46 = sphi 0, %s43
      %s47 = sphi 0, %s46
      %s63 = sphi 0, %s47
      %s67 = sphi 0, %s67
      %s69 = sphi 0, %s67
      %s70 = sphi 0, %s69
      %s84 = sphi 0, %s70
      %s88 = sphi 0, %s88
      %s90 = sphi 0, %s88
      %s91 = sphi 0, %s90
      %s105 = sphi 0, %s91
      %s109 = sphi 0, %s109
      %s111 = sphi 0, %s109
      %s112 = sphi 0, %s111
      %s126 = sphi 0, %s112
      %s130 = sphi 0, %s130
      %s132 = sphi 0, %s130
      %s133 = sphi 0, %s132
      %s147 = sphi 0, %s133
      %s151 = sphi 0, %s151
      %s153 = sphi 0, %s151
      %s154 = sphi 0, %s153
      %s168 = sphi 0, %s154
      %s172 = sphi 0, %s172
      %s174 = sphi 0, %s172
      %s175 = sphi 0, %s174
      %s189 = sphi 0, %s175
      %s197 = sphi 0, %s199
      %s200 = sphi 0, %s197
      %s201 = sphi 0, %s200
      %s217 = sphi 0, %s201
    $region4: #{encoder_block_forward.5} parent=1 // loop_header_branch
      %22 = sbr.rel (%p20) target = $region8
    $region5: #{encoder_block_forward.5} parent=1 // loop_body
      %s24 = ssub.s32 %s19, 1
      %s25 = ssub.s32 %s19, 2
      %s32 = sadd.s32 1, %s27
      %p33 = scmp.ge.s32.totalorder %s32, 1
      %s34 = scalar_select %p33, 0, %s32
      %s35 = sadd.s32 1, %s26
      %s36 = scalar_select %p33, %s35, %s26
      %p37 = scmp.ge.s32.totalorder %s36, 2
      %s38 = scalar_select %p37, 0, %s36
      %s39 = ssub.s32 %s26, %s38
      %s40 = ssub.s32 %s27, %s34
      %s41 = sor.u32 %s39, %s40
      %p42 = scmp.eq.s32.totalorder %s41, 0
      %s44 = sadd.s32 %s43, 1
      %s45 = scalar_select %p42, %s43, %s44
      %p48 = pneg %p42
      %p49 = scmp.eq.s32.totalorder %s19, 1
      %p50 = por %p48, %p49
      %p51 = scmp.ne.s32.totalorder %s43, %s46
      %p52 = scmp.eq.s32.totalorder %s19, 0
      %p53 = por %p51, %p52
      %p54 = scmp.ne.s32.totalorder %s43, %s46
      %p55 = scmp.eq.s32.totalorder %s24, 1
      %p56 = por %p54, %p55
      %p57 = scmp.ne.s32.totalorder %s46, %s47
      %p58 = scmp.eq.s32.totalorder %s24, 0
      %p59 = por %p57, %p58
      %p60 = scmp.ne.s32.totalorder %s46, %s47
      %p61 = scmp.eq.s32.totalorder %s25, 1
      %p62 = por %p60, %p61
      %p64 = scmp.ne.s32.totalorder %s47, %s63
      %p65 = scmp.eq.s32.totalorder %s25, 0
      %p66 = por %p64, %p65
      %s68 = sadd.s32 %s67, 1
      %p71 = scmp.eq.s32.totalorder %s19, 1
      %p72 = scmp.ne.s32.totalorder %s67, %s69
      %p73 = scmp.eq.s32.totalorder %s19, 0
      %p74 = por %p72, %p73
      %p75 = scmp.ne.s32.totalorder %s67, %s69
      %p76 = scmp.eq.s32.totalorder %s24, 1
      %p77 = por %p75, %p76
      %p78 = scmp.ne.s32.totalorder %s69, %s70
      %p79 = scmp.eq.s32.totalorder %s24, 0
      %p80 = por %p78, %p79
      %p81 = scmp.ne.s32.totalorder %s69, %s70
      %p82 = scmp.eq.s32.totalorder %s25, 1
      %p83 = por %p81, %p82
      %p85 = scmp.ne.s32.totalorder %s70, %s84
      %p86 = scmp.eq.s32.totalorder %s25, 0
      %p87 = por %p85, %p86
      %s89 = sadd.s32 %s88, 1
      %p92 = scmp.eq.s32.totalorder %s19, 1
      %p93 = scmp.ne.s32.totalorder %s88, %s90
      %p94 = scmp.eq.s32.totalorder %s19, 0
      %p95 = por %p93, %p94
      %p96 = scmp.ne.s32.totalorder %s88, %s90
      %p97 = scmp.eq.s32.totalorder %s24, 1
      %p98 = por %p96, %p97
      %p99 = scmp.ne.s32.totalorder %s90, %s91
      %p100 = scmp.eq.s32.totalorder %s24, 0
      %p101 = por %p99, %p100
      %p102 = scmp.ne.s32.totalorder %s90, %s91
      %p103 = scmp.eq.s32.totalorder %s25, 1
      %p104 = por %p102, %p103
      %p106 = scmp.ne.s32.totalorder %s91, %s105
      %p107 = scmp.eq.s32.totalorder %s25, 0
      %p108 = por %p106, %p107
      %s110 = sadd.s32 %s109, 1
      %p113 = scmp.eq.s32.totalorder %s19, 1
      %p114 = scmp.ne.s32.totalorder %s109, %s111
      %p115 = scmp.eq.s32.totalorder %s19, 0
      %p116 = por %p114, %p115
      %p117 = scmp.ne.s32.totalorder %s109, %s111
      %p118 = scmp.eq.s32.totalorder %s24, 1
      %p119 = por %p117, %p118
      %p120 = scmp.ne.s32.totalorder %s111, %s112
      %p121 = scmp.eq.s32.totalorder %s24, 0
      %p122 = por %p120, %p121
      %p123 = scmp.ne.s32.totalorder %s111, %s112
      %p124 = scmp.eq.s32.totalorder %s25, 1
      %p125 = por %p123, %p124
      %p127 = scmp.ne.s32.totalorder %s112, %s126
      %p128 = scmp.eq.s32.totalorder %s25, 0
      %p129 = por %p127, %p128
      %s131 = sadd.s32 %s130, 1
      %p134 = scmp.eq.s32.totalorder %s19, 1
      %p135 = scmp.ne.s32.totalorder %s130, %s132
      %p136 = scmp.eq.s32.totalorder %s19, 0
      %p137 = por %p135, %p136
      %p138 = scmp.ne.s32.totalorder %s130, %s132
      %p139 = scmp.eq.s32.totalorder %s24, 1
      %p140 = por %p138, %p139
      %p141 = scmp.ne.s32.totalorder %s132, %s133
      %p142 = scmp.eq.s32.totalorder %s24, 0
      %p143 = por %p141, %p142
      %p144 = scmp.ne.s32.totalorder %s132, %s133
      %p145 = scmp.eq.s32.totalorder %s25, 1
      %p146 = por %p144, %p145
      %p148 = scmp.ne.s32.totalorder %s133, %s147
      %p149 = scmp.eq.s32.totalorder %s25, 0
      %p150 = por %p148, %p149
      %s152 = sadd.s32 %s151, 1
      %p155 = scmp.eq.s32.totalorder %s19, 1
      %p156 = scmp.ne.s32.totalorder %s151, %s153
      %p157 = scmp.eq.s32.totalorder %s19, 0
      %p158 = por %p156, %p157
      %p159 = scmp.ne.s32.totalorder %s151, %s153
      %p160 = scmp.eq.s32.totalorder %s24, 1
      %p161 = por %p159, %p160
      %p162 = scmp.ne.s32.totalorder %s153, %s154
      %p163 = scmp.eq.s32.totalorder %s24, 0
      %p164 = por %p162, %p163
      %p165 = scmp.ne.s32.totalorder %s153, %s154
      %p166 = scmp.eq.s32.totalorder %s25, 1
      %p167 = por %p165, %p166
      %p169 = scmp.ne.s32.totalorder %s154, %s168
      %p170 = scmp.eq.s32.totalorder %s25, 0
      %p171 = por %p169, %p170
      %s173 = sadd.s32 %s172, 1
      %p176 = scmp.eq.s32.totalorder %s19, 1
      %p177 = scmp.ne.s32.totalorder %s172, %s174
      %p178 = scmp.eq.s32.totalorder %s19, 0
      %p179 = por %p177, %p178
      %p180 = scmp.ne.s32.totalorder %s172, %s174
      %p181 = scmp.eq.s32.totalorder %s24, 1
      %p182 = por %p180, %p181
      %p183 = scmp.ne.s32.totalorder %s174, %s175
      %p184 = scmp.eq.s32.totalorder %s24, 0
      %p185 = por %p183, %p184
      %p186 = scmp.ne.s32.totalorder %s174, %s175
      %p187 = scmp.eq.s32.totalorder %s25, 1
      %p188 = por %p186, %p187
      %p190 = scmp.ne.s32.totalorder %s175, %s189
      %p191 = scmp.eq.s32.totalorder %s25, 0
      %p192 = por %p190, %p191
      %s193 = ssub.s32 %s26, %s38
      %s194 = ssub.s32 %s27, %s34
      %s195 = sor.u32 %s193, %s194
      %p196 = scmp.eq.s32.totalorder %s195, 0
      %s198 = sadd.s32 %s197, 1
      %s199 = scalar_select %p196, %s197, %s198
      %p202 = pneg %p196
      %p203 = scmp.eq.s32.totalorder %s19, 1
      %p204 = por %p202, %p203
      %p205 = scmp.ne.s32.totalorder %s197, %s200
      %p206 = scmp.eq.s32.totalorder %s19, 0
      %p207 = por %p205, %p206
      %p208 = scmp.ne.s32.totalorder %s197, %s200
      %p209 = scmp.eq.s32.totalorder %s24, 1
      %p210 = por %p208, %p209
      %p211 = scmp.ne.s32.totalorder %s200, %s201
      %p212 = scmp.eq.s32.totalorder %s24, 0
      %p213 = por %p211, %p212
      %p214 = scmp.ne.s32.totalorder %s200, %s201
      %p215 = scmp.eq.s32.totalorder %s25, 1
      %p216 = por %p214, %p215
      %p218 = scmp.ne.s32.totalorder %s201, %s217
      %p219 = scmp.eq.s32.totalorder %s25, 0
      %p220 = por %p218, %p219
      %p221 = scmp.le.s32.totalorder 1, %s19
      %p222 = scmp.lt.s32.totalorder %s19, 3
      %p223 = pnand %p221, %p222
      %p224 = pneg %p223
      // Predicated region
      $region9: #{encoder_block_forward.5} parent=5 // pred_check
        _
      $region10: #{encoder_block_forward.5} parent=5 // pred_check_branch
        %226 = sbr.rel (%p223) target = $region12
      $region11: #{encoder_block_forward.5} parent=5 // pred_region
        %s227 = ssub.s32 %s19, 1
        // Predicated region
        $region13: #{encoder_block_forward.5} parent=11 // pred_check
          %p228 = pneg %p80
        $region14: #{encoder_block_forward.5} parent=11 // pred_check_branch
          %230 = sbr.rel (%p228) target = $region16
        $region15: #{encoder_block_forward.5} parent=11 // pred_region
          _
        $region16: #{encoder_block_forward.5} parent=11 // pred_fallthru
          _
        // Predicated region
        $region17: #{encoder_block_forward.5} parent=11 // pred_check
          %p231 = pneg %p101
        $region18: #{encoder_block_forward.5} parent=11 // pred_check_branch
          %233 = sbr.rel (%p231) target = $region20
        $region19: #{encoder_block_forward.5} parent=11 // pred_region
          _
        $region20: #{encoder_block_forward.5} parent=11 // pred_fallthru
          _
        // Predicated region
        $region21: #{encoder_block_forward.5} parent=11 // pred_check
          %p234 = pneg %p122
        $region22: #{encoder_block_forward.5} parent=11 // pred_check_branch
          %236 = sbr.rel (%p234) target = $region24
        $region23: #{encoder_block_forward.5} parent=11 // pred_region
          _
        $region24: #{encoder_block_forward.5} parent=11 // pred_fallthru
          _
        // Predicated region
        $region25: #{encoder_block_forward.5} parent=11 // pred_check
          %p237 = pneg %p143
        $region26: #{encoder_block_forward.5} parent=11 // pred_check_branch
          %239 = sbr.rel (%p237) target = $region28
        $region27: #{encoder_block_forward.5} parent=11 // pred_region
          _
        $region28: #{encoder_block_forward.5} parent=11 // pred_fallthru
          _
        // Predicated region
        $region29: #{encoder_block_forward.5} parent=11 // pred_check
          %p240 = pneg %p164
        $region30: #{encoder_block_forward.5} parent=11 // pred_check_branch
          %242 = sbr.rel (%p240) target = $region32
        $region31: #{encoder_block_forward.5} parent=11 // pred_region
          _
        $region32: #{encoder_block_forward.5} parent=11 // pred_fallthru
          _
        // Predicated region
        $region33: #{encoder_block_forward.5} parent=11 // pred_check
          %p243 = pneg %p185
        $region34: #{encoder_block_forward.5} parent=11 // pred_check_branch
          %245 = sbr.rel (%p243) target = $region36
        $region35: #{encoder_block_forward.5} parent=11 // pred_region
          _
        $region36: #{encoder_block_forward.5} parent=11 // pred_fallthru
          _
      $region12: #{encoder_block_forward.5} parent=5 // pred_fallthru
        _
      %p246 = scmp.lt.s32.totalorder %s19, 2
      // Predicated region
      $region37: #{encoder_block_forward.5} parent=5 // pred_check
        %p247 = pneg %p246
      $region38: #{encoder_block_forward.5} parent=5 // pred_check_branch
        %249 = sbr.rel (%p247) target = $region40
      $region39: #{encoder_block_forward.5} parent=5 // pred_region
        // Predicated region
        $region41: #{encoder_block_forward.5} parent=39 // pred_check
          %p250 = pneg %p53
        $region42: #{encoder_block_forward.5} parent=39 // pred_check_branch
          %252 = sbr.rel (%p250) target = $region44
        $region43: #{encoder_block_forward.5} parent=39 // pred_region
          %s253 = sand.u32 %s43, 1
          %s254 = scalar_lea.sflag [#allocation3], %s253
          %s255 = sand.u32 %s43, 1
          %s256 = smul.addr %s255, 16
          %s257 = scalar_lea.vmem [#allocation2], %s256
          %s258 = smul.u32 2, %s27
          %s260 = ssub.s32 256, 256
          %261 = vsyncadd %s254, %s260
          %s262 = smul.addr %s26, 2
          %s263 = sadd.s32 %s258, %s262
          %s264 = smul.addr %s263, 128
          %s265 = scalar_lea.hbm %s0, %s264
          %s266 = sshll.u32 %s257, 4
          %s267 = int_to_ptr.vmem [resolvable:$true] %s266
          %272 = dma.hbm_to_vmem [thread:$0]  %s265, 256, %s267, %s254, 128, 128, 8
        $region44: #{encoder_block_forward.5} parent=39 // pred_fallthru
          _
      $region40: #{encoder_block_forward.5} parent=5 // pred_fallthru
        _
      %p273 = scmp.le.s32.totalorder 1, %s19
      %p274 = scmp.lt.s32.totalorder %s19, 3
      %p275 = pnand %p273, %p274
      %p276 = pneg %p275
      // Predicated region
      $region45: #{encoder_block_forward.5} parent=5 // pred_check
        _
      $region46: #{encoder_block_forward.5} parent=5 // pred_check_branch
        %278 = sbr.rel (%p275) target = $region48
      $region47: #{encoder_block_forward.5} parent=5 // pred_region
        %s279 = ssub.s32 %s19, 1
        %s280 = sand.u32 %s46, 1
        %s281 = scalar_lea.sflag [#allocation3], %s280
        %s282 = sand.u32 %s46, 1
        %s283 = smul.addr %s282, 16
        %s284 = scalar_lea.vmem [#allocation2], %s283
        // Predicated region
        $region49: #{encoder_block_forward.5} parent=47 // pred_check
          %p285 = pneg %p59
        $region50: #{encoder_block_forward.5} parent=47 // pred_check_branch
          %287 = sbr.rel (%p285) target = $region52
        $region51: #{encoder_block_forward.5} parent=47 // pred_region
          %288 = dma.done %s281, 256
        $region52: #{encoder_block_forward.5} parent=47 // pred_fallthru
          _
        %s289 = sand.u32 %s46, 1
        %s290 = scalar_lea.sflag [#allocation3], %s289
        %s291 = sand.u32 %s46, 1
        %s292 = smul.addr %s291, 16
        %s293 = scalar_lea.vmem [#allocation2], %s292
        %p294 = pneg %p59
        %p295 = pneg %p56
        %p296 = pneg %p80
        %p297 = pneg %p77
        %p298 = pneg %p101
        %p299 = pneg %p98
        %p300 = pneg %p122
        %p301 = pneg %p119
        %p302 = pneg %p143
        %p303 = pneg %p140
        %p304 = pneg %p164
        %p305 = pneg %p161
        %p306 = pneg %p185
        %p307 = pneg %p182
        %p308 = pneg %p213
        %p309 = pneg %p210
        %s310 = sand.u32 %s200, 1
        %s311 = scalar_lea.sflag [#allocation4], %s310
        %s312 = sand.u32 %s200, 1
        %s313 = smul.addr %s312, 16
        %s314 = scalar_lea.vmem [#allocation5], %s313
        %s315 = smul.u32 2, %s29
        %s316 = smul.u32 2, %s29
        %v318 = vld [vmem:[%s284] sm:$0xff]
        %v319 = vld [vmem:[%s284 + $0x8] sm:$0xff]
        %v320 = vld [vmem:[%s1] sm:$0x1]
        %v321 = vld [vmem:[%s2] sm:$0x1]
        %322 = vadd.xlane.f32.xlu0 %v318
        %v323 = vpop.xlane.xlu0 %322
        %324 = vadd.xlane.f32.xlu0 %v319
        %v325 = vpop.xlane.xlu0 %324
        %v326 = vrcp.pop 128.0
        %v327 = vmul.f32 %v323, %v326
        %v328 = vmul.f32 %v325, %v326
        %v329 = vmul.f32 %v318, %v318
        %v330 = vmul.f32 %v319, %v319
        %331 = vadd.xlane.f32.xlu0 %v329
        %v332 = vpop.xlane.xlu0 %331
        %333 = vadd.xlane.f32.xlu0 %v330
        %v334 = vpop.xlane.xlu0 %333
        %v335 = vmul.f32 %v332, %v326
        %v336 = vmul.f32 %v334, %v326
        %v337 = vmul.f32 %v327, %v327
        %v338 = vmul.f32 %v328, %v328
        %v339 = vsub.f32 %v335, %v337
        %v340 = vsub.f32 %v336, %v338
        %v341 = vmax.f32 %v339, 0.0
        %v342 = vmax.f32 %v340, 0.0
        %v343 = vsub.f32 %v318, %v327
        %v344 = vsub.f32 %v319, %v328
        %v345 = vadd.f32 %v341, 1e-06
        %v346 = vadd.f32 %v342, 1e-06
        %v347 = vrsqrt.pop %v345
        %v348 = vrsqrt.pop %v346
        %v349 = vmul.f32 %v343, %v347
        %v350 = vmul.f32 %v344, %v348
        %v352 = vlaneseq
        %v353 = vshrl.u32 %v352, 7
        %v354 = vsub.s32 0, %v353
        %v355 = vrot.slane %v320, %v354
        %v357 = vmul.f32 %v349, %v355
        %v358 = vmul.f32 %v350, %v355
        %v360 = vlaneseq
        %v361 = vshrl.u32 %v360, 7
        %v362 = vsub.s32 0, %v361
        %v363 = vrot.slane %v321, %v362
        %v365 = vadd.f32 %v357, %v363
        %v366 = vadd.f32 %v358, %v363
        %v367 = vld [vmem:[%s3] sm:$0xff]
        %v368 = vld [vmem:[%s3 + $0x8] sm:$0xff]
        %v369 = vld [vmem:[%s3 + $0x10] sm:$0xff]
        %v370 = vld [vmem:[%s3 + $0x18] sm:$0xff]
        %v371 = vld [vmem:[%s3 + $0x20] sm:$0xff]
        %v372 = vld [vmem:[%s3 + $0x28] sm:$0xff]
        %v373 = vld [vmem:[%s3 + $0x30] sm:$0xff]
        %v374 = vld [vmem:[%s3 + $0x38] sm:$0xff]
        %v375 = vld [vmem:[%s3 + $0x40] sm:$0xff]
        %v376 = vld [vmem:[%s3 + $0x48] sm:$0xff]
        %v377 = vld [vmem:[%s3 + $0x50] sm:$0xff]
        %v378 = vld [vmem:[%s3 + $0x58] sm:$0xff]
        %v379 = vld [vmem:[%s3 + $0x60] sm:$0xff]
        %v380 = vld [vmem:[%s3 + $0x68] sm:$0xff]
        %v381 = vld [vmem:[%s3 + $0x70] sm:$0xff]
        %v382 = vld [vmem:[%s3 + $0x78] sm:$0xff]
        %v383 = vld [vmem:[%s3 + $0x80] sm:$0xff]
        %v384 = vld [vmem:[%s3 + $0x88] sm:$0xff]
        %v385 = vld [vmem:[%s3 + $0x90] sm:$0xff]
        %v386 = vld [vmem:[%s3 + $0x98] sm:$0xff]
        %v387 = vld [vmem:[%s3 + $0xa0] sm:$0xff]
        %v388 = vld [vmem:[%s3 + $0xa8] sm:$0xff]
        %v389 = vld [vmem:[%s3 + $0xb0] sm:$0xff]
        %v390 = vld [vmem:[%s3 + $0xb8] sm:$0xff]
        %v391 = vld [vmem:[%s3 + $0xc0] sm:$0xff]
        %v392 = vld [vmem:[%s3 + $0xc8] sm:$0xff]
        %v393 = vld [vmem:[%s3 + $0xd0] sm:$0xff]
        %v394 = vld [vmem:[%s3 + $0xd8] sm:$0xff]
        %v395 = vld [vmem:[%s3 + $0xe0] sm:$0xff]
        %v396 = vld [vmem:[%s3 + $0xe8] sm:$0xff]
        %v397 = vld [vmem:[%s3 + $0xf0] sm:$0xff]
        %v398 = vld [vmem:[%s3 + $0xf8] sm:$0xff]
        %v399 = vpack.c.bf16 %v366, %v365
        %v400 = vld [vmem:[%s4] sm:$0xf]
        %v402 = vlaneseq
        %v403 = vshrl.u32 %v402, 7
        %v404 = vsub.s32 0, %v403
        %v405 = vrot.slane %v400, %v404
        %v406 = vlaneseq
        %v407 = vshrl.u32 %v406, 7
        %v408 = vsub.s32 1, %v407
        %v409 = vrot.slane %v400, %v408
        %v410 = vlaneseq
        %v411 = vshrl.u32 %v410, 7
        %v412 = vsub.s32 2, %v411
        %v413 = vrot.slane %v400, %v412
        %v414 = vlaneseq
        %v415 = vshrl.u32 %v414, 7
        %v416 = vsub.s32 3, %v415
        %v417 = vrot.slane %v400, %v416
        %v454 = vunpack.c.l.b16 %v367
        %v455 = vunpack.c.h.b16 %v367
        %v456 = vunpack.c.l.b16 %v368
        %v457 = vunpack.c.h.b16 %v368
        %v458 = vunpack.c.l.b16 %v369
        %v459 = vunpack.c.h.b16 %v369
        %v460 = vunpack.c.l.b16 %v370
        %v461 = vunpack.c.h.b16 %v370
        %v462 = vunpack.c.l.b16 %v371
        %v463 = vunpack.c.h.b16 %v371
        %v464 = vunpack.c.l.b16 %v372
        %v465 = vunpack.c.h.b16 %v372
        %v466 = vunpack.c.l.b16 %v373
        %v467 = vunpack.c.h.b16 %v373
        %v468 = vunpack.c.l.b16 %v374
        %v469 = vunpack.c.h.b16 %v374
        %v470 = vunpack.c.l.b16 %v375
        %v471 = vunpack.c.h.b16 %v375
        %v472 = vunpack.c.l.b16 %v376
        %v473 = vunpack.c.h.b16 %v376
        %v474 = vunpack.c.l.b16 %v377
        %v475 = vunpack.c.h.b16 %v377
        %v476 = vunpack.c.l.b16 %v378
        %v477 = vunpack.c.h.b16 %v378
        %v478 = vunpack.c.l.b16 %v379
        %v479 = vunpack.c.h.b16 %v379
        %v480 = vunpack.c.l.b16 %v380
        %v481 = vunpack.c.h.b16 %v380
        %v482 = vunpack.c.l.b16 %v381
        %v483 = vunpack.c.h.b16 %v381
        %v484 = vunpack.c.l.b16 %v382
        %v485 = vunpack.c.h.b16 %v382
        %v486 = vunpack.c.l.b16 %v383
        %v487 = vunpack.c.h.b16 %v383
        %v488 = vunpack.c.l.b16 %v384
        %v489 = vunpack.c.h.b16 %v384
        %v490 = vunpack.c.l.b16 %v385
        %v491 = vunpack.c.h.b16 %v385
        %v492 = vunpack.c.l.b16 %v386
        %v493 = vunpack.c.h.b16 %v386
        %v494 = vunpack.c.l.b16 %v387
        %v495 = vunpack.c.h.b16 %v387
        %v496 = vunpack.c.l.b16 %v388
        %v497 = vunpack.c.h.b16 %v388
        %v498 = vunpack.c.l.b16 %v389
        %v499 = vunpack.c.h.b16 %v389
        %v500 = vunpack.c.l.b16 %v390
        %v501 = vunpack.c.h.b16 %v390
        %v502 = vunpack.c.l.b16 %v391
        %v503 = vunpack.c.h.b16 %v391
        %v504 = vunpack.c.l.b16 %v392
        %v505 = vunpack.c.h.b16 %v392
        %v506 = vunpack.c.l.b16 %v393
        %v507 = vunpack.c.h.b16 %v393
        %v508 = vunpack.c.l.b16 %v394
        %v509 = vunpack.c.h.b16 %v394
        %v510 = vunpack.c.l.b16 %v395
        %v511 = vunpack.c.h.b16 %v395
        %v512 = vunpack.c.l.b16 %v396
        %v513 = vunpack.c.h.b16 %v396
        %v514 = vunpack.c.l.b16 %v397
        %v515 = vunpack.c.h.b16 %v397
        %v516 = vunpack.c.l.b16 %v398
        %v517 = vunpack.c.h.b16 %v398
        %v518 = vpack.c.b16 %v458, %v454
        %v519 = vpack.c.b16 %v459, %v455
        %v520 = vpack.c.b16 %v460, %v456
        %v521 = vpack.c.b16 %v461, %v457
        %v522 = vpack.c.b16 %v466, %v462
        %v523 = vpack.c.b16 %v467, %v463
        %v524 = vpack.c.b16 %v468, %v464
        %v525 = vpack.c.b16 %v469, %v465
        %v526 = vpack.c.b16 %v474, %v470
        %v527 = vpack.c.b16 %v475, %v471
        %v528 = vpack.c.b16 %v476, %v472
        %v529 = vpack.c.b16 %v477, %v473
        %v530 = vpack.c.b16 %v482, %v478
        %v531 = vpack.c.b16 %v483, %v479
        %v532 = vpack.c.b16 %v484, %v480
        %v533 = vpack.c.b16 %v485, %v481
        %v534 = vpack.c.b16 %v490, %v486
        %v535 = vpack.c.b16 %v491, %v487
        %v536 = vpack.c.b16 %v492, %v488
        %v537 = vpack.c.b16 %v493, %v489
        %v538 = vpack.c.b16 %v498, %v494
        %v539 = vpack.c.b16 %v499, %v495
        %v540 = vpack.c.b16 %v500, %v496
        %v541 = vpack.c.b16 %v501, %v497
        %v542 = vpack.c.b16 %v506, %v502
        %v543 = vpack.c.b16 %v507, %v503
        %v544 = vpack.c.b16 %v508, %v504
        %v545 = vpack.c.b16 %v509, %v505
        %v546 = vpack.c.b16 %v514, %v510
        %v547 = vpack.c.b16 %v515, %v511
        %v548 = vpack.c.b16 %v516, %v512
        %v549 = vpack.c.b16 %v517, %v513
        %582 = vmatprep.subr.bf16.mxu0 %v519
        %583 = vmatpush1.bf16.msra.mxu0 %v518
        %584 = vmatprep.subr.bf16.mxu0 %v523
        %585 = vmatpush1.bf16.msra.mxu0 %v522
        %586 = vmatprep.subr.bf16.mxu0 %v527
        %587 = vmatpush1.bf16.msra.mxu0 %v526
        %588 = vmatprep.subr.bf16.mxu0 %v531
        %589 = vmatpush1.bf16.msra.mxu0 %v530
        %590 = vmatprep.subr.bf16.mxu0 %v535
        %591 = vmatpush1.bf16.msra.mxu0 %v534
        %592 = vmatprep.subr.bf16.mxu0 %v539
        %593 = vmatpush1.bf16.msra.mxu0 %v538
        %594 = vmatprep.subr.bf16.mxu0 %v543
        %595 = vmatpush1.bf16.msra.mxu0 %v542
        %596 = vmatprep.subr.bf16.mxu0 %v547
        %597 = vmatpush1.bf16.msra.mxu0 %v546
        %598 = vmatprep.subr.bf16.mxu0 0
        %599 = vmatpush1.bf16.msra.mxu0 0
        %600 = vmatprep.subr.bf16.mxu0 0
        %601 = vmatpush1.bf16.msra.mxu0 0
        %602 = vmatprep.subr.bf16.mxu0 0
        %603 = vmatpush1.bf16.msra.mxu0 0
        %604 = vmatprep.subr.bf16.mxu0 0
        %605 = vmatpush1.bf16.msra.mxu0 0
        %606 = vmatprep.subr.bf16.mxu0 0
        %607 = vmatpush1.bf16.msra.mxu0 0
        %608 = vmatprep.subr.bf16.mxu0 0
        %609 = vmatpush1.bf16.msra.mxu0 0
        %610 = vmatprep.subr.bf16.mxu0 0
        %611 = vmatpush1.bf16.msra.mxu0 0
        %612 = vmatprep.subr.bf16.mxu0 0
        %613 = vmatpush1.bf16.msra.mxu0 0
        %614 = vmatprep.mubr.bf16.mxu0 0
        %615 = vmatmul.mubr.bf16.gmra.mrb[0].mxu0 %v399
        %v616 = vpop.f32.mrb[0].mxu0
        %v617 = vadd.f32 %v405, %v616
        %v618 = vpop.f32.mrb[0].mxu0
        %v619 = vadd.f32 %v409, %v618
        %v620 = vpop.f32.mrb[0].mxu0
        %v621 = vadd.f32 %v405, %v620
        %v622 = vpop.f32.mrb[0].mxu0
        %v623 = vadd.f32 %v409, %v622
        %624 = vdwg.mxu0
        %625 = vmatprep.subr.bf16.mxu0 %v521
        %626 = vmatpush1.bf16.msra.mxu0 %v520
        %627 = vmatprep.subr.bf16.mxu0 %v525
        %628 = vmatpush1.bf16.msra.mxu0 %v524
        %629 = vmatprep.subr.bf16.mxu0 %v529
        %630 = vmatpush1.bf16.msra.mxu0 %v528
        %631 = vmatprep.subr.bf16.mxu0 %v533
        %632 = vmatpush1.bf16.msra.mxu0 %v532
        %633 = vmatprep.subr.bf16.mxu0 %v537
        %634 = vmatpush1.bf16.msra.mxu0 %v536
        %635 = vmatprep.subr.bf16.mxu0 %v541
        %636 = vmatpush1.bf16.msra.mxu0 %v540
        %637 = vmatprep.subr.bf16.mxu0 %v545
        %638 = vmatpush1.bf16.msra.mxu0 %v544
        %639 = vmatprep.subr.bf16.mxu0 %v549
        %640 = vmatpush1.bf16.msra.mxu0 %v548
        %641 = vmatprep.subr.bf16.mxu0 0
        %642 = vmatpush1.bf16.msra.mxu0 0
        %643 = vmatprep.subr.bf16.mxu0 0
        %644 = vmatpush1.bf16.msra.mxu0 0
        %645 = vmatprep.subr.bf16.mxu0 0
        %646 = vmatpush1.bf16.msra.mxu0 0
        %647 = vmatprep.subr.bf16.mxu0 0
        %648 = vmatpush1.bf16.msra.mxu0 0
        %649 = vmatprep.subr.bf16.mxu0 0
        %650 = vmatpush1.bf16.msra.mxu0 0
        %651 = vmatprep.subr.bf16.mxu0 0
        %652 = vmatpush1.bf16.msra.mxu0 0
        %653 = vmatprep.subr.bf16.mxu0 0
        %654 = vmatpush1.bf16.msra.mxu0 0
        %655 = vmatprep.subr.bf16.mxu0 0
        %656 = vmatpush1.bf16.msra.mxu0 0
        %657 = vmatprep.mubr.bf16.mxu0 0
        %658 = vmatmul.mubr.bf16.gmra.mrb[0].mxu0 %v399
        %v659 = vpop.f32.mrb[0].mxu0
        %v660 = vadd.f32 %v413, %v659
        %v661 = vpop.f32.mrb[0].mxu0
        %v662 = vadd.f32 %v417, %v661
        %v663 = vpop.f32.mrb[0].mxu0
        %v664 = vadd.f32 %v413, %v663
        %v665 = vpop.f32.mrb[0].mxu0
        %v666 = vadd.f32 %v417, %v665
        %667 = vdwg.mxu0
        %v668 = vmax.f32 %v617, 0.0
        %v669 = vmax.f32 %v619, 0.0
        %v670 = vmax.f32 %v660, 0.0
        %v671 = vmax.f32 %v662, 0.0
        %v672 = vmax.f32 %v621, 0.0
        %v673 = vmax.f32 %v623, 0.0
        %v674 = vmax.f32 %v664, 0.0
        %v675 = vmax.f32 %v666, 0.0
        %v676 = vld [vmem:[%s5] sm:$0xf]
        %v677 = vld [vmem:[%s5 + $0x4] sm:$0xf]
        %v678 = vld [vmem:[%s5 + $0x8] sm:$0xf]
        %v679 = vld [vmem:[%s5 + $0xc] sm:$0xf]
        %v680 = vld [vmem:[%s5 + $0x10] sm:$0xf]
        %v681 = vld [vmem:[%s5 + $0x14] sm:$0xf]
        %v682 = vld [vmem:[%s5 + $0x18] sm:$0xf]
        %v683 = vld [vmem:[%s5 + $0x1c] sm:$0xf]
        %v684 = vld [vmem:[%s5 + $0x20] sm:$0xf]
        %v685 = vld [vmem:[%s5 + $0x24] sm:$0xf]
        %v686 = vld [vmem:[%s5 + $0x28] sm:$0xf]
        %v687 = vld [vmem:[%s5 + $0x2c] sm:$0xf]
        %v688 = vld [vmem:[%s5 + $0x30] sm:$0xf]
        %v689 = vld [vmem:[%s5 + $0x34] sm:$0xf]
        %v690 = vld [vmem:[%s5 + $0x38] sm:$0xf]
        %v691 = vld [vmem:[%s5 + $0x3c] sm:$0xf]
        %v692 = vld [vmem:[%s5 + $0x40] sm:$0xf]
        %v693 = vld [vmem:[%s5 + $0x44] sm:$0xf]
        %v694 = vld [vmem:[%s5 + $0x48] sm:$0xf]
        %v695 = vld [vmem:[%s5 + $0x4c] sm:$0xf]
        %v696 = vld [vmem:[%s5 + $0x50] sm:$0xf]
        %v697 = vld [vmem:[%s5 + $0x54] sm:$0xf]
        %v698 = vld [vmem:[%s5 + $0x58] sm:$0xf]
        %v699 = vld [vmem:[%s5 + $0x5c] sm:$0xf]
        %v700 = vld [vmem:[%s5 + $0x60] sm:$0xf]
        %v701 = vld [vmem:[%s5 + $0x64] sm:$0xf]
        %v702 = vld [vmem:[%s5 + $0x68] sm:$0xf]
        %v703 = vld [vmem:[%s5 + $0x6c] sm:$0xf]
        %v704 = vld [vmem:[%s5 + $0x70] sm:$0xf]
        %v705 = vld [vmem:[%s5 + $0x74] sm:$0xf]
        %v706 = vld [vmem:[%s5 + $0x78] sm:$0xf]
        %v707 = vld [vmem:[%s5 + $0x7c] sm:$0xf]
        %v708 = vld [vmem:[%s5 + $0x80] sm:$0xf]
        %v709 = vld [vmem:[%s5 + $0x84] sm:$0xf]
        %v710 = vld [vmem:[%s5 + $0x88] sm:$0xf]
        %v711 = vld [vmem:[%s5 + $0x8c] sm:$0xf]
        %v712 = vld [vmem:[%s5 + $0x90] sm:$0xf]
        %v713 = vld [vmem:[%s5 + $0x94] sm:$0xf]
        %v714 = vld [vmem:[%s5 + $0x98] sm:$0xf]
        %v715 = vld [vmem:[%s5 + $0x9c] sm:$0xf]
        %v716 = vld [vmem:[%s5 + $0xa0] sm:$0xf]
        %v717 = vld [vmem:[%s5 + $0xa4] sm:$0xf]
        %v718 = vld [vmem:[%s5 + $0xa8] sm:$0xf]
        %v719 = vld [vmem:[%s5 + $0xac] sm:$0xf]
        %v720 = vld [vmem:[%s5 + $0xb0] sm:$0xf]
        %v721 = vld [vmem:[%s5 + $0xb4] sm:$0xf]
        %v722 = vld [vmem:[%s5 + $0xb8] sm:$0xf]
        %v723 = vld [vmem:[%s5 + $0xbc] sm:$0xf]
        %v724 = vld [vmem:[%s5 + $0xc0] sm:$0xf]
        %v725 = vld [vmem:[%s5 + $0xc4] sm:$0xf]
        %v726 = vld [vmem:[%s5 + $0xc8] sm:$0xf]
        %v727 = vld [vmem:[%s5 + $0xcc] sm:$0xf]
        %v728 = vld [vmem:[%s5 + $0xd0] sm:$0xf]
        %v729 = vld [vmem:[%s5 + $0xd4] sm:$0xf]
        %v730 = vld [vmem:[%s5 + $0xd8] sm:$0xf]
        %v731 = vld [vmem:[%s5 + $0xdc] sm:$0xf]
        %v732 = vld [vmem:[%s5 + $0xe0] sm:$0xf]
        %v733 = vld [vmem:[%s5 + $0xe4] sm:$0xf]
        %v734 = vld [vmem:[%s5 + $0xe8] sm:$0xf]
        %v735 = vld [vmem:[%s5 + $0xec] sm:$0xf]
        %v736 = vld [vmem:[%s5 + $0xf0] sm:$0xf]
        %v737 = vld [vmem:[%s5 + $0xf4] sm:$0xf]
        %v738 = vld [vmem:[%s5 + $0xf8] sm:$0xf]
        %v739 = vld [vmem:[%s5 + $0xfc] sm:$0xf]
        %v740 = vpack.c.bf16 %v672, %v668
        %v741 = vpack.c.bf16 %v673, %v669
        %v742 = vpack.c.bf16 %v674, %v670
        %v743 = vpack.c.bf16 %v675, %v671
        %v744 = vld [vmem:[%s6] sm:$0x1]
        %v746 = vlaneseq
        %v747 = vshrl.u32 %v746, 7
        %v748 = vsub.s32 0, %v747
        %v749 = vrot.slane %v744, %v748
        %v815 = vunpack.c.l.b16 %v676
        %v816 = vunpack.c.l.b16 %v677
        %v817 = vunpack.c.l.b16 %v678
        %v818 = vunpack.c.l.b16 %v679
        %v819 = vunpack.c.l.b16 %v680
        %v820 = vunpack.c.l.b16 %v681
        %v821 = vunpack.c.l.b16 %v682
        %v822 = vunpack.c.l.b16 %v683
        %v823 = vunpack.c.l.b16 %v684
        %v824 = vunpack.c.l.b16 %v685
        %v825 = vunpack.c.l.b16 %v686
        %v826 = vunpack.c.l.b16 %v687
        %v827 = vunpack.c.l.b16 %v688
        %v828 = vunpack.c.l.b16 %v689
        %v829 = vunpack.c.l.b16 %v690
        %v830 = vunpack.c.l.b16 %v691
        %v831 = vunpack.c.l.b16 %v692
        %v832 = vunpack.c.l.b16 %v693
        %v833 = vunpack.c.l.b16 %v694
        %v834 = vunpack.c.l.b16 %v695
        %v835 = vunpack.c.l.b16 %v696
        %v836 = vunpack.c.l.b16 %v697
        %v837 = vunpack.c.l.b16 %v698
        %v838 = vunpack.c.l.b16 %v699
        %v839 = vunpack.c.l.b16 %v700
        %v840 = vunpack.c.l.b16 %v701
        %v841 = vunpack.c.l.b16 %v702
        %v842 = vunpack.c.l.b16 %v703
        %v843 = vunpack.c.l.b16 %v704
        %v844 = vunpack.c.l.b16 %v705
        %v845 = vunpack.c.l.b16 %v706
        %v846 = vunpack.c.l.b16 %v707
        %v847 = vunpack.c.l.b16 %v708
        %v848 = vunpack.c.l.b16 %v709
        %v849 = vunpack.c.l.b16 %v710
        %v850 = vunpack.c.l.b16 %v711
        %v851 = vunpack.c.l.b16 %v712
        %v852 = vunpack.c.l.b16 %v713
        %v853 = vunpack.c.l.b16 %v714
        %v854 = vunpack.c.l.b16 %v715
        %v855 = vunpack.c.l.b16 %v716
        %v856 = vunpack.c.l.b16 %v717
        %v857 = vunpack.c.l.b16 %v718
        %v858 = vunpack.c.l.b16 %v719
        %v859 = vunpack.c.l.b16 %v720
        %v860 = vunpack.c.l.b16 %v721
        %v861 = vunpack.c.l.b16 %v722
        %v862 = vunpack.c.l.b16 %v723
        %v863 = vunpack.c.l.b16 %v724
        %v864 = vunpack.c.l.b16 %v725
        %v865 = vunpack.c.l.b16 %v726
        %v866 = vunpack.c.l.b16 %v727
        %v867 = vunpack.c.l.b16 %v728
        %v868 = vunpack.c.l.b16 %v729
        %v869 = vunpack.c.l.b16 %v730
        %v870 = vunpack.c.l.b16 %v731
        %v871 = vunpack.c.l.b16 %v732
        %v872 = vunpack.c.l.b16 %v733
        %v873 = vunpack.c.l.b16 %v734
        %v874 = vunpack.c.l.b16 %v735
        %v875 = vunpack.c.l.b16 %v736
        %v876 = vunpack.c.l.b16 %v737
        %v877 = vunpack.c.l.b16 %v738
        %v878 = vunpack.c.l.b16 %v739
        %v879 = vpack.c.b16 %v816, %v815
        %v880 = vpack.c.b16 %v818, %v817
        %v881 = vpack.c.b16 %v820, %v819
        %v882 = vpack.c.b16 %v822, %v821
        %v883 = vpack.c.b16 %v824, %v823
        %v884 = vpack.c.b16 %v826, %v825
        %v885 = vpack.c.b16 %v828, %v827
        %v886 = vpack.c.b16 %v830, %v829
        %v887 = vpack.c.b16 %v832, %v831
        %v888 = vpack.c.b16 %v834, %v833
        %v889 = vpack.c.b16 %v836, %v835
        %v890 = vpack.c.b16 %v838, %v837
        %v891 = vpack.c.b16 %v840, %v839
        %v892 = vpack.c.b16 %v842, %v841
        %v893 = vpack.c.b16 %v844, %v843
        %v894 = vpack.c.b16 %v846, %v845
        %v895 = vpack.c.b16 %v848, %v847
        %v896 = vpack.c.b16 %v850, %v849
        %v897 = vpack.c.b16 %v852, %v851
        %v898 = vpack.c.b16 %v854, %v853
        %v899 = vpack.c.b16 %v856, %v855
        %v900 = vpack.c.b16 %v858, %v857
        %v901 = vpack.c.b16 %v860, %v859
        %v902 = vpack.c.b16 %v862, %v861
        %v903 = vpack.c.b16 %v864, %v863
        %v904 = vpack.c.b16 %v866, %v865
        %v905 = vpack.c.b16 %v868, %v867
        %v906 = vpack.c.b16 %v870, %v869
        %v907 = vpack.c.b16 %v872, %v871
        %v908 = vpack.c.b16 %v874, %v873
        %v909 = vpack.c.b16 %v876, %v875
        %v910 = vpack.c.b16 %v878, %v877
        %943 = vmatprep.subr.bf16.mxu0 0
        %944 = vmatpush1.bf16.msra.mxu0 %v879
        %945 = vmatprep.subr.bf16.mxu0 0
        %946 = vmatpush1.bf16.msra.mxu0 %v880
        %947 = vmatprep.subr.bf16.mxu0 0
        %948 = vmatpush1.bf16.msra.mxu0 %v881
        %949 = vmatprep.subr.bf16.mxu0 0
        %950 = vmatpush1.bf16.msra.mxu0 %v882
        %951 = vmatprep.subr.bf16.mxu0 0
        %952 = vmatpush1.bf16.msra.mxu0 %v883
        %953 = vmatprep.subr.bf16.mxu0 0
        %954 = vmatpush1.bf16.msra.mxu0 %v884
        %955 = vmatprep.subr.bf16.mxu0 0
        %956 = vmatpush1.bf16.msra.mxu0 %v885
        %957 = vmatprep.subr.bf16.mxu0 0
        %958 = vmatpush1.bf16.msra.mxu0 %v886
        %959 = vmatprep.subr.bf16.mxu0 0
        %960 = vmatpush1.bf16.msra.mxu0 %v887
        %961 = vmatprep.subr.bf16.mxu0 0
        %962 = vmatpush1.bf16.msra.mxu0 %v888
        %963 = vmatprep.subr.bf16.mxu0 0
        %964 = vmatpush1.bf16.msra.mxu0 %v889
        %965 = vmatprep.subr.bf16.mxu0 0
        %966 = vmatpush1.bf16.msra.mxu0 %v890
        %967 = vmatprep.subr.bf16.mxu0 0
        %968 = vmatpush1.bf16.msra.mxu0 %v891
        %969 = vmatprep.subr.bf16.mxu0 0
        %970 = vmatpush1.bf16.msra.mxu0 %v892
        %971 = vmatprep.subr.bf16.mxu0 0
        %972 = vmatpush1.bf16.msra.mxu0 %v893
        %973 = vmatprep.subr.bf16.mxu0 0
        %974 = vmatpush1.bf16.msra.mxu0 %v894
        %975 = vmatprep.mubr.bf16.mxu0 %v741
        %976 = vmatmul.mubr.bf16.gmra.mrb[0].mxu0 %v740
        %v977 = vpop.f32.mrb[0].mxu0
        %v978 = vadd.f32 %v749, %v977
        %v979 = vpop.f32.mrb[0].mxu0
        %v980 = vpop.f32.mrb[0].mxu0
        %v981 = vadd.f32 %v749, %v980
        %v982 = vpop.f32.mrb[0].mxu0
        %983 = vdwg.mxu0
        %984 = vmatprep.subr.bf16.mxu0 0
        %985 = vmatpush1.bf16.msra.mxu0 %v895
        %986 = vmatprep.subr.bf16.mxu0 0
        %987 = vmatpush1.bf16.msra.mxu0 %v896
        %988 = vmatprep.subr.bf16.mxu0 0
        %989 = vmatpush1.bf16.msra.mxu0 %v897
        %990 = vmatprep.subr.bf16.mxu0 0
        %991 = vmatpush1.bf16.msra.mxu0 %v898
        %992 = vmatprep.subr.bf16.mxu0 0
        %993 = vmatpush1.bf16.msra.mxu0 %v899
        %994 = vmatprep.subr.bf16.mxu0 0
        %995 = vmatpush1.bf16.msra.mxu0 %v900
        %996 = vmatprep.subr.bf16.mxu0 0
        %997 = vmatpush1.bf16.msra.mxu0 %v901
        %998 = vmatprep.subr.bf16.mxu0 0
        %999 = vmatpush1.bf16.msra.mxu0 %v902
        %1000 = vmatprep.subr.bf16.mxu0 0
        %1001 = vmatpush1.bf16.msra.mxu0 %v903
        %1002 = vmatprep.subr.bf16.mxu0 0
        %1003 = vmatpush1.bf16.msra.mxu0 %v904
        %1004 = vmatprep.subr.bf16.mxu0 0
        %1005 = vmatpush1.bf16.msra.mxu0 %v905
        %1006 = vmatprep.subr.bf16.mxu0 0
        %1007 = vmatpush1.bf16.msra.mxu0 %v906
        %1008 = vmatprep.subr.bf16.mxu0 0
        %1009 = vmatpush1.bf16.msra.mxu0 %v907
        %1010 = vmatprep.subr.bf16.mxu0 0
        %1011 = vmatpush1.bf16.msra.mxu0 %v908
        %1012 = vmatprep.subr.bf16.mxu0 0
        %1013 = vmatpush1.bf16.msra.mxu0 %v909
        %1014 = vmatprep.subr.bf16.mxu0 0
        %1015 = vmatpush1.bf16.msra.mxu0 %v910
        %1016 = vmatprep.mubr.bf16.mxu0 %v743
        %1017 = vmatmul.mubr.bf16.gmra.mrb[0].mxu0 %v742
        %v1018 = vpop.f32.mrb[0].mxu0
        %v1019 = vadd.f32 %v978, %v1018
        %v1020 = vpop.f32.mrb[0].mxu0
        %v1021 = vpop.f32.mrb[0].mxu0
        %v1022 = vadd.f32 %v981, %v1021
        %v1023 = vpop.f32.mrb[0].mxu0
        %1024 = vdwg.mxu0
        %v1025 = vadd.f32 %v318, %v1019
        %v1026 = vadd.f32 %v319, %v1022
        %1027 = vst [vmem:[%s314] sm:$0xff] %v1025
        %1028 = vst [vmem:[%s314 + $0x8] sm:$0xff] %v1026
        %s1029 = sand.u32 %s200, 1
        %s1030 = scalar_lea.sflag [#allocation4], %s1029
        %s1031 = sand.u32 %s200, 1
        %s1032 = smul.addr %s1031, 16
        %s1033 = scalar_lea.vmem [#allocation5], %s1032
        // Predicated region
        $region53: #{encoder_block_forward.5} parent=47 // pred_check
          %p1034 = pneg %p210
        $region54: #{encoder_block_forward.5} parent=47 // pred_check_branch
          %1036 = sbr.rel (%p1034) target = $region56
        $region55: #{encoder_block_forward.5} parent=47 // pred_region
          %s1037 = smul.u32 2, %s29
          %s1039 = ssub.s32 256, 256
          %1040 = vsyncadd %s1030, %s1039
          %s1041 = smul.addr %s28, 2
          %s1042 = sadd.s32 %s1037, %s1041
          %s1043 = smul.addr %s1042, 128
          %s1044 = scalar_lea.hbm %s7, %s1043
          %s1045 = sshll.u32 %s1033, 4
          %s1046 = int_to_ptr.vmem [resolvable:$true] %s1045
          %1051 = dma.vmem_to_hbm [thread:$0]  %s1046, 256, %s1044, %s1030, 128, 128, 8
        $region56: #{encoder_block_forward.5} parent=47 // pred_fallthru
          _
      $region48: #{encoder_block_forward.5} parent=5 // pred_fallthru
        _
      %p1052 = scmp.le.s32.totalorder 2, %s19
      // Predicated region
      $region57: #{encoder_block_forward.5} parent=5 // pred_check
        %p1053 = pneg %p1052
      $region58: #{encoder_block_forward.5} parent=5 // pred_check_branch
        %1055 = sbr.rel (%p1053) target = $region60
      $region59: #{encoder_block_forward.5} parent=5 // pred_region
        %s1056 = ssub.s32 %s19, 2
        // Predicated region
        $region61: #{encoder_block_forward.5} parent=59 // pred_check
          %p1057 = pneg %p216
        $region62: #{encoder_block_forward.5} parent=59 // pred_check_branch
          %1059 = sbr.rel (%p1057) target = $region64
        $region63: #{encoder_block_forward.5} parent=59 // pred_region
          %s1060 = sand.u32 %s201, 1
          %s1061 = scalar_lea.sflag [#allocation4], %s1060
          %s1062 = sand.u32 %s201, 1
          %s1063 = smul.addr %s1062, 16
          %s1064 = scalar_lea.vmem [#allocation5], %s1063
          %1065 = dma.done %s1061, 256
        $region64: #{encoder_block_forward.5} parent=59 // pred_fallthru
          _
      $region60: #{encoder_block_forward.5} parent=5 // pred_fallthru
        _
    $region6: #{encoder_block_forward.5} parent=1 // loop_footer
      %s23 = sadd.s32 1, %s19
    $region7: #{encoder_block_forward.5} parent=1 // loop_footer_branch
      %18 = sbr.rel target = $region3
    $region8: #{encoder_block_forward.5} parent=1 // loop_exit
      _
    %1066 = vsyncpa [#allocation3], 1
    %s1067 = scalar_lea.sflag [#allocation3], 1
    %1068 = vsyncpa %s1067, 1
    %1069 = vsyncpa [#allocation4], 1
    %s1070 = scalar_lea.sflag [#allocation4], 1
    %1071 = vsyncpa %s1070, 1

// kernel: encoder_block_forward.4
$region0: #{encoder_block_forward.4}
  #allocation0 [shape = 'u32[]', space=smem, size = 0x4, offset = 0x4, fixed_abs, tag = 'smem constant byte address 0x4 - core index']
  #allocation1 [shape = 'u32[144,128]{1,0:T(1,128)}', space=vmem, size = 0x12000, scoped, tag = 'internal scratch']
  %s0 = inlined_call_operand.vmem [shape: f32[2,16,128], index: 0, kind: input, shape index: {}, may-alias: {0,7}]
  %s1 = inlined_call_operand.vmem [shape: f32[1,128], index: 1, kind: input, shape index: {}]
  %s2 = inlined_call_operand.vmem [shape: f32[1,128], index: 2, kind: input, shape index: {}]
  %s3 = inlined_call_operand.vmem [shape: bf16[128,384], index: 3, kind: input, shape index: {}]
  %s4 = inlined_call_operand.vmem [shape: f32[1,384], index: 4, kind: input, shape index: {}]
  %s5 = inlined_call_operand.vmem [shape: bf16[128,128], index: 5, kind: input, shape index: {}]
  %s6 = inlined_call_operand.vmem [shape: f32[1,128], index: 6, kind: input, shape index: {}]
  %s7 = inlined_call_operand.vmem [shape: f32[2,16,128], index: 7, kind: output, shape index: {}, may-alias: {0,7}]
  %s8 = sld [smem:[#allocation0]]
  $region61: #{encoder_block_forward.4} parent=0
    _
  %s10 = ssub.s32 1, %s8
  %s11 = scalar_select 0, %s10, %s8
  loop: start=0, step=1, limit=4
  $region2: #{encoder_block_forward.4} parent=0 // loop_pre_header
    _
  $region3: #{encoder_block_forward.4} parent=0 // loop_header
    %s13 = sphi 0, %s17
    %p14 = scmp.ge.s32.totalorder %s13, 4
    %s23 = sphi 0, %s25
    %s26 = sphi 0, %s23
    %s27 = sphi 0, %s26
    %s43 = sphi 0, %s27
    %s47 = sphi 0, %s47
    %s49 = sphi 0, %s47
    %s50 = sphi 0, %s49
    %s64 = sphi 0, %s50
    %s68 = sphi 0, %s68
    %s70 = sphi 0, %s68
    %s71 = sphi 0, %s70
    %s85 = sphi 0, %s71
    %s89 = sphi 0, %s89
    %s91 = sphi 0, %s89
    %s92 = sphi 0, %s91
    %s106 = sphi 0, %s92
    %s110 = sphi 0, %s110
    %s112 = sphi 0, %s110
    %s113 = sphi 0, %s112
    %s127 = sphi 0, %s113
    %s131 = sphi 0, %s131
    %s133 = sphi 0, %s131
    %s134 = sphi 0, %s133
    %s148 = sphi 0, %s134
    %s152 = sphi 0, %s152
    %s154 = sphi 0, %s152
    %s155 = sphi 0, %s154
    %s169 = sphi 0, %s155
    %s175 = sphi 0, %s177
    %s178 = sphi 0, %s175
    %s179 = sphi 0, %s178
    %s195 = sphi 0, %s179
  $region4: #{encoder_block_forward.4} parent=0 // loop_header_branch
    %16 = sbr.rel (%p14) target = $region8
  $region5: #{encoder_block_forward.4} parent=0 // loop_body
    %s18 = ssub.s32 %s13, 1
    %s19 = ssub.s32 %s13, 2
    %s20 = sadd.s32 %s13, 1
    %s21 = ssub.s32 %s13, %s20
    %p22 = scmp.eq.s32.totalorder %s21, 0
    %s24 = sadd.s32 %s23, 1
    %s25 = scalar_select %p22, %s23, %s24
    %p28 = pneg %p22
    %p29 = scmp.eq.s32.totalorder %s13, 1
    %p30 = por %p28, %p29
    %p31 = scmp.ne.s32.totalorder %s23, %s26
    %p32 = scmp.eq.s32.totalorder %s13, 0
    %p33 = por %p31, %p32
    %p34 = scmp.ne.s32.totalorder %s23, %s26
    %p35 = scmp.eq.s32.totalorder %s18, 1
    %p36 = por %p34, %p35
    %p37 = scmp.ne.s32.totalorder %s26, %s27
    %p38 = scmp.eq.s32.totalorder %s18, 0
    %p39 = por %p37, %p38
    %p40 = scmp.ne.s32.totalorder %s26, %s27
    %p41 = scmp.eq.s32.totalorder %s19, 1
    %p42 = por %p40, %p41
    %p44 = scmp.ne.s32.totalorder %s27, %s43
    %p45 = scmp.eq.s32.totalorder %s19, 0
    %p46 = por %p44, %p45
    %s48 = sadd.s32 %s47, 1
    %p51 = scmp.eq.s32.totalorder %s13, 1
    %p52 = scmp.ne.s32.totalorder %s47, %s49
    %p53 = scmp.eq.s32.totalorder %s13, 0
    %p54 = por %p52, %p53
    %p55 = scmp.ne.s32.totalorder %s47, %s49
    %p56 = scmp.eq.s32.totalorder %s18, 1
    %p57 = por %p55, %p56
    %p58 = scmp.ne.s32.totalorder %s49, %s50
    %p59 = scmp.eq.s32.totalorder %s18, 0
    %p60 = por %p58, %p59
    %p61 = scmp.ne.s32.totalorder %s49, %s50
    %p62 = scmp.eq.s32.totalorder %s19, 1
    %p63 = por %p61, %p62
    %p65 = scmp.ne.s32.totalorder %s50, %s64
    %p66 = scmp.eq.s32.totalorder %s19, 0
    %p67 = por %p65, %p66
    %s69 = sadd.s32 %s68, 1
    %p72 = scmp.eq.s32.totalorder %s13, 1
    %p73 = scmp.ne.s32.totalorder %s68, %s70
    %p74 = scmp.eq.s32.totalorder %s13, 0
    %p75 = por %p73, %p74
    %p76 = scmp.ne.s32.totalorder %s68, %s70
    %p77 = scmp.eq.s32.totalorder %s18, 1
    %p78 = por %p76, %p77
    %p79 = scmp.ne.s32.totalorder %s70, %s71
    %p80 = scmp.eq.s32.totalorder %s18, 0
    %p81 = por %p79, %p80
    %p82 = scmp.ne.s32.totalorder %s70, %s71
    %p83 = scmp.eq.s32.totalorder %s19, 1
    %p84 = por %p82, %p83
    %p86 = scmp.ne.s32.totalorder %s71, %s85
    %p87 = scmp.eq.s32.totalorder %s19, 0
    %p88 = por %p86, %p87
    %s90 = sadd.s32 %s89, 1
    %p93 = scmp.eq.s32.totalorder %s13, 1
    %p94 = scmp.ne.s32.totalorder %s89, %s91
    %p95 = scmp.eq.s32.totalorder %s13, 0
    %p96 = por %p94, %p95
    %p97 = scmp.ne.s32.totalorder %s89, %s91
    %p98 = scmp.eq.s32.totalorder %s18, 1
    %p99 = por %p97, %p98
    %p100 = scmp.ne.s32.totalorder %s91, %s92
    %p101 = scmp.eq.s32.totalorder %s18, 0
    %p102 = por %p100, %p101
    %p103 = scmp.ne.s32.totalorder %s91, %s92
    %p104 = scmp.eq.s32.totalorder %s19, 1
    %p105 = por %p103, %p104
    %p107 = scmp.ne.s32.totalorder %s92, %s106
    %p108 = scmp.eq.s32.totalorder %s19, 0
    %p109 = por %p107, %p108
    %s111 = sadd.s32 %s110, 1
    %p114 = scmp.eq.s32.totalorder %s13, 1
    %p115 = scmp.ne.s32.totalorder %s110, %s112
    %p116 = scmp.eq.s32.totalorder %s13, 0
    %p117 = por %p115, %p116
    %p118 = scmp.ne.s32.totalorder %s110, %s112
    %p119 = scmp.eq.s32.totalorder %s18, 1
    %p120 = por %p118, %p119
    %p121 = scmp.ne.s32.totalorder %s112, %s113
    %p122 = scmp.eq.s32.totalorder %s18, 0
    %p123 = por %p121, %p122
    %p124 = scmp.ne.s32.totalorder %s112, %s113
    %p125 = scmp.eq.s32.totalorder %s19, 1
    %p126 = por %p124, %p125
    %p128 = scmp.ne.s32.totalorder %s113, %s127
    %p129 = scmp.eq.s32.totalorder %s19, 0
    %p130 = por %p128, %p129
    %s132 = sadd.s32 %s131, 1
    %p135 = scmp.eq.s32.totalorder %s13, 1
    %p136 = scmp.ne.s32.totalorder %s131, %s133
    %p137 = scmp.eq.s32.totalorder %s13, 0
    %p138 = por %p136, %p137
    %p139 = scmp.ne.s32.totalorder %s131, %s133
    %p140 = scmp.eq.s32.totalorder %s18, 1
    %p141 = por %p139, %p140
    %p142 = scmp.ne.s32.totalorder %s133, %s134
    %p143 = scmp.eq.s32.totalorder %s18, 0
    %p144 = por %p142, %p143
    %p145 = scmp.ne.s32.totalorder %s133, %s134
    %p146 = scmp.eq.s32.totalorder %s19, 1
    %p147 = por %p145, %p146
    %p149 = scmp.ne.s32.totalorder %s134, %s148
    %p150 = scmp.eq.s32.totalorder %s19, 0
    %p151 = por %p149, %p150
    %s153 = sadd.s32 %s152, 1
    %p156 = scmp.eq.s32.totalorder %s13, 1
    %p157 = scmp.ne.s32.totalorder %s152, %s154
    %p158 = scmp.eq.s32.totalorder %s13, 0
    %p159 = por %p157, %p158
    %p160 = scmp.ne.s32.totalorder %s152, %s154
    %p161 = scmp.eq.s32.totalorder %s18, 1
    %p162 = por %p160, %p161
    %p163 = scmp.ne.s32.totalorder %s154, %s155
    %p164 = scmp.eq.s32.totalorder %s18, 0
    %p165 = por %p163, %p164
    %p166 = scmp.ne.s32.totalorder %s154, %s155
    %p167 = scmp.eq.s32.totalorder %s19, 1
    %p168 = por %p166, %p167
    %p170 = scmp.ne.s32.totalorder %s155, %s169
    %p171 = scmp.eq.s32.totalorder %s19, 0
    %p172 = por %p170, %p171
    %s173 = ssub.s32 %s13, %s20
    %p174 = scmp.eq.s32.totalorder %s173, 0
    %s176 = sadd.s32 %s175, 1
    %s177 = scalar_select %p174, %s175, %s176
    %p180 = pneg %p174
    %p181 = scmp.eq.s32.totalorder %s13, 1
    %p182 = por %p180, %p181
    %p183 = scmp.ne.s32.totalorder %s175, %s178
    %p184 = scmp.eq.s32.totalorder %s13, 0
    %p185 = por %p183, %p184
    %p186 = scmp.ne.s32.totalorder %s175, %s178
    %p187 = scmp.eq.s32.totalorder %s18, 1
    %p188 = por %p186, %p187
    %p189 = scmp.ne.s32.totalorder %s178, %s179
    %p190 = scmp.eq.s32.totalorder %s18, 0
    %p191 = por %p189, %p190
    %p192 = scmp.ne.s32.totalorder %s178, %s179
    %p193 = scmp.eq.s32.totalorder %s19, 1
    %p194 = por %p192, %p193
    %p196 = scmp.ne.s32.totalorder %s179, %s195
    %p197 = scmp.eq.s32.totalorder %s19, 0
    %p198 = por %p196, %p197
    %p199 = scmp.le.s32.totalorder 1, %s13
    %p200 = scmp.lt.s32.totalorder %s13, 3
    %p201 = pnand %p199, %p200
    %p202 = pneg %p201
    // Predicated region
    $region9: #{encoder_block_forward.4} parent=5 // pred_check
      _
    $region10: #{encoder_block_forward.4} parent=5 // pred_check_branch
      %204 = sbr.rel (%p201) target = $region12
    $region11: #{encoder_block_forward.4} parent=5 // pred_region
      %s205 = ssub.s32 %s13, 1
      // Predicated region
      $region13: #{encoder_block_forward.4} parent=11 // pred_check
        %p206 = pneg %p60
      $region14: #{encoder_block_forward.4} parent=11 // pred_check_branch
        %208 = sbr.rel (%p206) target = $region16
      $region15: #{encoder_block_forward.4} parent=11 // pred_region
        _
      $region16: #{encoder_block_forward.4} parent=11 // pred_fallthru
        _
      // Predicated region
      $region17: #{encoder_block_forward.4} parent=11 // pred_check
        %p209 = pneg %p81
      $region18: #{encoder_block_forward.4} parent=11 // pred_check_branch
        %211 = sbr.rel (%p209) target = $region20
      $region19: #{encoder_block_forward.4} parent=11 // pred_region
        _
      $region20: #{encoder_block_forward.4} parent=11 // pred_fallthru
        _
      // Predicated region
      $region21: #{encoder_block_forward.4} parent=11 // pred_check
        %p212 = pneg %p102
      $region22: #{encoder_block_forward.4} parent=11 // pred_check_branch
        %214 = sbr.rel (%p212) target = $region24
      $region23: #{encoder_block_forward.4} parent=11 // pred_region
        _
      $region24: #{encoder_block_forward.4} parent=11 // pred_fallthru
        _
      // Predicated region
      $region25: #{encoder_block_forward.4} parent=11 // pred_check
        %p215 = pneg %p123
      $region26: #{encoder_block_forward.4} parent=11 // pred_check_branch
        %217 = sbr.rel (%p215) target = $region28
      $region27: #{encoder_block_forward.4} parent=11 // pred_region
        _
      $region28: #{encoder_block_forward.4} parent=11 // pred_fallthru
        _
      // Predicated region
      $region29: #{encoder_block_forward.4} parent=11 // pred_check
        %p218 = pneg %p144
      $region30: #{encoder_block_forward.4} parent=11 // pred_check_branch
        %220 = sbr.rel (%p218) target = $region32
      $region31: #{encoder_block_forward.4} parent=11 // pred_region
        _
      $region32: #{encoder_block_forward.4} parent=11 // pred_fallthru
        _
      // Predicated region
      $region33: #{encoder_block_forward.4} parent=11 // pred_check
        %p221 = pneg %p165
      $region34: #{encoder_block_forward.4} parent=11 // pred_check_branch
        %223 = sbr.rel (%p221) target = $region36
      $region35: #{encoder_block_forward.4} parent=11 // pred_region
        _
      $region36: #{encoder_block_forward.4} parent=11 // pred_fallthru
        _
    $region12: #{encoder_block_forward.4} parent=5 // pred_fallthru
      _
    %p224 = scmp.lt.s32.totalorder %s13, 2
    // Predicated region
    $region37: #{encoder_block_forward.4} parent=5 // pred_check
      %p225 = pneg %p224
    $region38: #{encoder_block_forward.4} parent=5 // pred_check_branch
      %227 = sbr.rel (%p225) target = $region40
    $region39: #{encoder_block_forward.4} parent=5 // pred_region
      // Predicated region
      $region41: #{encoder_block_forward.4} parent=39 // pred_check
        %p228 = pneg %p33
      $region42: #{encoder_block_forward.4} parent=39 // pred_check_branch
        %230 = sbr.rel (%p228) target = $region44
      $region43: #{encoder_block_forward.4} parent=39 // pred_region
        %p231 = scmp.lt.s32.totalorder %s13, 1
        %s232 = scalar_select %p231, %s13, 1
        %s233 = smul.addr %s232, 2
        %s234 = smul.addr %s233, 8
        %s235 = scalar_lea.vmem %s0, %s234
      $region44: #{encoder_block_forward.4} parent=39 // pred_fallthru
        _
    $region40: #{encoder_block_forward.4} parent=5 // pred_fallthru
      _
    %p236 = scmp.le.s32.totalorder 1, %s13
    %p237 = scmp.lt.s32.totalorder %s13, 3
    %p238 = pnand %p236, %p237
    %p239 = pneg %p238
    // Predicated region
    $region45: #{encoder_block_forward.4} parent=5 // pred_check
      _
    $region46: #{encoder_block_forward.4} parent=5 // pred_check_branch
      %241 = sbr.rel (%p238) target = $region48
    $region47: #{encoder_block_forward.4} parent=5 // pred_region
      %s242 = ssub.s32 %s13, 1
      %p243 = scmp.lt.s32.totalorder %s18, 1
      %s244 = scalar_select %p243, %s18, 1
      %s245 = smul.addr %s244, 2
      %s246 = smul.addr %s245, 8
      %s247 = scalar_lea.vmem %s0, %s246
      %p248 = pneg %p39
      %p249 = pneg %p36
      %p250 = pneg %p60
      %p251 = pneg %p57
      %p252 = pneg %p81
      %p253 = pneg %p78
      %p254 = pneg %p102
      %p255 = pneg %p99
      %p256 = pneg %p123
      %p257 = pneg %p120
      %p258 = pneg %p144
      %p259 = pneg %p141
      %p260 = pneg %p165
      %p261 = pneg %p162
      %p262 = pneg %p191
      %p263 = pneg %p188
      %p264 = scmp.lt.s32.totalorder %s18, 1
      %s265 = scalar_select %p264, %s18, 1
      %s266 = smul.addr %s265, 2
      %s267 = smul.addr %s266, 8
      %s268 = scalar_lea.vmem %s7, %s267
      %p269 = scmp.lt.s32.totalorder %s18, 1
      %s270 = scalar_select %p269, %s18, 1
      %s271 = smul.addr %s270, 2
      %s272 = smul.addr %s271, 8
      %s273 = scalar_lea.vmem %s0, %s272
      %p274 = scmp.lt.s32.totalorder %s18, 1
      %s275 = scalar_select %p274, %s18, 1
      %s276 = smul.addr %s275, 2
      %s277 = smul.addr %s276, 8
      %s278 = scalar_lea.vmem %s7, %s277
      %v280 = vld [vmem:[%s273] sm:$0xff]
      %v281 = vld [vmem:[%s273 + $0x8] sm:$0xff]
      %v282 = vld [vmem:[%s1] sm:$0x1]
      %v283 = vld [vmem:[%s2] sm:$0x1]
      %284 = vadd.xlane.f32.xlu0 %v280
      %v285 = vpop.xlane.xlu0 %284
      %286 = vadd.xlane.f32.xlu0 %v281
      %v287 = vpop.xlane.xlu0 %286
      %v288 = vrcp.pop 128.0
      %v289 = vmul.f32 %v285, %v288
      %v290 = vmul.f32 %v287, %v288
      %v291 = vmul.f32 %v280, %v280
      %v292 = vmul.f32 %v281, %v281
      %293 = vadd.xlane.f32.xlu0 %v291
      %v294 = vpop.xlane.xlu0 %293
      %295 = vadd.xlane.f32.xlu0 %v292
      %v296 = vpop.xlane.xlu0 %295
      %v297 = vmul.f32 %v294, %v288
      %v298 = vmul.f32 %v296, %v288
      %v299 = vmul.f32 %v289, %v289
      %v300 = vmul.f32 %v290, %v290
      %v301 = vsub.f32 %v297, %v299
      %v302 = vsub.f32 %v298, %v300
      %v303 = vmax.f32 %v301, 0.0
      %v304 = vmax.f32 %v302, 0.0
      %v305 = vsub.f32 %v280, %v289
      %v306 = vsub.f32 %v281, %v290
      %v307 = vadd.f32 %v303, 1e-06
      %v308 = vadd.f32 %v304, 1e-06
      %v309 = vrsqrt.pop %v307
      %v310 = vrsqrt.pop %v308
      %v311 = vmul.f32 %v305, %v309
      %v312 = vmul.f32 %v306, %v310
      %v314 = vlaneseq
      %v315 = vshrl.u32 %v314, 7
      %v316 = vsub.s32 0, %v315
      %v317 = vrot.slane %v282, %v316
      %v319 = vmul.f32 %v311, %v317
      %v320 = vmul.f32 %v312, %v317
      %v322 = vlaneseq
      %v323 = vshrl.u32 %v322, 7
      %v324 = vsub.s32 0, %v323
      %v325 = vrot.slane %v283, %v324
      %v327 = vadd.f32 %v319, %v325
      %v328 = vadd.f32 %v320, %v325
      %v329 = vld [vmem:[%s3] sm:$0xff]
      %v330 = vld [vmem:[%s3 + $0x8] sm:$0xf]
      %v331 = vld [vmem:[%s3 + $0xc] sm:$0xff]
      %v332 = vld [vmem:[%s3 + $0x14] sm:$0xf]
      %v333 = vld [vmem:[%s3 + $0x18] sm:$0xff]
      %v334 = vld [vmem:[%s3 + $0x20] sm:$0xf]
      %v335 = vld [vmem:[%s3 + $0x24] sm:$0xff]
      %v336 = vld [vmem:[%s3 + $0x2c] sm:$0xf]
      %v337 = vld [vmem:[%s3 + $0x30] sm:$0xff]
      %v338 = vld [vmem:[%s3 + $0x38] sm:$0xf]
      %v339 = vld [vmem:[%s3 + $0x3c] sm:$0xff]
      %v340 = vld [vmem:[%s3 + $0x44] sm:$0xf]
      %v341 = vld [vmem:[%s3 + $0x48] sm:$0xff]
      %v342 = vld [vmem:[%s3 + $0x50] sm:$0xf]
      %v343 = vld [vmem:[%s3 + $0x54] sm:$0xff]
      %v344 = vld [vmem:[%s3 + $0x5c] sm:$0xf]
      %v345 = vld [vmem:[%s3 + $0x60] sm:$0xff]
      %v346 = vld [vmem:[%s3 + $0x68] sm:$0xf]
      %v347 = vld [vmem:[%s3 + $0x6c] sm:$0xff]
      %v348 = vld [vmem:[%s3 + $0x74] sm:$0xf]
      %v349 = vld [vmem:[%s3 + $0x78] sm:$0xff]
      %v350 = vld [vmem:[%s3 + $0x80] sm:$0xf]
      %v351 = vld [vmem:[%s3 + $0x84] sm:$0xff]
      %v352 = vld [vmem:[%s3 + $0x8c] sm:$0xf]
      %v353 = vld [vmem:[%s3 + $0x90] sm:$0xff]
      %v354 = vld [vmem:[%s3 + $0x98] sm:$0xf]
      %v355 = vld [vmem:[%s3 + $0x9c] sm:$0xff]
      %v356 = vld [vmem:[%s3 + $0xa4] sm:$0xf]
      %v357 = vld [vmem:[%s3 + $0xa8] sm:$0xff]
      %v358 = vld [vmem:[%s3 + $0xb0] sm:$0xf]
      %v359 = vld [vmem:[%s3 + $0xb4] sm:$0xff]
      %v360 = vld [vmem:[%s3 + $0xbc] sm:$0xf]
      %v361 = vpack.c.bf16 %v328, %v327
      %v362 = vld [vmem:[%s4] sm:$0x7]
      %v364 = vlaneseq
      %v365 = vshrl.u32 %v364, 7
      %v366 = vsub.s32 0, %v365
      %v367 = vrot.slane %v362, %v366
      %v368 = vlaneseq
      %v369 = vshrl.u32 %v368, 7
      %v370 = vsub.s32 1, %v369
      %v371 = vrot.slane %v362, %v370
      %v372 = vlaneseq
      %v373 = vshrl.u32 %v372, 7
      %v374 = vsub.s32 2, %v373
      %v375 = vrot.slane %v362, %v374
      %v411 = vunpack.c.l.b16 %v329
      %v412 = vunpack.c.h.b16 %v329
      %v413 = vunpack.c.l.b16 %v330
      %v414 = vunpack.c.l.b16 %v331
      %v415 = vunpack.c.h.b16 %v331
      %v416 = vunpack.c.l.b16 %v332
      %v417 = vunpack.c.l.b16 %v333
      %v418 = vunpack.c.h.b16 %v333
      %v419 = vunpack.c.l.b16 %v334
      %v420 = vunpack.c.l.b16 %v335
      %v421 = vunpack.c.h.b16 %v335
      %v422 = vunpack.c.l.b16 %v336
      %v423 = vunpack.c.l.b16 %v337
      %v424 = vunpack.c.h.b16 %v337
      %v425 = vunpack.c.l.b16 %v338
      %v426 = vunpack.c.l.b16 %v339
      %v427 = vunpack.c.h.b16 %v339
      %v428 = vunpack.c.l.b16 %v340
      %v429 = vunpack.c.l.b16 %v341
      %v430 = vunpack.c.h.b16 %v341
      %v431 = vunpack.c.l.b16 %v342
      %v432 = vunpack.c.l.b16 %v343
      %v433 = vunpack.c.h.b16 %v343
      %v434 = vunpack.c.l.b16 %v344
      %v435 = vunpack.c.l.b16 %v345
      %v436 = vunpack.c.h.b16 %v345
      %v437 = vunpack.c.l.b16 %v346
      %v438 = vunpack.c.l.b16 %v347
      %v439 = vunpack.c.h.b16 %v347
      %v440 = vunpack.c.l.b16 %v348
      %v441 = vunpack.c.l.b16 %v349
      %v442 = vunpack.c.h.b16 %v349
      %v443 = vunpack.c.l.b16 %v350
      %v444 = vunpack.c.l.b16 %v351
      %v445 = vunpack.c.h.b16 %v351
      %v446 = vunpack.c.l.b16 %v352
      %v447 = vunpack.c.l.b16 %v353
      %v448 = vunpack.c.h.b16 %v353
      %v449 = vunpack.c.l.b16 %v354
      %v450 = vunpack.c.l.b16 %v355
      %v451 = vunpack.c.h.b16 %v355
      %v452 = vunpack.c.l.b16 %v356
      %v453 = vunpack.c.l.b16 %v357
      %v454 = vunpack.c.h.b16 %v357
      %v455 = vunpack.c.l.b16 %v358
      %v456 = vunpack.c.l.b16 %v359
      %v457 = vunpack.c.h.b16 %v359
      %v458 = vunpack.c.l.b16 %v360
      %v459 = vpack.c.b16 %v414, %v411
      %v460 = vpack.c.b16 %v415, %v412
      %v461 = vpack.c.b16 %v416, %v413
      %v462 = vpack.c.b16 %v420, %v417
      %v463 = vpack.c.b16 %v421, %v418
      %v464 = vpack.c.b16 %v422, %v419
      %v465 = vpack.c.b16 %v426, %v423
      %v466 = vpack.c.b16 %v427, %v424
      %v467 = vpack.c.b16 %v428, %v425
      %v468 = vpack.c.b16 %v432, %v429
      %v469 = vpack.c.b16 %v433, %v430
      %v470 = vpack.c.b16 %v434, %v431
      %v471 = vpack.c.b16 %v438, %v435
      %v472 = vpack.c.b16 %v439, %v436
      %v473 = vpack.c.b16 %v440, %v437
      %v474 = vpack.c.b16 %v444, %v441
      %v475 = vpack.c.b16 %v445, %v442
      %v476 = vpack.c.b16 %v446, %v443
      %v477 = vpack.c.b16 %v450, %v447
      %v478 = vpack.c.b16 %v451, %v448
      %v479 = vpack.c.b16 %v452, %v449
      %v480 = vpack.c.b16 %v456, %v453
      %v481 = vpack.c.b16 %v457, %v454
      %v482 = vpack.c.b16 %v458, %v455
      %507 = vmatprep.subr.bf16.mxu0 %v460
      %508 = vmatpush1.bf16.msra.mxu0 %v459
      %509 = vmatprep.subr.bf16.mxu0 %v463
      %510 = vmatpush1.bf16.msra.mxu0 %v462
      %511 = vmatprep.subr.bf16.mxu0 %v466
      %512 = vmatpush1.bf16.msra.mxu0 %v465
      %513 = vmatprep.subr.bf16.mxu0 %v469
      %514 = vmatpush1.bf16.msra.mxu0 %v468
      %515 = vmatprep.subr.bf16.mxu0 %v472
      %516 = vmatpush1.bf16.msra.mxu0 %v471
      %517 = vmatprep.subr.bf16.mxu0 %v475
      %518 = vmatpush1.bf16.msra.mxu0 %v474
      %519 = vmatprep.subr.bf16.mxu0 %v478
      %520 = vmatpush1.bf16.msra.mxu0 %v477
      %521 = vmatprep.subr.bf16.mxu0 %v481
      %522 = vmatpush1.bf16.msra.mxu0 %v480
      %523 = vmatprep.subr.bf16.mxu0 0
      %524 = vmatpush1.bf16.msra.mxu0 0
      %525 = vmatprep.subr.bf16.mxu0 0
      %526 = vmatpush1.bf16.msra.mxu0 0
      %527 = vmatprep.subr.bf16.mxu0 0
      %528 = vmatpush1.bf16.msra.mxu0 0
      %529 = vmatprep.subr.bf16.mxu0 0
      %530 = vmatpush1.bf16.msra.mxu0 0
      %531 = vmatprep.subr.bf16.mxu0 0
      %532 = vmatpush1.bf16.msra.mxu0 0
      %533 = vmatprep.subr.bf16.mxu0 0
      %534 = vmatpush1.bf16.msra.mxu0 0
      %535 = vmatprep.subr.bf16.mxu0 0
      %536 = vmatpush1.bf16.msra.mxu0 0
      %537 = vmatprep.subr.bf16.mxu0 0
      %538 = vmatpush1.bf16.msra.mxu0 0
      %539 = vmatprep.mubr.bf16.mxu0 0
      %540 = vmatmul.mubr.bf16.gmra.mrb[0].mxu0 %v361
      %v541 = vpop.f32.mrb[0].mxu0
      %v542 = vadd.f32 %v367, %v541
      %v543 = vpop.f32.mrb[0].mxu0
      %v544 = vadd.f32 %v371, %v543
      %v545 = vpop.f32.mrb[0].mxu0
      %v546 = vadd.f32 %v367, %v545
      %v547 = vpop.f32.mrb[0].mxu0
      %v548 = vadd.f32 %v371, %v547
      %549 = vdwg.mxu0
      %550 = vmatprep.subr.bf16.mxu0 0
      %551 = vmatpush1.bf16.msra.mxu0 %v461
      %552 = vmatprep.subr.bf16.mxu0 0
      %553 = vmatpush1.bf16.msra.mxu0 %v464
      %554 = vmatprep.subr.bf16.mxu0 0
      %555 = vmatpush1.bf16.msra.mxu0 %v467
      %556 = vmatprep.subr.bf16.mxu0 0
      %557 = vmatpush1.bf16.msra.mxu0 %v470
      %558 = vmatprep.subr.bf16.mxu0 0
      %559 = vmatpush1.bf16.msra.mxu0 %v473
      %560 = vmatprep.subr.bf16.mxu0 0
      %561 = vmatpush1.bf16.msra.mxu0 %v476
      %562 = vmatprep.subr.bf16.mxu0 0
      %563 = vmatpush1.bf16.msra.mxu0 %v479
      %564 = vmatprep.subr.bf16.mxu0 0
      %565 = vmatpush1.bf16.msra.mxu0 %v482
      %566 = vmatprep.subr.bf16.mxu0 0
      %567 = vmatpush1.bf16.msra.mxu0 0
      %568 = vmatprep.subr.bf16.mxu0 0
      %569 = vmatpush1.bf16.msra.mxu0 0
      %570 = vmatprep.subr.bf16.mxu0 0
      %571 = vmatpush1.bf16.msra.mxu0 0
      %572 = vmatprep.subr.bf16.mxu0 0
      %573 = vmatpush1.bf16.msra.mxu0 0
      %574 = vmatprep.subr.bf16.mxu0 0
      %575 = vmatpush1.bf16.msra.mxu0 0
      %576 = vmatprep.subr.bf16.mxu0 0
      %577 = vmatpush1.bf16.msra.mxu0 0
      %578 = vmatprep.subr.bf16.mxu0 0
      %579 = vmatpush1.bf16.msra.mxu0 0
      %580 = vmatprep.subr.bf16.mxu0 0
      %581 = vmatpush1.bf16.msra.mxu0 0
      %582 = vmatprep.mubr.bf16.mxu0 0
      %583 = vmatmul.mubr.bf16.gmra.mrb[0].mxu0 %v361
      %v584 = vpop.f32.mrb[0].mxu0
      %v585 = vadd.f32 %v375, %v584
      %v586 = vpop.f32.mrb[0].mxu0
      %v587 = vpop.f32.mrb[0].mxu0
      %v588 = vadd.f32 %v375, %v587
      %v589 = vpop.f32.mrb[0].mxu0
      %590 = vdwg.mxu0
      %v591 = vmul.f32 %v542, 0.25
      %v592 = vmul.f32 %v546, 0.25
      %v593 = vpack.c.bf16 %v592, %v591
      %v594 = vpack.c.bf16 %v548, %v544
      %vm595 = vcmask 130048
      %v597 = vsel %vm595, %v593, 0
      %v600 = vsel %vm595, %v594, 0
      %602 = vmatprep.subr.bf16.mxu0 0
      %603 = vmatpush1.bf16.xpose.msra.mxu0 %v600
      %604 = vmatprep.subr.bf16.mxu0 0
      %605 = vmatpush1.bf16.xpose.msra.mxu0 0
      %606 = vmatprep.subr.bf16.mxu0 0
      %607 = vmatpush1.bf16.xpose.msra.mxu0 0
      %608 = vmatprep.subr.bf16.mxu0 0
      %609 = vmatpush1.bf16.xpose.msra.mxu0 0
      %610 = vmatprep.subr.bf16.mxu0 0
      %611 = vmatpush1.bf16.xpose.msra.mxu0 0
      %612 = vmatprep.subr.bf16.mxu0 0
      %613 = vmatpush1.bf16.xpose.msra.mxu0 0
      %614 = vmatprep.subr.bf16.mxu0 0
      %615 = vmatpush1.bf16.xpose.msra.mxu0 0
      %616 = vmatprep.subr.bf16.mxu0 0
      %617 = vmatpush1.bf16.xpose.msra.mxu0 0
      %618 = vmatprep.subr.bf16.mxu0 0
      %619 = vmatpush1.bf16.xpose.msra.mxu0 0
      %620 = vmatprep.subr.bf16.mxu0 0
      %621 = vmatpush1.bf16.xpose.msra.mxu0 0
      %622 = vmatprep.subr.bf16.mxu0 0
      %623 = vmatpush1.bf16.xpose.msra.mxu0 0
      %624 = vmatprep.subr.bf16.mxu0 0
      %625 = vmatpush1.bf16.xpose.msra.mxu0 0
      %626 = vmatprep.subr.bf16.mxu0 0
      %627 = vmatpush1.bf16.xpose.msra.mxu0 0
      %628 = vmatprep.subr.bf16.mxu0 0
      %629 = vmatpush1.bf16.xpose.msra.mxu0 0
      %630 = vmatprep.subr.bf16.mxu0 0
      %631 = vmatpush1.bf16.xpose.msra.mxu0 0
      %632 = vmatprep.subr.bf16.mxu0 0
      %633 = vmatpush1.bf16.xpose.msra.mxu0 0
      %634 = vmatprep.mubr.bf16.mxu0 0
      %635 = vmatmul.mubr.bf16.gmra.mrb[0].mxu0 %v597
      %v636 = vpop.f32.mrb[0].mxu0
      %v637 = vadd.f32 0.0, %v636
      %v638 = vpop.f32.mrb[0].mxu0
      %v639 = vpop.f32.mrb[0].mxu0
      %v640 = vadd.f32 0.0, %v639
      %v641 = vpop.f32.mrb[0].mxu0
      %642 = vdwg.mxu0
      %v643 = vsel %vm595, %v637, -inf
      %644 = vmax.xlane.f32.xlu0 %v643
      %v645 = vpop.xlane.xlu0 %644
      %v646 = vsel %vm595, %v640, -inf
      %647 = vmax.xlane.f32.xlu0 %v646
      %v648 = vpop.xlane.xlu0 %647
      %v649 = vsub.f32 %v637, %v645
      %v650 = vsub.f32 %v640, %v648
      %v651 = vmul.f32 %v649, 1.442695
      %v652 = vpow.pop %v651
      %v653 = vmul.f32 %v650, 1.442695
      %v654 = vpow.pop %v653
      %v655 = vsel %vm595, %v652, 0.0
      %656 = vadd.xlane.f32.xlu0 %v655
      %v657 = vpop.xlane.xlu0 %656
      %v658 = vsel %vm595, %v654, 0.0
      %659 = vadd.xlane.f32.xlu0 %v658
      %v660 = vpop.xlane.xlu0 %659
      %v661 = vrcp.pop %v657
      %v662 = vrcp.pop %v660
      %v663 = vmul.f32 %v652, %v661
      %v664 = vmul.f32 %v654, %v662
      %v665 = vpack.c.bf16 %v664, %v663
      %v666 = vpack.c.bf16 %v588, %v585
      %v668 = vsel %vm595, %v665, 0
      %670 = vmatprep.subr.bf16.mxu0 0
      %671 = vmatpush1.bf16.msra.mxu0 %v666
      %672 = vmatprep.subr.bf16.mxu0 0
      %673 = vmatpush1.bf16.msra.mxu0 0
      %674 = vmatprep.subr.bf16.mxu0 0
      %675 = vmatpush1.bf16.msra.mxu0 0
      %676 = vmatprep.subr.bf16.mxu0 0
      %677 = vmatpush1.bf16.msra.mxu0 0
      %678 = vmatprep.subr.bf16.mxu0 0
      %679 = vmatpush1.bf16.msra.mxu0 0
      %680 = vmatprep.subr.bf16.mxu0 0
      %681 = vmatpush1.bf16.msra.mxu0 0
      %682 = vmatprep.subr.bf16.mxu0 0
      %683 = vmatpush1.bf16.msra.mxu0 0
      %684 = vmatprep.subr.bf16.mxu0 0
      %685 = vmatpush1.bf16.msra.mxu0 0
      %686 = vmatprep.subr.bf16.mxu0 0
      %687 = vmatpush1.bf16.msra.mxu0 0
      %688 = vmatprep.subr.bf16.mxu0 0
      %689 = vmatpush1.bf16.msra.mxu0 0
      %690 = vmatprep.subr.bf16.mxu0 0
      %691 = vmatpush1.bf16.msra.mxu0 0
      %692 = vmatprep.subr.bf16.mxu0 0
      %693 = vmatpush1.bf16.msra.mxu0 0
      %694 = vmatprep.subr.bf16.mxu0 0
      %695 = vmatpush1.bf16.msra.mxu0 0
      %696 = vmatprep.subr.bf16.mxu0 0
      %697 = vmatpush1.bf16.msra.mxu0 0
      %698 = vmatprep.subr.bf16.mxu0 0
      %699 = vmatpush1.bf16.msra.mxu0 0
      %700 = vmatprep.subr.bf16.mxu0 0
      %701 = vmatpush1.bf16.msra.mxu0 0
      %702 = vmatprep.mubr.bf16.mxu0 0
      %703 = vmatmul.mubr.bf16.gmra.mrb[0].mxu0 %v668
      %v704 = vpop.f32.mrb[0].mxu0
      %v705 = vadd.f32 0.0, %v704
      %v706 = vpop.f32.mrb[0].mxu0
      %v707 = vpop.f32.mrb[0].mxu0
      %v708 = vadd.f32 0.0, %v707
      %v709 = vpop.f32.mrb[0].mxu0
      %710 = vdwg.mxu0
      %712 = vrot.lane.b32.xlu0 %v593, 112
      %v713 = vpop.permute.xlu0 %712
      %715 = vrot.lane.b32.xlu0 %v594, 112
      %v716 = vpop.permute.xlu0 %715
      %v718 = vsel %vm595, %v713, 0
      %v721 = vsel %vm595, %v716, 0
      %723 = vmatprep.subr.bf16.mxu0 0
      %724 = vmatpush1.bf16.xpose.msra.mxu0 %v721
      %725 = vmatprep.subr.bf16.mxu0 0
      %726 = vmatpush1.bf16.xpose.msra.mxu0 0
      %727 = vmatprep.subr.bf16.mxu0 0
      %728 = vmatpush1.bf16.xpose.msra.mxu0 0
      %729 = vmatprep.subr.bf16.mxu0 0
      %730 = vmatpush1.bf16.xpose.msra.mxu0 0
      %731 = vmatprep.subr.bf16.mxu0 0
      %732 = vmatpush1.bf16.xpose.msra.mxu0 0
      %733 = vmatprep.subr.bf16.mxu0 0
      %734 = vmatpush1.bf16.xpose.msra.mxu0 0
      %735 = vmatprep.subr.bf16.mxu0 0
      %736 = vmatpush1.bf16.xpose.msra.mxu0 0
      %737 = vmatprep.subr.bf16.mxu0 0
      %738 = vmatpush1.bf16.xpose.msra.mxu0 0
      %739 = vmatprep.subr.bf16.mxu0 0
      %740 = vmatpush1.bf16.xpose.msra.mxu0 0
      %741 = vmatprep.subr.bf16.mxu0 0
      %742 = vmatpush1.bf16.xpose.msra.mxu0 0
      %743 = vmatprep.subr.bf16.mxu0 0
      %744 = vmatpush1.bf16.xpose.msra.mxu0 0
      %745 = vmatprep.subr.bf16.mxu0 0
      %746 = vmatpush1.bf16.xpose.msra.mxu0 0
      %747 = vmatprep.subr.bf16.mxu0 0
      %748 = vmatpush1.bf16.xpose.msra.mxu0 0
      %749 = vmatprep.subr.bf16.mxu0 0
      %750 = vmatpush1.bf16.xpose.msra.mxu0 0
      %751 = vmatprep.subr.bf16.mxu0 0
      %752 = vmatpush1.bf16.xpose.msra.mxu0 0
      %753 = vmatprep.subr.bf16.mxu0 0
      %754 = vmatpush1.bf16.xpose.msra.mxu0 0
      %755 = vmatprep.mubr.bf16.mxu0 0
      %756 = vmatmul.mubr.bf16.gmra.mrb[0].mxu0 %v718
      %v757 = vpop.f32.mrb[0].mxu0
      %v758 = vadd.f32 0.0, %v757
      %v759 = vpop.f32.mrb[0].mxu0
      %v760 = vpop.f32.mrb[0].mxu0
      %v761 = vadd.f32 0.0, %v760
      %v762 = vpop.f32.mrb[0].mxu0
      %763 = vdwg.mxu0
      %v764 = vsel %vm595, %v758, -inf
      %765 = vmax.xlane.f32.xlu0 %v764
      %v766 = vpop.xlane.xlu0 %765
      %v767 = vsel %vm595, %v761, -inf
      %768 = vmax.xlane.f32.xlu0 %v767
      %v769 = vpop.xlane.xlu0 %768
      %v770 = vsub.f32 %v758, %v766
      %v771 = vsub.f32 %v761, %v769
      %v772 = vmul.f32 %v770, 1.442695
      %v773 = vpow.pop %v772
      %v774 = vmul.f32 %v771, 1.442695
      %v775 = vpow.pop %v774
      %v776 = vsel %vm595, %v773, 0.0
      %777 = vadd.xlane.f32.xlu0 %v776
      %v778 = vpop.xlane.xlu0 %777
      %v779 = vsel %vm595, %v775, 0.0
      %780 = vadd.xlane.f32.xlu0 %v779
      %v781 = vpop.xlane.xlu0 %780
      %v782 = vrcp.pop %v778
      %v783 = vrcp.pop %v781
      %v784 = vmul.f32 %v773, %v782
      %v785 = vmul.f32 %v775, %v783
      %v786 = vpack.c.bf16 %v785, %v784
      %788 = vrot.lane.b32.xlu0 %v666, 112
      %v789 = vpop.permute.xlu0 %788
      %v792 = vsel %vm595, %v786, 0
      %794 = vmatprep.subr.bf16.mxu0 0
      %795 = vmatpush1.bf16.msra.mxu0 %v789
      %796 = vmatprep.subr.bf16.mxu0 0
      %797 = vmatpush1.bf16.msra.mxu0 0
      %798 = vmatprep.subr.bf16.mxu0 0
      %799 = vmatpush1.bf16.msra.mxu0 0
      %800 = vmatprep.subr.bf16.mxu0 0
      %801 = vmatpush1.bf16.msra.mxu0 0
      %802 = vmatprep.subr.bf16.mxu0 0
      %803 = vmatpush1.bf16.msra.mxu0 0
      %804 = vmatprep.subr.bf16.mxu0 0
      %805 = vmatpush1.bf16.msra.mxu0 0
      %806 = vmatprep.subr.bf16.mxu0 0
      %807 = vmatpush1.bf16.msra.mxu0 0
      %808 = vmatprep.subr.bf16.mxu0 0
      %809 = vmatpush1.bf16.msra.mxu0 0
      %810 = vmatprep.subr.bf16.mxu0 0
      %811 = vmatpush1.bf16.msra.mxu0 0
      %812 = vmatprep.subr.bf16.mxu0 0
      %813 = vmatpush1.bf16.msra.mxu0 0
      %814 = vmatprep.subr.bf16.mxu0 0
      %815 = vmatpush1.bf16.msra.mxu0 0
      %816 = vmatprep.subr.bf16.mxu0 0
      %817 = vmatpush1.bf16.msra.mxu0 0
      %818 = vmatprep.subr.bf16.mxu0 0
      %819 = vmatpush1.bf16.msra.mxu0 0
      %820 = vmatprep.subr.bf16.mxu0 0
      %821 = vmatpush1.bf16.msra.mxu0 0
      %822 = vmatprep.subr.bf16.mxu0 0
      %823 = vmatpush1.bf16.msra.mxu0 0
      %824 = vmatprep.subr.bf16.mxu0 0
      %825 = vmatpush1.bf16.msra.mxu0 0
      %826 = vmatprep.mubr.bf16.mxu0 0
      %827 = vmatmul.mubr.bf16.gmra.mrb[0].mxu0 %v792
      %v828 = vpop.f32.mrb[0].mxu0
      %v829 = vadd.f32 0.0, %v828
      %v830 = vpop.f32.mrb[0].mxu0
      %v831 = vpop.f32.mrb[0].mxu0
      %v832 = vadd.f32 0.0, %v831
      %v833 = vpop.f32.mrb[0].mxu0
      %834 = vdwg.mxu0
      %835 = vrot.lane.b32.xlu0 %v593, 96
      %v836 = vpop.permute.xlu0 %835
      %837 = vrot.lane.b32.xlu0 %v594, 96
      %v838 = vpop.permute.xlu0 %837
      %v840 = vsel %vm595, %v836, 0
      %v843 = vsel %vm595, %v838, 0
      %845 = vmatprep.subr.bf16.mxu0 0
      %846 = vmatpush1.bf16.xpose.msra.mxu0 %v843
      %847 = vmatprep.subr.bf16.mxu0 0
      %848 = vmatpush1.bf16.xpose.msra.mxu0 0
      %849 = vmatprep.subr.bf16.mxu0 0
      %850 = vmatpush1.bf16.xpose.msra.mxu0 0
      %851 = vmatprep.subr.bf16.mxu0 0
      %852 = vmatpush1.bf16.xpose.msra.mxu0 0
      %853 = vmatprep.subr.bf16.mxu0 0
      %854 = vmatpush1.bf16.xpose.msra.mxu0 0
      %855 = vmatprep.subr.bf16.mxu0 0
      %856 = vmatpush1.bf16.xpose.msra.mxu0 0
      %857 = vmatprep.subr.bf16.mxu0 0
      %858 = vmatpush1.bf16.xpose.msra.mxu0 0
      %859 = vmatprep.subr.bf16.mxu0 0
      %860 = vmatpush1.bf16.xpose.msra.mxu0 0
      %861 = vmatprep.subr.bf16.mxu0 0
      %862 = vmatpush1.bf16.xpose.msra.mxu0 0
      %863 = vmatprep.subr.bf16.mxu0 0
      %864 = vmatpush1.bf16.xpose.msra.mxu0 0
      %865 = vmatprep.subr.bf16.mxu0 0
      %866 = vmatpush1.bf16.xpose.msra.mxu0 0
      %867 = vmatprep.subr.bf16.mxu0 0
      %868 = vmatpush1.bf16.xpose.msra.mxu0 0
      %869 = vmatprep.subr.bf16.mxu0 0
      %870 = vmatpush1.bf16.xpose.msra.mxu0 0
      %871 = vmatprep.subr.bf16.mxu0 0
      %872 = vmatpush1.bf16.xpose.msra.mxu0 0
      %873 = vmatprep.subr.bf16.mxu0 0
      %874 = vmatpush1.bf16.xpose.msra.mxu0 0
      %875 = vmatprep.subr.bf16.mxu0 0
      %876 = vmatpush1.bf16.xpose.msra.mxu0 0
      %877 = vmatprep.mubr.bf16.mxu0 0
      %878 = vmatmul.mubr.bf16.gmra.mrb[0].mxu0 %v840
      %v879 = vpop.f32.mrb[0].mxu0
      %v880 = vadd.f32 0.0, %v879
      %v881 = vpop.f32.mrb[0].mxu0
      %v882 = vpop.f32.mrb[0].mxu0
      %v883 = vadd.f32 0.0, %v882
      %v884 = vpop.f32.mrb[0].mxu0
      %885 = vdwg.mxu0
      %v886 = vsel %vm595, %v880, -inf
      %887 = vmax.xlane.f32.xlu0 %v886
      %v888 = vpop.xlane.xlu0 %887
      %v889 = vsel %vm595, %v883, -inf
      %890 = vmax.xlane.f32.xlu0 %v889
      %v891 = vpop.xlane.xlu0 %890
      %v892 = vsub.f32 %v880, %v888
      %v893 = vsub.f32 %v883, %v891
      %v894 = vmul.f32 %v892, 1.442695
      %v895 = vpow.pop %v894
      %v896 = vmul.f32 %v893, 1.442695
      %v897 = vpow.pop %v896
      %v898 = vsel %vm595, %v895, 0.0
      %899 = vadd.xlane.f32.xlu0 %v898
      %v900 = vpop.xlane.xlu0 %899
      %v901 = vsel %vm595, %v897, 0.0
      %902 = vadd.xlane.f32.xlu0 %v901
      %v903 = vpop.xlane.xlu0 %902
      %v904 = vrcp.pop %v900
      %v905 = vrcp.pop %v903
      %v906 = vmul.f32 %v895, %v904
      %v907 = vmul.f32 %v897, %v905
      %v908 = vpack.c.bf16 %v907, %v906
      %909 = vrot.lane.b32.xlu0 %v666, 96
      %v910 = vpop.permute.xlu0 %909
      %v913 = vsel %vm595, %v908, 0
      %915 = vmatprep.subr.bf16.mxu0 0
      %916 = vmatpush1.bf16.msra.mxu0 %v910
      %917 = vmatprep.subr.bf16.mxu0 0
      %918 = vmatpush1.bf16.msra.mxu0 0
      %919 = vmatprep.subr.bf16.mxu0 0
      %920 = vmatpush1.bf16.msra.mxu0 0
      %921 = vmatprep.subr.bf16.mxu0 0
      %922 = vmatpush1.bf16.msra.mxu0 0
      %923 = vmatprep.subr.bf16.mxu0 0
      %924 = vmatpush1.bf16.msra.mxu0 0
      %925 = vmatprep.subr.bf16.mxu0 0
      %926 = vmatpush1.bf16.msra.mxu0 0
      %927 = vmatprep.subr.bf16.mxu0 0
      %928 = vmatpush1.bf16.msra.mxu0 0
      %929 = vmatprep.subr.bf16.mxu0 0
      %930 = vmatpush1.bf16.msra.mxu0 0
      %931 = vmatprep.subr.bf16.mxu0 0
      %932 = vmatpush1.bf16.msra.mxu0 0
      %933 = vmatprep.subr.bf16.mxu0 0
      %934 = vmatpush1.bf16.msra.mxu0 0
      %935 = vmatprep.subr.bf16.mxu0 0
      %936 = vmatpush1.bf16.msra.mxu0 0
      %937 = vmatprep.subr.bf16.mxu0 0
      %938 = vmatpush1.bf16.msra.mxu0 0
      %939 = vmatprep.subr.bf16.mxu0 0
      %940 = vmatpush1.bf16.msra.mxu0 0
      %941 = vmatprep.subr.bf16.mxu0 0
      %942 = vmatpush1.bf16.msra.mxu0 0
      %943 = vmatprep.subr.bf16.mxu0 0
      %944 = vmatpush1.bf16.msra.mxu0 0
      %945 = vmatprep.subr.bf16.mxu0 0
      %946 = vmatpush1.bf16.msra.mxu0 0
      %947 = vmatprep.mubr.bf16.mxu0 0
      %948 = vmatmul.mubr.bf16.gmra.mrb[0].mxu0 %v913
      %v949 = vpop.f32.mrb[0].mxu0
      %v950 = vadd.f32 0.0, %v949
      %v951 = vpop.f32.mrb[0].mxu0
      %v952 = vpop.f32.mrb[0].mxu0
      %v953 = vadd.f32 0.0, %v952
      %v954 = vpop.f32.mrb[0].mxu0
      %955 = vdwg.mxu0
      %956 = vrot.lane.b32.xlu0 %v593, 80
      %v957 = vpop.permute.xlu0 %956
      %958 = vrot.lane.b32.xlu0 %v594, 80
      %v959 = vpop.permute.xlu0 %958
      %v961 = vsel %vm595, %v957, 0
      %v964 = vsel %vm595, %v959, 0
      %966 = vmatprep.subr.bf16.mxu0 0
      %967 = vmatpush1.bf16.xpose.msra.mxu0 %v964
      %968 = vmatprep.subr.bf16.mxu0 0
      %969 = vmatpush1.bf16.xpose.msra.mxu0 0
      %970 = vmatprep.subr.bf16.mxu0 0
      %971 = vmatpush1.bf16.xpose.msra.mxu0 0
      %972 = vmatprep.subr.bf16.mxu0 0
      %973 = vmatpush1.bf16.xpose.msra.mxu0 0
      %974 = vmatprep.subr.bf16.mxu0 0
      %975 = vmatpush1.bf16.xpose.msra.mxu0 0
      %976 = vmatprep.subr.bf16.mxu0 0
      %977 = vmatpush1.bf16.xpose.msra.mxu0 0
      %978 = vmatprep.subr.bf16.mxu0 0
      %979 = vmatpush1.bf16.xpose.msra.mxu0 0
      %980 = vmatprep.subr.bf16.mxu0 0
      %981 = vmatpush1.bf16.xpose.msra.mxu0 0
      %982 = vmatprep.subr.bf16.mxu0 0
      %983 = vmatpush1.bf16.xpose.msra.mxu0 0
      %984 = vmatprep.subr.bf16.mxu0 0
      %985 = vmatpush1.bf16.xpose.msra.mxu0 0
      %986 = vmatprep.subr.bf16.mxu0 0
      %987 = vmatpush1.bf16.xpose.msra.mxu0 0
      %988 = vmatprep.subr.bf16.mxu0 0
      %989 = vmatpush1.bf16.xpose.msra.mxu0 0
      %990 = vmatprep.subr.bf16.mxu0 0
      %991 = vmatpush1.bf16.xpose.msra.mxu0 0
      %992 = vmatprep.subr.bf16.mxu0 0
      %993 = vmatpush1.bf16.xpose.msra.mxu0 0
      %994 = vmatprep.subr.bf16.mxu0 0
      %995 = vmatpush1.bf16.xpose.msra.mxu0 0
      %996 = vmatprep.subr.bf16.mxu0 0
      %997 = vmatpush1.bf16.xpose.msra.mxu0 0
      %998 = vmatprep.mubr.bf16.mxu0 0
      %999 = vmatmul.mubr.bf16.gmra.mrb[0].mxu0 %v961
      %v1000 = vpop.f32.mrb[0].mxu0
      %v1001 = vadd.f32 0.0, %v1000
      %v1002 = vpop.f32.mrb[0].mxu0
      %v1003 = vpop.f32.mrb[0].mxu0
      %v1004 = vadd.f32 0.0, %v1003
      %v1005 = vpop.f32.mrb[0].mxu0
      %1006 = vdwg.mxu0
      %v1007 = vsel %vm595, %v1001, -inf
      %1008 = vmax.xlane.f32.xlu0 %v1007
      %v1009 = vpop.xlane.xlu0 %1008
      %v1010 = vsel %vm595, %v1004, -inf
      %1011 = vmax.xlane.f32.xlu0 %v1010
      %v1012 = vpop.xlane.xlu0 %1011
      %v1013 = vsub.f32 %v1001, %v1009
      %v1014 = vsub.f32 %v1004, %v1012
      %v1015 = vmul.f32 %v1013, 1.442695
      %v1016 = vpow.pop %v1015
      %v1017 = vmul.f32 %v1014, 1.442695
      %v1018 = vpow.pop %v1017
      %v1019 = vsel %vm595, %v1016, 0.0
      %1020 = vadd.xlane.f32.xlu0 %v1019
      %v1021 = vpop.xlane.xlu0 %1020
      %v1022 = vsel %vm595, %v1018, 0.0
      %1023 = vadd.xlane.f32.xlu0 %v1022
      %v1024 = vpop.xlane.xlu0 %1023
      %v1025 = vrcp.pop %v1021
      %v1026 = vrcp.pop %v1024
      %v1027 = vmul.f32 %v1016, %v1025
      %v1028 = vmul.f32 %v1018, %v1026
      %v1029 = vpack.c.bf16 %v1028, %v1027
      %1030 = vrot.lane.b32.xlu0 %v666, 80
      %v1031 = vpop.permute.xlu0 %1030
      %v1034 = vsel %vm595, %v1029, 0
      %1036 = vmatprep.subr.bf16.mxu0 0
      %1037 = vmatpush1.bf16.msra.mxu0 %v1031
      %1038 = vmatprep.subr.bf16.mxu0 0
      %1039 = vmatpush1.bf16.msra.mxu0 0
      %1040 = vmatprep.subr.bf16.mxu0 0
      %1041 = vmatpush1.bf16.msra.mxu0 0
      %1042 = vmatprep.subr.bf16.mxu0 0
      %1043 = vmatpush1.bf16.msra.mxu0 0
      %1044 = vmatprep.subr.bf16.mxu0 0
      %1045 = vmatpush1.bf16.msra.mxu0 0
      %1046 = vmatprep.subr.bf16.mxu0 0
      %1047 = vmatpush1.bf16.msra.mxu0 0
      %1048 = vmatprep.subr.bf16.mxu0 0
      %1049 = vmatpush1.bf16.msra.mxu0 0
      %1050 = vmatprep.subr.bf16.mxu0 0
      %1051 = vmatpush1.bf16.msra.mxu0 0
      %1052 = vmatprep.subr.bf16.mxu0 0
      %1053 = vmatpush1.bf16.msra.mxu0 0
      %1054 = vmatprep.subr.bf16.mxu0 0
      %1055 = vmatpush1.bf16.msra.mxu0 0
      %1056 = vmatprep.subr.bf16.mxu0 0
      %1057 = vmatpush1.bf16.msra.mxu0 0
      %1058 = vmatprep.subr.bf16.mxu0 0
      %1059 = vmatpush1.bf16.msra.mxu0 0
      %1060 = vmatprep.subr.bf16.mxu0 0
      %1061 = vmatpush1.bf16.msra.mxu0 0
      %1062 = vmatprep.subr.bf16.mxu0 0
      %1063 = vmatpush1.bf16.msra.mxu0 0
      %1064 = vmatprep.subr.bf16.mxu0 0
      %1065 = vmatpush1.bf16.msra.mxu0 0
      %1066 = vmatprep.subr.bf16.mxu0 0
      %1067 = vmatpush1.bf16.msra.mxu0 0
      %1068 = vmatprep.mubr.bf16.mxu0 0
      %1069 = vmatmul.mubr.bf16.gmra.mrb[0].mxu0 %v1034
      %v1070 = vpop.f32.mrb[0].mxu0
      %v1071 = vadd.f32 0.0, %v1070
      %v1072 = vpop.f32.mrb[0].mxu0
      %v1073 = vpop.f32.mrb[0].mxu0
      %v1074 = vadd.f32 0.0, %v1073
      %v1075 = vpop.f32.mrb[0].mxu0
      %1076 = vdwg.mxu0
      %1077 = vrot.lane.b32.xlu0 %v593, 64
      %v1078 = vpop.permute.xlu0 %1077
      %1079 = vrot.lane.b32.xlu0 %v594, 64
      %v1080 = vpop.permute.xlu0 %1079
      %v1082 = vsel %vm595, %v1078, 0
      %v1085 = vsel %vm595, %v1080, 0
      %1087 = vmatprep.subr.bf16.mxu0 0
      %1088 = vmatpush1.bf16.xpose.msra.mxu0 %v1085
      %1089 = vmatprep.subr.bf16.mxu0 0
      %1090 = vmatpush1.bf16.xpose.msra.mxu0 0
      %1091 = vmatprep.subr.bf16.mxu0 0
      %1092 = vmatpush1.bf16.xpose.msra.mxu0 0
      %1093 = vmatprep.subr.bf16.mxu0 0
      %1094 = vmatpush1.bf16.xpose.msra.mxu0 0
      %1095 = vmatprep.subr.bf16.mxu0 0
      %1096 = vmatpush1.bf16.xpose.msra.mxu0 0
      %1097 = vmatprep.subr.bf16.mxu0 0
      %1098 = vmatpush1.bf16.xpose.msra.mxu0 0
      %1099 = vmatprep.subr.bf16.mxu0 0
      %1100 = vmatpush1.bf16.xpose.msra.mxu0 0
      %1101 = vmatprep.subr.bf16.mxu0 0
      %1102 = vmatpush1.bf16.xpose.msra.mxu0 0
      %1103 = vmatprep.subr.bf16.mxu0 0
      %1104 = vmatpush1.bf16.xpose.msra.mxu0 0
      %1105 = vmatprep.subr.bf16.mxu0 0
      %1106 = vmatpush1.bf16.xpose.msra.mxu0 0
      %1107 = vmatprep.subr.bf16.mxu0 0
      %1108 = vmatpush1.bf16.xpose.msra.mxu0 0
      %1109 = vmatprep.subr.bf16.mxu0 0
      %1110 = vmatpush1.bf16.xpose.msra.mxu0 0
      %1111 = vmatprep.subr.bf16.mxu0 0
      %1112 = vmatpush1.bf16.xpose.msra.mxu0 0
      %1113 = vmatprep.subr.bf16.mxu0 0
      %1114 = vmatpush1.bf16.xpose.msra.mxu0 0
      %1115 = vmatprep.subr.bf16.mxu0 0
      %1116 = vmatpush1.bf16.xpose.msra.mxu0 0
      %1117 = vmatprep.subr.bf16.mxu0 0
      %1118 = vmatpush1.bf16.xpose.msra.mxu0 0
      %1119 = vmatprep.mubr.bf16.mxu0 0
      %1120 = vmatmul.mubr.bf16.gmra.mrb[0].mxu0 %v1082
      %v1121 = vpop.f32.mrb[0].mxu0
      %v1122 = vadd.f32 0.0, %v1121
      %v1123 = vpop.f32.mrb[0].mxu0
      %v1124 = vpop.f32.mrb[0].mxu0
      %v1125 = vadd.f32 0.0, %v1124
      %v1126 = vpop.f32.mrb[0].mxu0
      %1127 = vdwg.mxu0
      %v1128 = vsel %vm595, %v1122, -inf
      %1129 = vmax.xlane.f32.xlu0 %v1128
      %v1130 = vpop.xlane.xlu0 %1129
      %v1131 = vsel %vm595, %v1125, -inf
      %1132 = vmax.xlane.f32.xlu0 %v1131
      %v1133 = vpop.xlane.xlu0 %1132
      %v1134 = vsub.f32 %v1122, %v1130
      %v1135 = vsub.f32 %v1125, %v1133
      %v1136 = vmul.f32 %v1134, 1.442695
      %v1137 = vpow.pop %v1136
      %v1138 = vmul.f32 %v1135, 1.442695
      %v1139 = vpow.pop %v1138
      %v1140 = vsel %vm595, %v1137, 0.0
      %1141 = vadd.xlane.f32.xlu0 %v1140
      %v1142 = vpop.xlane.xlu0 %1141
      %v1143 = vsel %vm595, %v1139, 0.0
      %1144 = vadd.xlane.f32.xlu0 %v1143
      %v1145 = vpop.xlane.xlu0 %1144
      %v1146 = vrcp.pop %v1142
      %v1147 = vrcp.pop %v1145
      %v1148 = vmul.f32 %v1137, %v1146
      %v1149 = vmul.f32 %v1139, %v1147
      %v1150 = vpack.c.bf16 %v1149, %v1148
      %1151 = vrot.lane.b32.xlu0 %v666, 64
      %v1152 = vpop.permute.xlu0 %1151
      %v1155 = vsel %vm595, %v1150, 0
      %1157 = vmatprep.subr.bf16.mxu0 0
      %1158 = vmatpush1.bf16.msra.mxu0 %v1152
      %1159 = vmatprep.subr.bf16.mxu0 0
      %1160 = vmatpush1.bf16.msra.mxu0 0
      %1161 = vmatprep.subr.bf16.mxu0 0
      %1162 = vmatpush1.bf16.msra.mxu0 0
      %1163 = vmatprep.subr.bf16.mxu0 0
      %1164 = vmatpush1.bf16.msra.mxu0 0
      %1165 = vmatprep.subr.bf16.mxu0 0
      %1166 = vmatpush1.bf16.msra.mxu0 0
      %1167 = vmatprep.subr.bf16.mxu0 0
      %1168 = vmatpush1.bf16.msra.mxu0 0
      %1169 = vmatprep.subr.bf16.mxu0 0
      %1170 = vmatpush1.bf16.msra.mxu0 0
      %1171 = vmatprep.subr.bf16.mxu0 0
      %1172 = vmatpush1.bf16.msra.mxu0 0
      %1173 = vmatprep.subr.bf16.mxu0 0
      %1174 = vmatpush1.bf16.msra.mxu0 0
      %1175 = vmatprep.subr.bf16.mxu0 0
      %1176 = vmatpush1.bf16.msra.mxu0 0
      %1177 = vmatprep.subr.bf16.mxu0 0
      %1178 = vmatpush1.bf16.msra.mxu0 0
      %1179 = vmatprep.subr.bf16.mxu0 0
      %1180 = vmatpush1.bf16.msra.mxu0 0
      %1181 = vmatprep.subr.bf16.mxu0 0
      %1182 = vmatpush1.bf16.msra.mxu0 0
      %1183 = vmatprep.subr.bf16.mxu0 0
      %1184 = vmatpush1.bf16.msra.mxu0 0
      %1185 = vmatprep.subr.bf16.mxu0 0
      %1186 = vmatpush1.bf16.msra.mxu0 0
      %1187 = vmatprep.subr.bf16.mxu0 0
      %1188 = vmatpush1.bf16.msra.mxu0 0
      %1189 = vmatprep.mubr.bf16.mxu0 0
      %1190 = vmatmul.mubr.bf16.gmra.mrb[0].mxu0 %v1155
      %v1191 = vpop.f32.mrb[0].mxu0
      %v1192 = vadd.f32 0.0, %v1191
      %v1193 = vpop.f32.mrb[0].mxu0
      %v1194 = vpop.f32.mrb[0].mxu0
      %v1195 = vadd.f32 0.0, %v1194
      %v1196 = vpop.f32.mrb[0].mxu0
      %1197 = vdwg.mxu0
      %1198 = vrot.lane.b32.xlu0 %v593, 48
      %v1199 = vpop.permute.xlu0 %1198
      %1200 = vrot.lane.b32.xlu0 %v594, 48
      %v1201 = vpop.permute.xlu0 %1200
      %v1203 = vsel %vm595, %v1199, 0
      %v1206 = vsel %vm595, %v1201, 0
      %1208 = vmatprep.subr.bf16.mxu0 0
      %1209 = vmatpush1.bf16.xpose.msra.mxu0 %v1206
      %1210 = vmatprep.subr.bf16.mxu0 0
      %1211 = vmatpush1.bf16.xpose.msra.mxu0 0
      %1212 = vmatprep.subr.bf16.mxu0 0
      %1213 = vmatpush1.bf16.xpose.msra.mxu0 0
      %1214 = vmatprep.subr.bf16.mxu0 0
      %1215 = vmatpush1.bf16.xpose.msra.mxu0 0
      %1216 = vmatprep.subr.bf16.mxu0 0
      %1217 = vmatpush1.bf16.xpose.msra.mxu0 0
      %1218 = vmatprep.subr.bf16.mxu0 0
      %1219 = vmatpush1.bf16.xpose.msra.mxu0 0
      %1220 = vmatprep.subr.bf16.mxu0 0
      %1221 = vmatpush1.bf16.xpose.msra.mxu0 0
      %1222 = vmatprep.subr.bf16.mxu0 0
      %1223 = vmatpush1.bf16.xpose.msra.mxu0 0
      %1224 = vmatprep.subr.bf16.mxu0 0
      %1225 = vmatpush1.bf16.xpose.msra.mxu0 0
      %1226 = vmatprep.subr.bf16.mxu0 0
      %1227 = vmatpush1.bf16.xpose.msra.mxu0 0
      %1228 = vmatprep.subr.bf16.mxu0 0
      %1229 = vmatpush1.bf16.xpose.msra.mxu0 0
      %1230 = vmatprep.subr.bf16.mxu0 0
      %1231 = vmatpush1.bf16.xpose.msra.mxu0 0
      %1232 = vmatprep.subr.bf16.mxu0 0
      %1233 = vmatpush1.bf16.xpose.msra.mxu0 0
      %1234 = vmatprep.subr.bf16.mxu0 0
      %1235 = vmatpush1.bf16.xpose.msra.mxu0 0
      %1236 = vmatprep.subr.bf16.mxu0 0
      %1237 = vmatpush1.bf16.xpose.msra.mxu0 0
      %1238 = vmatprep.subr.bf16.mxu0 0
      %1239 = vmatpush1.bf16.xpose.msra.mxu0 0
      %1240 = vmatprep.mubr.bf16.mxu0 0
      %1241 = vmatmul.mubr.bf16.gmra.mrb[0].mxu0 %v1203
      %v1242 = vpop.f32.mrb[0].mxu0
      %v1243 = vadd.f32 0.0, %v1242
      %v1244 = vpop.f32.mrb[0].mxu0
      %v1245 = vpop.f32.mrb[0].mxu0
      %v1246 = vadd.f32 0.0, %v1245
      %v1247 = vpop.f32.mrb[0].mxu0
      %1248 = vdwg.mxu0
      %v1249 = vsel %vm595, %v1243, -inf
      %1250 = vmax.xlane.f32.xlu0 %v1249
      %v1251 = vpop.xlane.xlu0 %1250
      %v1252 = vsel %vm595, %v1246, -inf
      %1253 = vmax.xlane.f32.xlu0 %v1252
      %v1254 = vpop.xlane.xlu0 %1253
      %v1255 = vsub.f32 %v1243, %v1251
      %v1256 = vsub.f32 %v1246, %v1254
      %v1257 = vmul.f32 %v1255, 1.442695
      %v1258 = vpow.pop %v1257
      %v1259 = vmul.f32 %v1256, 1.442695
      %v1260 = vpow.pop %v1259
      %v1261 = vsel %vm595, %v1258, 0.0
      %1262 = vadd.xlane.f32.xlu0 %v1261
      %v1263 = vpop.xlane.xlu0 %1262
      %v1264 = vsel %vm595, %v1260, 0.0
      %1265 = vadd.xlane.f32.xlu0 %v1264
      %v1266 = vpop.xlane.xlu0 %1265
      %v1267 = vrcp.pop %v1263
      %v1268 = vrcp.pop %v1266
      %v1269 = vmul.f32 %v1258, %v1267
      %v1270 = vmul.f32 %v1260, %v1268
      %v1271 = vpack.c.bf16 %v1270, %v1269
      %1272 = vrot.lane.b32.xlu0 %v666, 48
      %v1273 = vpop.permute.xlu0 %1272
      %v1276 = vsel %vm595, %v1271, 0
      %1278 = vmatprep.subr.bf16.mxu0 0
      %1279 = vmatpush1.bf16.msra.mxu0 %v1273
      %1280 = vmatprep.subr.bf16.mxu0 0
      %1281 = vmatpush1.bf16.msra.mxu0 0
      %1282 = vmatprep.subr.bf16.mxu0 0
      %1283 = vmatpush1.bf16.msra.mxu0 0
      %1284 = vmatprep.subr.bf16.mxu0 0
      %1285 = vmatpush1.bf16.msra.mxu0 0
      %1286 = vmatprep.subr.bf16.mxu0 0
      %1287 = vmatpush1.bf16.msra.mxu0 0
      %1288 = vmatprep.subr.bf16.mxu0 0
      %1289 = vmatpush1.bf16.msra.mxu0 0
      %1290 = vmatprep.subr.bf16.mxu0 0
      %1291 = vmatpush1.bf16.msra.mxu0 0
      %1292 = vmatprep.subr.bf16.mxu0 0
      %1293 = vmatpush1.bf16.msra.mxu0 0
      %1294 = vmatprep.subr.bf16.mxu0 0
      %1295 = vmatpush1.bf16.msra.mxu0 0
      %1296 = vmatprep.subr.bf16.mxu0 0
      %1297 = vmatpush1.bf16.msra.mxu0 0
      %1298 = vmatprep.subr.bf16.mxu0 0
      %1299 = vmatpush1.bf16.msra.mxu0 0
      %1300 = vmatprep.subr.bf16.mxu0 0
      %1301 = vmatpush1.bf16.msra.mxu0 0
      %1302 = vmatprep.subr.bf16.mxu0 0
      %1303 = vmatpush1.bf16.msra.mxu0 0
      %1304 = vmatprep.subr.bf16.mxu0 0
      %1305 = vmatpush1.bf16.msra.mxu0 0
      %1306 = vmatprep.subr.bf16.mxu0 0
      %1307 = vmatpush1.bf16.msra.mxu0 0
      %1308 = vmatprep.subr.bf16.mxu0 0
      %1309 = vmatpush1.bf16.msra.mxu0 0
      %1310 = vmatprep.mubr.bf16.mxu0 0
      %1311 = vmatmul.mubr.bf16.gmra.mrb[0].mxu0 %v1276
      %v1312 = vpop.f32.mrb[0].mxu0
      %v1313 = vadd.f32 0.0, %v1312
      %v1314 = vpop.f32.mrb[0].mxu0
      %v1315 = vpop.f32.mrb[0].mxu0
      %v1316 = vadd.f32 0.0, %v1315
      %v1317 = vpop.f32.mrb[0].mxu0
      %1318 = vdwg.mxu0
      %1319 = vrot.lane.b32.xlu0 %v593, 32
      %v1320 = vpop.permute.xlu0 %1319
      %1321 = vrot.lane.b32.xlu0 %v594, 32
      %v1322 = vpop.permute.xlu0 %1321
      %v1324 = vsel %vm595, %v1320, 0
      %v1327 = vsel %vm595, %v1322, 0
      %1329 = vmatprep.subr.bf16.mxu0 0
      %1330 = vmatpush1.bf16.xpose.msra.mxu0 %v1327
      %1331 = vmatprep.subr.bf16.mxu0 0
      %1332 = vmatpush1.bf16.xpose.msra.mxu0 0
      %1333 = vmatprep.subr.bf16.mxu0 0
      %1334 = vmatpush1.bf16.xpose.msra.mxu0 0
      %1335 = vmatprep.subr.bf16.mxu0 0
      %1336 = vmatpush1.bf16.xpose.msra.mxu0 0
      %1337 = vmatprep.subr.bf16.mxu0 0
      %1338 = vmatpush1.bf16.xpose.msra.mxu0 0
      %1339 = vmatprep.subr.bf16.mxu0 0
      %1340 = vmatpush1.bf16.xpose.msra.mxu0 0
      %1341 = vmatprep.subr.bf16.mxu0 0
      %1342 = vmatpush1.bf16.xpose.msra.mxu0 0
      %1343 = vmatprep.subr.bf16.mxu0 0
      %1344 = vmatpush1.bf16.xpose.msra.mxu0 0
      %1345 = vmatprep.subr.bf16.mxu0 0
      %1346 = vmatpush1.bf16.xpose.msra.mxu0 0
      %1347 = vmatprep.subr.bf16.mxu0 0
      %1348 = vmatpush1.bf16.xpose.msra.mxu0 0
      %1349 = vmatprep.subr.bf16.mxu0 0
      %1350 = vmatpush1.bf16.xpose.msra.mxu0 0
      %1351 = vmatprep.subr.bf16.mxu0 0
      %1352 = vmatpush1.bf16.xpose.msra.mxu0 0
      %1353 = vmatprep.subr.bf16.mxu0 0
      %1354 = vmatpush1.bf16.xpose.msra.mxu0 0
      %1355 = vmatprep.subr.bf16.mxu0 0
      %1356 = vmatpush1.bf16.xpose.msra.mxu0 0
      %1357 = vmatprep.subr.bf16.mxu0 0
      %1358 = vmatpush1.bf16.xpose.msra.mxu0 0
      %1359 = vmatprep.subr.bf16.mxu0 0
      %1360 = vmatpush1.bf16.xpose.msra.mxu0 0
      %1361 = vmatprep.mubr.bf16.mxu0 0
      %1362 = vmatmul.mubr.bf16.gmra.mrb[0].mxu0 %v1324
      %v1363 = vpop.f32.mrb[0].mxu0
      %v1364 = vadd.f32 0.0, %v1363
      %v1365 = vpop.f32.mrb[0].mxu0
      %v1366 = vpop.f32.mrb[0].mxu0
      %v1367 = vadd.f32 0.0, %v1366
      %v1368 = vpop.f32.mrb[0].mxu0
      %1369 = vdwg.mxu0
      %v1370 = vsel %vm595, %v1364, -inf
      %1371 = vmax.xlane.f32.xlu0 %v1370
      %v1372 = vpop.xlane.xlu0 %1371
      %v1373 = vsel %vm595, %v1367, -inf
      %1374 = vmax.xlane.f32.xlu0 %v1373
      %v1375 = vpop.xlane.xlu0 %1374
      %v1376 = vsub.f32 %v1364, %v1372
      %v1377 = vsub.f32 %v1367, %v1375
      %v1378 = vmul.f32 %v1376, 1.442695
      %v1379 = vpow.pop %v1378
      %v1380 = vmul.f32 %v1377, 1.442695
      %v1381 = vpow.pop %v1380
      %v1382 = vsel %vm595, %v1379, 0.0
      %1383 = vadd.xlane.f32.xlu0 %v1382
      %v1384 = vpop.xlane.xlu0 %1383
      %v1385 = vsel %vm595, %v1381, 0.0
      %1386 = vadd.xlane.f32.xlu0 %v1385
      %v1387 = vpop.xlane.xlu0 %1386
      %v1388 = vrcp.pop %v1384
      %v1389 = vrcp.pop %v1387
      %v1390 = vmul.f32 %v1379, %v1388
      %v1391 = vmul.f32 %v1381, %v1389
      %v1392 = vpack.c.bf16 %v1391, %v1390
      %1393 = vrot.lane.b32.xlu0 %v666, 32
      %v1394 = vpop.permute.xlu0 %1393
      %v1397 = vsel %vm595, %v1392, 0
      %1399 = vmatprep.subr.bf16.mxu0 0
      %1400 = vmatpush1.bf16.msra.mxu0 %v1394
      %1401 = vmatprep.subr.bf16.mxu0 0
      %1402 = vmatpush1.bf16.msra.mxu0 0
      %1403 = vmatprep.subr.bf16.mxu0 0
      %1404 = vmatpush1.bf16.msra.mxu0 0
      %1405 = vmatprep.subr.bf16.mxu0 0
      %1406 = vmatpush1.bf16.msra.mxu0 0
      %1407 = vmatprep.subr.bf16.mxu0 0
      %1408 = vmatpush1.bf16.msra.mxu0 0
      %1409 = vmatprep.subr.bf16.mxu0 0
      %1410 = vmatpush1.bf16.msra.mxu0 0
      %1411 = vmatprep.subr.bf16.mxu0 0
      %1412 = vmatpush1.bf16.msra.mxu0 0
      %1413 = vmatprep.subr.bf16.mxu0 0
      %1414 = vmatpush1.bf16.msra.mxu0 0
      %1415 = vmatprep.subr.bf16.mxu0 0
      %1416 = vmatpush1.bf16.msra.mxu0 0
      %1417 = vmatprep.subr.bf16.mxu0 0
      %1418 = vmatpush1.bf16.msra.mxu0 0
      %1419 = vmatprep.subr.bf16.mxu0 0
      %1420 = vmatpush1.bf16.msra.mxu0 0
      %1421 = vmatprep.subr.bf16.mxu0 0
      %1422 = vmatpush1.bf16.msra.mxu0 0
      %1423 = vmatprep.subr.bf16.mxu0 0
      %1424 = vmatpush1.bf16.msra.mxu0 0
      %1425 = vmatprep.subr.bf16.mxu0 0
      %1426 = vmatpush1.bf16.msra.mxu0 0
      %1427 = vmatprep.subr.bf16.mxu0 0
      %1428 = vmatpush1.bf16.msra.mxu0 0
      %1429 = vmatprep.subr.bf16.mxu0 0
      %1430 = vmatpush1.bf16.msra.mxu0 0
      %1431 = vmatprep.mubr.bf16.mxu0 0
      %1432 = vmatmul.mubr.bf16.gmra.mrb[0].mxu0 %v1397
      %v1433 = vpop.f32.mrb[0].mxu0
      %v1434 = vadd.f32 0.0, %v1433
      %v1435 = vpop.f32.mrb[0].mxu0
      %v1436 = vpop.f32.mrb[0].mxu0
      %v1437 = vadd.f32 0.0, %v1436
      %v1438 = vpop.f32.mrb[0].mxu0
      %1439 = vdwg.mxu0
      %1440 = vrot.lane.b32.xlu0 %v593, 16
      %v1441 = vpop.permute.xlu0 %1440
      %1442 = vrot.lane.b32.xlu0 %v594, 16
      %v1443 = vpop.permute.xlu0 %1442
      %v1445 = vsel %vm595, %v1441, 0
      %v1448 = vsel %vm595, %v1443, 0
      %1450 = vmatprep.subr.bf16.mxu0 0
      %1451 = vmatpush1.bf16.xpose.msra.mxu0 %v1448
      %1452 = vmatprep.subr.bf16.mxu0 0
      %1453 = vmatpush1.bf16.xpose.msra.mxu0 0
      %1454 = vmatprep.subr.bf16.mxu0 0
      %1455 = vmatpush1.bf16.xpose.msra.mxu0 0
      %1456 = vmatprep.subr.bf16.mxu0 0
      %1457 = vmatpush1.bf16.xpose.msra.mxu0 0
      %1458 = vmatprep.subr.bf16.mxu0 0
      %1459 = vmatpush1.bf16.xpose.msra.mxu0 0
      %1460 = vmatprep.subr.bf16.mxu0 0
      %1461 = vmatpush1.bf16.xpose.msra.mxu0 0
      %1462 = vmatprep.subr.bf16.mxu0 0
      %1463 = vmatpush1.bf16.xpose.msra.mxu0 0
      %1464 = vmatprep.subr.bf16.mxu0 0
      %1465 = vmatpush1.bf16.xpose.msra.mxu0 0
      %1466 = vmatprep.subr.bf16.mxu0 0
      %1467 = vmatpush1.bf16.xpose.msra.mxu0 0
      %1468 = vmatprep.subr.bf16.mxu0 0
      %1469 = vmatpush1.bf16.xpose.msra.mxu0 0
      %1470 = vmatprep.subr.bf16.mxu0 0
      %1471 = vmatpush1.bf16.xpose.msra.mxu0 0
      %1472 = vmatprep.subr.bf16.mxu0 0
      %1473 = vmatpush1.bf16.xpose.msra.mxu0 0
      %1474 = vmatprep.subr.bf16.mxu0 0
      %1475 = vmatpush1.bf16.xpose.msra.mxu0 0
      %1476 = vmatprep.subr.bf16.mxu0 0
      %1477 = vmatpush1.bf16.xpose.msra.mxu0 0
      %1478 = vmatprep.subr.bf16.mxu0 0
      %1479 = vmatpush1.bf16.xpose.msra.mxu0 0
      %1480 = vmatprep.subr.bf16.mxu0 0
      %1481 = vmatpush1.bf16.xpose.msra.mxu0 0
      %1482 = vmatprep.mubr.bf16.mxu0 0
      %1483 = vmatmul.mubr.bf16.gmra.mrb[0].mxu0 %v1445
      %v1484 = vpop.f32.mrb[0].mxu0
      %v1485 = vadd.f32 0.0, %v1484
      %v1486 = vpop.f32.mrb[0].mxu0
      %v1487 = vpop.f32.mrb[0].mxu0
      %v1488 = vadd.f32 0.0, %v1487
      %v1489 = vpop.f32.mrb[0].mxu0
      %1490 = vdwg.mxu0
      %v1491 = vsel %vm595, %v1485, -inf
      %1492 = vmax.xlane.f32.xlu0 %v1491
      %v1493 = vpop.xlane.xlu0 %1492
      %v1494 = vsel %vm595, %v1488, -inf
      %1495 = vmax.xlane.f32.xlu0 %v1494
      %v1496 = vpop.xlane.xlu0 %1495
      %v1497 = vsub.f32 %v1485, %v1493
      %v1498 = vsub.f32 %v1488, %v1496
      %v1499 = vmul.f32 %v1497, 1.442695
      %v1500 = vpow.pop %v1499
      %v1501 = vmul.f32 %v1498, 1.442695
      %v1502 = vpow.pop %v1501
      %v1503 = vsel %vm595, %v1500, 0.0
      %1504 = vadd.xlane.f32.xlu0 %v1503
      %v1505 = vpop.xlane.xlu0 %1504
      %v1506 = vsel %vm595, %v1502, 0.0
      %1507 = vadd.xlane.f32.xlu0 %v1506
      %v1508 = vpop.xlane.xlu0 %1507
      %v1509 = vrcp.pop %v1505
      %v1510 = vrcp.pop %v1508
      %v1511 = vmul.f32 %v1500, %v1509
      %v1512 = vmul.f32 %v1502, %v1510
      %v1513 = vpack.c.bf16 %v1512, %v1511
      %1514 = vrot.lane.b32.xlu0 %v666, 16
      %v1515 = vpop.permute.xlu0 %1514
      %v1518 = vsel %vm595, %v1513, 0
      %1520 = vmatprep.subr.bf16.mxu0 0
      %1521 = vmatpush1.bf16.msra.mxu0 %v1515
      %1522 = vmatprep.subr.bf16.mxu0 0
      %1523 = vmatpush1.bf16.msra.mxu0 0
      %1524 = vmatprep.subr.bf16.mxu0 0
      %1525 = vmatpush1.bf16.msra.mxu0 0
      %1526 = vmatprep.subr.bf16.mxu0 0
      %1527 = vmatpush1.bf16.msra.mxu0 0
      %1528 = vmatprep.subr.bf16.mxu0 0
      %1529 = vmatpush1.bf16.msra.mxu0 0
      %1530 = vmatprep.subr.bf16.mxu0 0
      %1531 = vmatpush1.bf16.msra.mxu0 0
      %1532 = vmatprep.subr.bf16.mxu0 0
      %1533 = vmatpush1.bf16.msra.mxu0 0
      %1534 = vmatprep.subr.bf16.mxu0 0
      %1535 = vmatpush1.bf16.msra.mxu0 0
      %1536 = vmatprep.subr.bf16.mxu0 0
      %1537 = vmatpush1.bf16.msra.mxu0 0
      %1538 = vmatprep.subr.bf16.mxu0 0
      %1539 = vmatpush1.bf16.msra.mxu0 0
      %1540 = vmatprep.subr.bf16.mxu0 0
      %1541 = vmatpush1.bf16.msra.mxu0 0
      %1542 = vmatprep.subr.bf16.mxu0 0
      %1543 = vmatpush1.bf16.msra.mxu0 0
      %1544 = vmatprep.subr.bf16.mxu0 0
      %1545 = vmatpush1.bf16.msra.mxu0 0
      %1546 = vmatprep.subr.bf16.mxu0 0
      %1547 = vmatpush1.bf16.msra.mxu0 0
      %1548 = vmatprep.subr.bf16.mxu0 0
      %1549 = vmatpush1.bf16.msra.mxu0 0
      %1550 = vmatprep.subr.bf16.mxu0 0
      %1551 = vmatpush1.bf16.msra.mxu0 0
      %1552 = vmatprep.mubr.bf16.mxu0 0
      %1553 = vmatmul.mubr.bf16.gmra.mrb[0].mxu0 %v1518
      %v1554 = vpop.f32.mrb[0].mxu0
      %v1555 = vadd.f32 0.0, %v1554
      %v1556 = vpop.f32.mrb[0].mxu0
      %v1557 = vpop.f32.mrb[0].mxu0
      %v1558 = vadd.f32 0.0, %v1557
      %v1559 = vpop.f32.mrb[0].mxu0
      %1560 = vdwg.mxu0
      %1563 = vrot.lane.b32.xlu0 %v829, 16
      %v1564 = vpop.permute.xlu0 %1563
      %1565 = vrot.lane.b32.xlu0 %v832, 16
      %v1566 = vpop.permute.xlu0 %1565
      %1571 = vrot.lane.b32.xlu0 %v950, 32
      %v1572 = vpop.permute.xlu0 %1571
      %1573 = vrot.lane.b32.xlu0 %v953, 32
      %v1574 = vpop.permute.xlu0 %1573
      %1579 = vrot.lane.b32.xlu0 %v1071, 48
      %v1580 = vpop.permute.xlu0 %1579
      %1581 = vrot.lane.b32.xlu0 %v1074, 48
      %v1582 = vpop.permute.xlu0 %1581
      %1587 = vrot.lane.b32.xlu0 %v1192, 64
      %v1588 = vpop.permute.xlu0 %1587
      %1589 = vrot.lane.b32.xlu0 %v1195, 64
      %v1590 = vpop.permute.xlu0 %1589
      %1595 = vrot.lane.b32.xlu0 %v1313, 80
      %v1596 = vpop.permute.xlu0 %1595
      %1597 = vrot.lane.b32.xlu0 %v1316, 80
      %v1598 = vpop.permute.xlu0 %1597
      %1603 = vrot.lane.b32.xlu0 %v1434, 96
      %v1604 = vpop.permute.xlu0 %1603
      %1605 = vrot.lane.b32.xlu0 %v1437, 96
      %v1606 = vpop.permute.xlu0 %1605
      %1611 = vrot.lane.b32.xlu0 %v1555, 112
      %v1612 = vpop.permute.xlu0 %1611
      %1613 = vrot.lane.b32.xlu0 %v1558, 112
      %v1614 = vpop.permute.xlu0 %1613
      %v1617 = vsel %vm595, %v705, %v1564
      %v1618 = vsel %vm595, %v708, %v1566
      %vm1619 = vcmask 261120
      %v1620 = vsel %vm1619, %v1617, %v1572
      %v1621 = vsel %vm1619, %v1618, %v1574
      %vm1622 = vcmask 392192
      %v1623 = vsel %vm1622, %v1620, %v1580
      %v1624 = vsel %vm1622, %v1621, %v1582
      %vm1625 = vcmask 523264
      %v1626 = vsel %vm1625, %v1623, %v1588
      %v1627 = vsel %vm1625, %v1624, %v1590
      %vm1628 = vcmask 654336
      %v1629 = vsel %vm1628, %v1626, %v1596
      %v1630 = vsel %vm1628, %v1627, %v1598
      %vm1631 = vcmask 785408
      %v1632 = vsel %vm1631, %v1629, %v1604
      %v1633 = vsel %vm1631, %v1630, %v1606
      %vm1634 = vcmask 916480
      %v1635 = vsel %vm1634, %v1632, %v1612
      %v1636 = vsel %vm1634, %v1633, %v1614
      %v1637 = vld [vmem:[%s5] sm:$0xf]
      %v1638 = vld [vmem:[%s5 + $0x4] sm:$0xf]
      %v1639 = vld [vmem:[%s5 + $0x8] sm:$0xf]
      %v1640 = vld [vmem:[%s5 + $0xc] sm:$0xf]
      %v1641 = vld [vmem:[%s5 + $0x10] sm:$0xf]
      %v1642 = vld [vmem:[%s5 + $0x14] sm:$0xf]
      %v1643 = vld [vmem:[%s5 + $0x18] sm:$0xf]
      %v1644 = vld [vmem:[%s5 + $0x1c] sm:$0xf]
      %v1645 = vld [vmem:[%s5 + $0x20] sm:$0xf]
      %v1646 = vld [vmem:[%s5 + $0x24] sm:$0xf]
      %v1647 = vld [vmem:[%s5 + $0x28] sm:$0xf]
      %v1648 = vld [vmem:[%s5 + $0x2c] sm:$0xf]
      %v1649 = vld [vmem:[%s5 + $0x30] sm:$0xf]
      %v1650 = vld [vmem:[%s5 + $0x34] sm:$0xf]
      %v1651 = vld [vmem:[%s5 + $0x38] sm:$0xf]
      %v1652 = vld [vmem:[%s5 + $0x3c] sm:$0xf]
      %v1653 = vpack.c.bf16 %v1636, %v1635
      %v1654 = vld [vmem:[%s6] sm:$0x1]
      %v1656 = vlaneseq
      %v1657 = vshrl.u32 %v1656, 7
      %v1658 = vsub.s32 0, %v1657
      %v1659 = vrot.slane %v1654, %v1658
      %v1677 = vunpack.c.l.b16 %v1637
      %v1678 = vunpack.c.l.b16 %v1638
      %v1679 = vunpack.c.l.b16 %v1639
      %v1680 = vunpack.c.l.b16 %v1640
      %v1681 = vunpack.c.l.b16 %v1641
      %v1682 = vunpack.c.l.b16 %v1642
      %v1683 = vunpack.c.l.b16 %v1643
      %v1684 = vunpack.c.l.b16 %v1644
      %v1685 = vunpack.c.l.b16 %v1645
      %v1686 = vunpack.c.l.b16 %v1646
      %v1687 = vunpack.c.l.b16 %v1647
      %v1688 = vunpack.c.l.b16 %v1648
      %v1689 = vunpack.c.l.b16 %v1649
      %v1690 = vunpack.c.l.b16 %v1650
      %v1691 = vunpack.c.l.b16 %v1651
      %v1692 = vunpack.c.l.b16 %v1652
      %v1693 = vpack.c.b16 %v1678, %v1677
      %v1694 = vpack.c.b16 %v1680, %v1679
      %v1695 = vpack.c.b16 %v1682, %v1681
      %v1696 = vpack.c.b16 %v1684, %v1683
      %v1697 = vpack.c.b16 %v1686, %v1685
      %v1698 = vpack.c.b16 %v1688, %v1687
      %v1699 = vpack.c.b16 %v1690, %v1689
      %v1700 = vpack.c.b16 %v1692, %v1691
      %1709 = vmatprep.subr.bf16.mxu0 0
      %1710 = vmatpush1.bf16.msra.mxu0 %v1693
      %1711 = vmatprep.subr.bf16.mxu0 0
      %1712 = vmatpush1.bf16.msra.mxu0 %v1694
      %1713 = vmatprep.subr.bf16.mxu0 0
      %1714 = vmatpush1.bf16.msra.mxu0 %v1695
      %1715 = vmatprep.subr.bf16.mxu0 0
      %1716 = vmatpush1.bf16.msra.mxu0 %v1696
      %1717 = vmatprep.subr.bf16.mxu0 0
      %1718 = vmatpush1.bf16.msra.mxu0 %v1697
      %1719 = vmatprep.subr.bf16.mxu0 0
      %1720 = vmatpush1.bf16.msra.mxu0 %v1698
      %1721 = vmatprep.subr.bf16.mxu0 0
      %1722 = vmatpush1.bf16.msra.mxu0 %v1699
      %1723 = vmatprep.subr.bf16.mxu0 0
      %1724 = vmatpush1.bf16.msra.mxu0 %v1700
      %1725 = vmatprep.subr.bf16.mxu0 0
      %1726 = vmatpush1.bf16.msra.mxu0 0
      %1727 = vmatprep.subr.bf16.mxu0 0
      %1728 = vmatpush1.bf16.msra.mxu0 0
      %1729 = vmatprep.subr.bf16.mxu0 0
      %1730 = vmatpush1.bf16.msra.mxu0 0
      %1731 = vmatprep.subr.bf16.mxu0 0
      %1732 = vmatpush1.bf16.msra.mxu0 0
      %1733 = vmatprep.subr.bf16.mxu0 0
      %1734 = vmatpush1.bf16.msra.mxu0 0
      %1735 = vmatprep.subr.bf16.mxu0 0
      %1736 = vmatpush1.bf16.msra.mxu0 0
      %1737 = vmatprep.subr.bf16.mxu0 0
      %1738 = vmatpush1.bf16.msra.mxu0 0
      %1739 = vmatprep.subr.bf16.mxu0 0
      %1740 = vmatpush1.bf16.msra.mxu0 0
      %1741 = vmatprep.mubr.bf16.mxu0 0
      %1742 = vmatmul.mubr.bf16.gmra.mrb[0].mxu0 %v1653
      %v1743 = vpop.f32.mrb[0].mxu0
      %v1744 = vadd.f32 %v1659, %v1743
      %v1745 = vpop.f32.mrb[0].mxu0
      %v1746 = vpop.f32.mrb[0].mxu0
      %v1747 = vadd.f32 %v1659, %v1746
      %v1748 = vpop.f32.mrb[0].mxu0
      %1749 = vdwg.mxu0
      %v1750 = vadd.f32 %v280, %v1744
      %v1751 = vadd.f32 %v281, %v1747
      %1752 = vst [vmem:[%s278] sm:$0xff] %v1750
      %1753 = vst [vmem:[%s278 + $0x8] sm:$0xff] %v1751
      %p1754 = scmp.lt.s32.totalorder %s18, 1
      %s1755 = scalar_select %p1754, %s18, 1
      %s1756 = smul.addr %s1755, 2
      %s1757 = smul.addr %s1756, 8
      %s1758 = scalar_lea.vmem %s7, %s1757
      // Predicated region
      $region49: #{encoder_block_forward.4} parent=47 // pred_check
        %p1759 = pneg %p188
      $region50: #{encoder_block_forward.4} parent=47 // pred_check_branch
        %1761 = sbr.rel (%p1759) target = $region52
      $region51: #{encoder_block_forward.4} parent=47 // pred_region
        _
      $region52: #{encoder_block_forward.4} parent=47 // pred_fallthru
        _
    $region48: #{encoder_block_forward.4} parent=5 // pred_fallthru
      _
    %p1762 = scmp.le.s32.totalorder 2, %s13
    // Predicated region
    $region53: #{encoder_block_forward.4} parent=5 // pred_check
      %p1763 = pneg %p1762
    $region54: #{encoder_block_forward.4} parent=5 // pred_check_branch
      %1765 = sbr.rel (%p1763) target = $region56
    $region55: #{encoder_block_forward.4} parent=5 // pred_region
      %s1766 = ssub.s32 %s13, 2
      // Predicated region
      $region57: #{encoder_block_forward.4} parent=55 // pred_check
        %p1767 = pneg %p194
      $region58: #{encoder_block_forward.4} parent=55 // pred_check_branch
        %1769 = sbr.rel (%p1767) target = $region60
      $region59: #{encoder_block_forward.4} parent=55 // pred_region
        %p1770 = scmp.lt.s32.totalorder %s19, 1
        %s1771 = scalar_select %p1770, %s19, 1
        %s1772 = smul.addr %s1771, 2
        %s1773 = smul.addr %s1772, 8
        %s1774 = scalar_lea.vmem %s7, %s1773
      $region60: #{encoder_block_forward.4} parent=55 // pred_fallthru
        _
    $region56: #{encoder_block_forward.4} parent=5 // pred_fallthru
      _
  $region6: #{encoder_block_forward.4} parent=0 // loop_footer
    %s17 = sadd.s32 1, %s13
  $region7: #{encoder_block_forward.4} parent=0 // loop_footer_branch
    %12 = sbr.rel target = $region3
  $region8: #{encoder_block_forward.4} parent=0 // loop_exit
    _

// kernel: encoder_block_forward.3
$region0: #{encoder_block_forward.3}
  #allocation0 [shape = 'u32[]', space=smem, size = 0x4, offset = 0x4, fixed_abs, tag = 'smem constant byte address 0x4 - core index']
  #allocation1 [shape = 'u32[144,128]{1,0:T(1,128)}', space=vmem, size = 0x12000, scoped, tag = 'internal scratch']
  #allocation2 [shape = 'f32[20,128]{1,0:T(8,128)}', space=vmem, size = 0x3000, scoped, tag = 'scratch operand']
  %s0 = inlined_call_operand.vmem [shape: f32[2,16,128], index: 0, kind: input, shape index: {}, may-alias: {0,8}]
  %s1 = inlined_call_operand.vmem [shape: f32[16,128], index: 1, kind: input, shape index: {}]
  %s2 = inlined_call_operand.vmem [shape: f32[4,128], index: 2, kind: input, shape index: {}]
  %s3 = inlined_call_operand.vmem [shape: f32[4,128], index: 3, kind: input, shape index: {}]
  %s4 = inlined_call_operand.vmem [shape: f32[4,5,128], index: 4, kind: input, shape index: {}]
  %s5 = inlined_call_operand.vmem [shape: f32[4,128], index: 5, kind: input, shape index: {}]
  %s6 = inlined_call_operand.vmem [shape: bf16[4,128,128], index: 6, kind: input, shape index: {}]
  %s7 = inlined_call_operand.vmem [shape: f32[4,128], index: 7, kind: input, shape index: {}]
  %s8 = inlined_call_operand.vmem [shape: f32[2,16,128], index: 8, kind: output, shape index: {}, may-alias: {0,8}]
  %s9 = sld [smem:[#allocation0]]
  $region65: #{encoder_block_forward.3} parent=0
    _
  %s11 = ssub.s32 1, %s9
  %s12 = scalar_select 0, %s11, %s9
  loop: start=0, step=1, limit=4
  $region2: #{encoder_block_forward.3} parent=0 // loop_pre_header
    _
  $region3: #{encoder_block_forward.3} parent=0 // loop_header
    %s14 = sphi 0, %s18
    %p15 = scmp.ge.s32.totalorder %s14, 4
    %s24 = sphi 0, %s26
    %s27 = sphi 0, %s24
    %s28 = sphi 0, %s27
    %s44 = sphi 0, %s28
    %s48 = sphi 0, %s48
    %s50 = sphi 0, %s48
    %s51 = sphi 0, %s50
    %s65 = sphi 0, %s51
    %s69 = sphi 0, %s69
    %s71 = sphi 0, %s69
    %s72 = sphi 0, %s71
    %s86 = sphi 0, %s72
    %s90 = sphi 0, %s90
    %s92 = sphi 0, %s90
    %s93 = sphi 0, %s92
    %s107 = sphi 0, %s93
    %s111 = sphi 0, %s111
    %s113 = sphi 0, %s111
    %s114 = sphi 0, %s113
    %s128 = sphi 0, %s114
    %s132 = sphi 0, %s132
    %s134 = sphi 0, %s132
    %s135 = sphi 0, %s134
    %s149 = sphi 0, %s135
    %s153 = sphi 0, %s153
    %s155 = sphi 0, %s153
    %s156 = sphi 0, %s155
    %s170 = sphi 0, %s156
    %s174 = sphi 0, %s174
    %s176 = sphi 0, %s174
    %s177 = sphi 0, %s176
    %s191 = sphi 0, %s177
    %s197 = sphi 0, %s199
    %s200 = sphi 0, %s197
    %s201 = sphi 0, %s200
    %s217 = sphi 0, %s201
  $region4: #{encoder_block_forward.3} parent=0 // loop_header_branch
    %17 = sbr.rel (%p15) target = $region8
  $region5: #{encoder_block_forward.3} parent=0 // loop_body
    %s19 = ssub.s32 %s14, 1
    %s20 = ssub.s32 %s14, 2
    %s21 = sadd.s32 %s14, 1
    %s22 = ssub.s32 %s14, %s21
    %p23 = scmp.eq.s32.totalorder %s22, 0
    %s25 = sadd.s32 %s24, 1
    %s26 = scalar_select %p23, %s24, %s25
    %p29 = pneg %p23
    %p30 = scmp.eq.s32.totalorder %s14, 1
    %p31 = por %p29, %p30
    %p32 = scmp.ne.s32.totalorder %s24, %s27
    %p33 = scmp.eq.s32.totalorder %s14, 0
    %p34 = por %p32, %p33
    %p35 = scmp.ne.s32.totalorder %s24, %s27
    %p36 = scmp.eq.s32.totalorder %s19, 1
    %p37 = por %p35, %p36
    %p38 = scmp.ne.s32.totalorder %s27, %s28
    %p39 = scmp.eq.s32.totalorder %s19, 0
    %p40 = por %p38, %p39
    %p41 = scmp.ne.s32.totalorder %s27, %s28
    %p42 = scmp.eq.s32.totalorder %s20, 1
    %p43 = por %p41, %p42
    %p45 = scmp.ne.s32.totalorder %s28, %s44
    %p46 = scmp.eq.s32.totalorder %s20, 0
    %p47 = por %p45, %p46
    %s49 = sadd.s32 %s48, 1
    %p52 = scmp.eq.s32.totalorder %s14, 1
    %p53 = scmp.ne.s32.totalorder %s48, %s50
    %p54 = scmp.eq.s32.totalorder %s14, 0
    %p55 = por %p53, %p54
    %p56 = scmp.ne.s32.totalorder %s48, %s50
    %p57 = scmp.eq.s32.totalorder %s19, 1
    %p58 = por %p56, %p57
    %p59 = scmp.ne.s32.totalorder %s50, %s51
    %p60 = scmp.eq.s32.totalorder %s19, 0
    %p61 = por %p59, %p60
    %p62 = scmp.ne.s32.totalorder %s50, %s51
    %p63 = scmp.eq.s32.totalorder %s20, 1
    %p64 = por %p62, %p63
    %p66 = scmp.ne.s32.totalorder %s51, %s65
    %p67 = scmp.eq.s32.totalorder %s20, 0
    %p68 = por %p66, %p67
    %s70 = sadd.s32 %s69, 1
    %p73 = scmp.eq.s32.totalorder %s14, 1
    %p74 = scmp.ne.s32.totalorder %s69, %s71
    %p75 = scmp.eq.s32.totalorder %s14, 0
    %p76 = por %p74, %p75
    %p77 = scmp.ne.s32.totalorder %s69, %s71
    %p78 = scmp.eq.s32.totalorder %s19, 1
    %p79 = por %p77, %p78
    %p80 = scmp.ne.s32.totalorder %s71, %s72
    %p81 = scmp.eq.s32.totalorder %s19, 0
    %p82 = por %p80, %p81
    %p83 = scmp.ne.s32.totalorder %s71, %s72
    %p84 = scmp.eq.s32.totalorder %s20, 1
    %p85 = por %p83, %p84
    %p87 = scmp.ne.s32.totalorder %s72, %s86
    %p88 = scmp.eq.s32.totalorder %s20, 0
    %p89 = por %p87, %p88
    %s91 = sadd.s32 %s90, 1
    %p94 = scmp.eq.s32.totalorder %s14, 1
    %p95 = scmp.ne.s32.totalorder %s90, %s92
    %p96 = scmp.eq.s32.totalorder %s14, 0
    %p97 = por %p95, %p96
    %p98 = scmp.ne.s32.totalorder %s90, %s92
    %p99 = scmp.eq.s32.totalorder %s19, 1
    %p100 = por %p98, %p99
    %p101 = scmp.ne.s32.totalorder %s92, %s93
    %p102 = scmp.eq.s32.totalorder %s19, 0
    %p103 = por %p101, %p102
    %p104 = scmp.ne.s32.totalorder %s92, %s93
    %p105 = scmp.eq.s32.totalorder %s20, 1
    %p106 = por %p104, %p105
    %p108 = scmp.ne.s32.totalorder %s93, %s107
    %p109 = scmp.eq.s32.totalorder %s20, 0
    %p110 = por %p108, %p109
    %s112 = sadd.s32 %s111, 1
    %p115 = scmp.eq.s32.totalorder %s14, 1
    %p116 = scmp.ne.s32.totalorder %s111, %s113
    %p117 = scmp.eq.s32.totalorder %s14, 0
    %p118 = por %p116, %p117
    %p119 = scmp.ne.s32.totalorder %s111, %s113
    %p120 = scmp.eq.s32.totalorder %s19, 1
    %p121 = por %p119, %p120
    %p122 = scmp.ne.s32.totalorder %s113, %s114
    %p123 = scmp.eq.s32.totalorder %s19, 0
    %p124 = por %p122, %p123
    %p125 = scmp.ne.s32.totalorder %s113, %s114
    %p126 = scmp.eq.s32.totalorder %s20, 1
    %p127 = por %p125, %p126
    %p129 = scmp.ne.s32.totalorder %s114, %s128
    %p130 = scmp.eq.s32.totalorder %s20, 0
    %p131 = por %p129, %p130
    %s133 = sadd.s32 %s132, 1
    %p136 = scmp.eq.s32.totalorder %s14, 1
    %p137 = scmp.ne.s32.totalorder %s132, %s134
    %p138 = scmp.eq.s32.totalorder %s14, 0
    %p139 = por %p137, %p138
    %p140 = scmp.ne.s32.totalorder %s132, %s134
    %p141 = scmp.eq.s32.totalorder %s19, 1
    %p142 = por %p140, %p141
    %p143 = scmp.ne.s32.totalorder %s134, %s135
    %p144 = scmp.eq.s32.totalorder %s19, 0
    %p145 = por %p143, %p144
    %p146 = scmp.ne.s32.totalorder %s134, %s135
    %p147 = scmp.eq.s32.totalorder %s20, 1
    %p148 = por %p146, %p147
    %p150 = scmp.ne.s32.totalorder %s135, %s149
    %p151 = scmp.eq.s32.totalorder %s20, 0
    %p152 = por %p150, %p151
    %s154 = sadd.s32 %s153, 1
    %p157 = scmp.eq.s32.totalorder %s14, 1
    %p158 = scmp.ne.s32.totalorder %s153, %s155
    %p159 = scmp.eq.s32.totalorder %s14, 0
    %p160 = por %p158, %p159
    %p161 = scmp.ne.s32.totalorder %s153, %s155
    %p162 = scmp.eq.s32.totalorder %s19, 1
    %p163 = por %p161, %p162
    %p164 = scmp.ne.s32.totalorder %s155, %s156
    %p165 = scmp.eq.s32.totalorder %s19, 0
    %p166 = por %p164, %p165
    %p167 = scmp.ne.s32.totalorder %s155, %s156
    %p168 = scmp.eq.s32.totalorder %s20, 1
    %p169 = por %p167, %p168
    %p171 = scmp.ne.s32.totalorder %s156, %s170
    %p172 = scmp.eq.s32.totalorder %s20, 0
    %p173 = por %p171, %p172
    %s175 = sadd.s32 %s174, 1
    %p178 = scmp.eq.s32.totalorder %s14, 1
    %p179 = scmp.ne.s32.totalorder %s174, %s176
    %p180 = scmp.eq.s32.totalorder %s14, 0
    %p181 = por %p179, %p180
    %p182 = scmp.ne.s32.totalorder %s174, %s176
    %p183 = scmp.eq.s32.totalorder %s19, 1
    %p184 = por %p182, %p183
    %p185 = scmp.ne.s32.totalorder %s176, %s177
    %p186 = scmp.eq.s32.totalorder %s19, 0
    %p187 = por %p185, %p186
    %p188 = scmp.ne.s32.totalorder %s176, %s177
    %p189 = scmp.eq.s32.totalorder %s20, 1
    %p190 = por %p188, %p189
    %p192 = scmp.ne.s32.totalorder %s177, %s191
    %p193 = scmp.eq.s32.totalorder %s20, 0
    %p194 = por %p192, %p193
    %s195 = ssub.s32 %s14, %s21
    %p196 = scmp.eq.s32.totalorder %s195, 0
    %s198 = sadd.s32 %s197, 1
    %s199 = scalar_select %p196, %s197, %s198
    %p202 = pneg %p196
    %p203 = scmp.eq.s32.totalorder %s14, 1
    %p204 = por %p202, %p203
    %p205 = scmp.ne.s32.totalorder %s197, %s200
    %p206 = scmp.eq.s32.totalorder %s14, 0
    %p207 = por %p205, %p206
    %p208 = scmp.ne.s32.totalorder %s197, %s200
    %p209 = scmp.eq.s32.totalorder %s19, 1
    %p210 = por %p208, %p209
    %p211 = scmp.ne.s32.totalorder %s200, %s201
    %p212 = scmp.eq.s32.totalorder %s19, 0
    %p213 = por %p211, %p212
    %p214 = scmp.ne.s32.totalorder %s200, %s201
    %p215 = scmp.eq.s32.totalorder %s20, 1
    %p216 = por %p214, %p215
    %p218 = scmp.ne.s32.totalorder %s201, %s217
    %p219 = scmp.eq.s32.totalorder %s20, 0
    %p220 = por %p218, %p219
    %p221 = scmp.le.s32.totalorder 1, %s14
    %p222 = scmp.lt.s32.totalorder %s14, 3
    %p223 = pnand %p221, %p222
    %p224 = pneg %p223
    // Predicated region
    $region9: #{encoder_block_forward.3} parent=5 // pred_check
      _
    $region10: #{encoder_block_forward.3} parent=5 // pred_check_branch
      %226 = sbr.rel (%p223) target = $region12
    $region11: #{encoder_block_forward.3} parent=5 // pred_region
      %s227 = ssub.s32 %s14, 1
      // Predicated region
      $region13: #{encoder_block_forward.3} parent=11 // pred_check
        %p228 = pneg %p61
      $region14: #{encoder_block_forward.3} parent=11 // pred_check_branch
        %230 = sbr.rel (%p228) target = $region16
      $region15: #{encoder_block_forward.3} parent=11 // pred_region
        _
      $region16: #{encoder_block_forward.3} parent=11 // pred_fallthru
        _
      // Predicated region
      $region17: #{encoder_block_forward.3} parent=11 // pred_check
        %p231 = pneg %p82
      $region18: #{encoder_block_forward.3} parent=11 // pred_check_branch
        %233 = sbr.rel (%p231) target = $region20
      $region19: #{encoder_block_forward.3} parent=11 // pred_region
        _
      $region20: #{encoder_block_forward.3} parent=11 // pred_fallthru
        _
      // Predicated region
      $region21: #{encoder_block_forward.3} parent=11 // pred_check
        %p234 = pneg %p103
      $region22: #{encoder_block_forward.3} parent=11 // pred_check_branch
        %236 = sbr.rel (%p234) target = $region24
      $region23: #{encoder_block_forward.3} parent=11 // pred_region
        _
      $region24: #{encoder_block_forward.3} parent=11 // pred_fallthru
        _
      // Predicated region
      $region25: #{encoder_block_forward.3} parent=11 // pred_check
        %p237 = pneg %p124
      $region26: #{encoder_block_forward.3} parent=11 // pred_check_branch
        %239 = sbr.rel (%p237) target = $region28
      $region27: #{encoder_block_forward.3} parent=11 // pred_region
        _
      $region28: #{encoder_block_forward.3} parent=11 // pred_fallthru
        _
      // Predicated region
      $region29: #{encoder_block_forward.3} parent=11 // pred_check
        %p240 = pneg %p145
      $region30: #{encoder_block_forward.3} parent=11 // pred_check_branch
        %242 = sbr.rel (%p240) target = $region32
      $region31: #{encoder_block_forward.3} parent=11 // pred_region
        _
      $region32: #{encoder_block_forward.3} parent=11 // pred_fallthru
        _
      // Predicated region
      $region33: #{encoder_block_forward.3} parent=11 // pred_check
        %p243 = pneg %p166
      $region34: #{encoder_block_forward.3} parent=11 // pred_check_branch
        %245 = sbr.rel (%p243) target = $region36
      $region35: #{encoder_block_forward.3} parent=11 // pred_region
        _
      $region36: #{encoder_block_forward.3} parent=11 // pred_fallthru
        _
      // Predicated region
      $region37: #{encoder_block_forward.3} parent=11 // pred_check
        %p246 = pneg %p187
      $region38: #{encoder_block_forward.3} parent=11 // pred_check_branch
        %248 = sbr.rel (%p246) target = $region40
      $region39: #{encoder_block_forward.3} parent=11 // pred_region
        _
      $region40: #{encoder_block_forward.3} parent=11 // pred_fallthru
        _
    $region12: #{encoder_block_forward.3} parent=5 // pred_fallthru
      _
    %p249 = scmp.lt.s32.totalorder %s14, 2
    // Predicated region
    $region41: #{encoder_block_forward.3} parent=5 // pred_check
      %p250 = pneg %p249
    $region42: #{encoder_block_forward.3} parent=5 // pred_check_branch
      %252 = sbr.rel (%p250) target = $region44
    $region43: #{encoder_block_forward.3} parent=5 // pred_region
      // Predicated region
      $region45: #{encoder_block_forward.3} parent=43 // pred_check
        %p253 = pneg %p34
      $region46: #{encoder_block_forward.3} parent=43 // pred_check_branch
        %255 = sbr.rel (%p253) target = $region48
      $region47: #{encoder_block_forward.3} parent=43 // pred_region
        %p256 = scmp.lt.s32.totalorder %s14, 1
        %s257 = scalar_select %p256, %s14, 1
        %s258 = smul.addr %s257, 2
        %s259 = smul.addr %s258, 8
        %s260 = scalar_lea.vmem %s0, %s259
      $region48: #{encoder_block_forward.3} parent=43 // pred_fallthru
        _
    $region44: #{encoder_block_forward.3} parent=5 // pred_fallthru
      _
    %p261 = scmp.le.s32.totalorder 1, %s14
    %p262 = scmp.lt.s32.totalorder %s14, 3
    %p263 = pnand %p261, %p262
    %p264 = pneg %p263
    // Predicated region
    $region49: #{encoder_block_forward.3} parent=5 // pred_check
      _
    $region50: #{encoder_block_forward.3} parent=5 // pred_check_branch
      %266 = sbr.rel (%p263) target = $region52
    $region51: #{encoder_block_forward.3} parent=5 // pred_region
      %s267 = ssub.s32 %s14, 1
      %p268 = scmp.lt.s32.totalorder %s19, 1
      %s269 = scalar_select %p268, %s19, 1
      %s270 = smul.addr %s269, 2
      %s271 = smul.addr %s270, 8
      %s272 = scalar_lea.vmem %s0, %s271
      %p273 = pneg %p40
      %p274 = pneg %p37
      %p275 = pneg %p61
      %p276 = pneg %p58
      %p277 = pneg %p82
      %p278 = pneg %p79
      %p279 = pneg %p103
      %p280 = pneg %p100
      %p281 = pneg %p124
      %p282 = pneg %p121
      %p283 = pneg %p145
      %p284 = pneg %p142
      %p285 = pneg %p166
      %p286 = pneg %p163
      %p287 = pneg %p187
      %p288 = pneg %p184
      %p289 = pneg %p213
      %p290 = pneg %p210
      %p291 = scmp.lt.s32.totalorder %s19, 1
      %s292 = scalar_select %p291, %s19, 1
      %s293 = smul.addr %s292, 2
      %s294 = smul.addr %s293, 8
      %s295 = scalar_lea.vmem %s8, %s294
      %p296 = scmp.lt.s32.totalorder %s19, 1
      %s297 = scalar_select %p296, %s19, 1
      %s298 = smul.addr %s297, 2
      %s299 = smul.addr %s298, 8
      %s300 = scalar_lea.vmem %s0, %s299
      %p301 = scmp.lt.s32.totalorder %s19, 1
      %s302 = scalar_select %p301, %s19, 1
      %s303 = smul.addr %s302, 2
      %s304 = smul.addr %s303, 8
      %s305 = scalar_lea.vmem %s8, %s304
      %v307 = vld [vmem:[%s300] sm:$0xff]
      %v308 = vld [vmem:[%s300 + $0x8] sm:$0xff]
      %v309 = vld [vmem:[%s1] sm:$0xff]
      %v310 = vld [vmem:[%s1 + $0x8] sm:$0xff]
      %v311 = vadd.f32 %v307, %v309
      %v312 = vadd.f32 %v308, %v310
      %v313 = vld [vmem:[%s2] sm:$0xf]
      %v314 = vld [vmem:[%s3] sm:$0xf]
      %v315 = vld [vmem:[%s4] sm:$0x1f]
      %v316 = vld [vmem:[%s4 + $0x8] sm:$0x1f]
      %v317 = vld [vmem:[%s4 + $0x10] sm:$0x1f]
      %v318 = vld [vmem:[%s4 + $0x18] sm:$0x1f]
      %v319 = vld [vmem:[%s5] sm:$0xf]
      %v320 = vld [vmem:[%s7] sm:$0xf]
      %321 = vst [vmem:[#allocation2] sm:$0x3] 0.0
      %322 = vst [vmem:[#allocation2 + $0x12] sm:$0x3] 0.0
      %323 = vadd.xlane.f32.xlu0 %v311
      %v324 = vpop.xlane.xlu0 %323
      %325 = vadd.xlane.f32.xlu0 %v312
      %v326 = vpop.xlane.xlu0 %325
      %v327 = vrcp.pop 128.0
      %v328 = vmul.f32 %v324, %v327
      %v329 = vmul.f32 %v326, %v327
      %v330 = vmul.f32 %v311, %v311
      %v331 = vmul.f32 %v312, %v312
      %332 = vadd.xlane.f32.xlu0 %v330
      %v333 = vpop.xlane.xlu0 %332
      %334 = vadd.xlane.f32.xlu0 %v331
      %v335 = vpop.xlane.xlu0 %334
      %v336 = vmul.f32 %v333, %v327
      %v337 = vmul.f32 %v335, %v327
      %v338 = vmul.f32 %v328, %v328
      %v339 = vmul.f32 %v329, %v329
      %v340 = vsub.f32 %v336, %v338
      %v341 = vsub.f32 %v337, %v339
      %v342 = vmax.f32 %v340, 0.0
      %v343 = vmax.f32 %v341, 0.0
      %v344 = vsub.f32 %v311, %v328
      %v345 = vsub.f32 %v312, %v329
      %v346 = vadd.f32 %v342, 1e-06
      %v347 = vadd.f32 %v343, 1e-06
      %v348 = vrsqrt.pop %v346
      %v349 = vrsqrt.pop %v347
      %v350 = vmul.f32 %v344, %v348
      %v351 = vmul.f32 %v345, %v349
      %v352 = vlaneseq
      %v353 = vshrl.u32 %v352, 7
      %v354 = vsub.s32 0, %v353
      %v355 = vrot.slane %v313, %v354
      %v356 = vmul.f32 %v350, %v355
      %v357 = vmul.f32 %v351, %v355
      %v358 = vlaneseq
      %v359 = vshrl.u32 %v358, 7
      %v360 = vsub.s32 0, %v359
      %v361 = vrot.slane %v314, %v360
      %v362 = vadd.f32 %v356, %v361
      %v363 = vadd.f32 %v357, %v361
      %364 = vst [vmem:[#allocation2 + $0x2] sm:$0xff] %v362
      %365 = vst [vmem:[#allocation2 + $0xa] sm:$0xff] %v363
      %v366 = vld [vmem:[#allocation2] sm:$0xff]
      %v367 = vld [vmem:[#allocation2 + $0x8] sm:$0xff]
      %v368 = vlaneseq
      %v369 = vshrl.u32 %v368, 7
      %v370 = vsub.s32 0, %v369
      %v371 = vrot.slane %v315, %v370
      %v372 = vmul.f32 %v366, %v371
      %v373 = vmul.f32 %v367, %v371
      %v374 = vadd.f32 %v372, 0.0
      %v375 = vadd.f32 %v373, 0.0
      %v376 = vld [vmem:[#allocation2 + $0x1] sm:$0xff]
      %v377 = vld [vmem:[#allocation2 + $0x9] sm:$0xff]
      %v378 = vlaneseq
      %v379 = vshrl.u32 %v378, 7
      %v380 = vsub.s32 1, %v379
      %v381 = vrot.slane %v315, %v380
      %v382 = vmul.f32 %v376, %v381
      %v383 = vmul.f32 %v377, %v381
      %v384 = vadd.f32 %v374, %v382
      %v385 = vadd.f32 %v375, %v383
      %v386 = vld [vmem:[#allocation2 + $0x2] sm:$0xff]
      %v387 = vld [vmem:[#allocation2 + $0xa] sm:$0xff]
      %v388 = vlaneseq
      %v389 = vshrl.u32 %v388, 7
      %v390 = vsub.s32 2, %v389
      %v391 = vrot.slane %v315, %v390
      %v392 = vmul.f32 %v386, %v391
      %v393 = vmul.f32 %v387, %v391
      %v394 = vadd.f32 %v384, %v392
      %v395 = vadd.f32 %v385, %v393
      %v396 = vld [vmem:[#allocation2 + $0x3] sm:$0xff]
      %v397 = vld [vmem:[#allocation2 + $0xb] sm:$0xff]
      %v398 = vlaneseq
      %v399 = vshrl.u32 %v398, 7
      %v400 = vsub.s32 3, %v399
      %v401 = vrot.slane %v315, %v400
      %v402 = vmul.f32 %v396, %v401
      %v403 = vmul.f32 %v397, %v401
      %v404 = vadd.f32 %v394, %v402
      %v405 = vadd.f32 %v395, %v403
      %v406 = vld [vmem:[#allocation2 + $0x4] sm:$0xff]
      %v407 = vld [vmem:[#allocation2 + $0xc] sm:$0xff]
      %v408 = vlaneseq
      %v409 = vshrl.u32 %v408, 7
      %v410 = vsub.s32 4, %v409
      %v411 = vrot.slane %v315, %v410
      %v412 = vmul.f32 %v406, %v411
      %v413 = vmul.f32 %v407, %v411
      %v414 = vadd.f32 %v404, %v412
      %v415 = vadd.f32 %v405, %v413
      %v416 = vlaneseq
      %v417 = vshrl.u32 %v416, 7
      %v418 = vsub.s32 0, %v417
      %v419 = vrot.slane %v319, %v418
      %v420 = vadd.f32 %v414, %v419
      %v421 = vadd.f32 %v415, %v419
      %v422 = vld [vmem:[%s6] sm:$0xf]
      %v423 = vld [vmem:[%s6 + $0x4] sm:$0xf]
      %v424 = vld [vmem:[%s6 + $0x8] sm:$0xf]
      %v425 = vld [vmem:[%s6 + $0xc] sm:$0xf]
      %v426 = vld [vmem:[%s6 + $0x10] sm:$0xf]
      %v427 = vld [vmem:[%s6 + $0x14] sm:$0xf]
      %v428 = vld [vmem:[%s6 + $0x18] sm:$0xf]
      %v429 = vld [vmem:[%s6 + $0x1c] sm:$0xf]
      %v430 = vld [vmem:[%s6 + $0x20] sm:$0xf]
      %v431 = vld [vmem:[%s6 + $0x24] sm:$0xf]
      %v432 = vld [vmem:[%s6 + $0x28] sm:$0xf]
      %v433 = vld [vmem:[%s6 + $0x2c] sm:$0xf]
      %v434 = vld [vmem:[%s6 + $0x30] sm:$0xf]
      %v435 = vld [vmem:[%s6 + $0x34] sm:$0xf]
      %v436 = vld [vmem:[%s6 + $0x38] sm:$0xf]
      %v437 = vld [vmem:[%s6 + $0x3c] sm:$0xf]
      %v438 = vpack.c.bf16 %v421, %v420
      %v439 = vlaneseq
      %v440 = vshrl.u32 %v439, 7
      %v441 = vsub.s32 0, %v440
      %v442 = vrot.slane %v320, %v441
      %v459 = vunpack.c.l.b16 %v422
      %v460 = vunpack.c.l.b16 %v423
      %v461 = vunpack.c.l.b16 %v424
      %v462 = vunpack.c.l.b16 %v425
      %v463 = vunpack.c.l.b16 %v426
      %v464 = vunpack.c.l.b16 %v427
      %v465 = vunpack.c.l.b16 %v428
      %v466 = vunpack.c.l.b16 %v429
      %v467 = vunpack.c.l.b16 %v430
      %v468 = vunpack.c.l.b16 %v431
      %v469 = vunpack.c.l.b16 %v432
      %v470 = vunpack.c.l.b16 %v433
      %v471 = vunpack.c.l.b16 %v434
      %v472 = vunpack.c.l.b16 %v435
      %v473 = vunpack.c.l.b16 %v436
      %v474 = vunpack.c.l.b16 %v437
      %v475 = vpack.c.b16 %v460, %v459
      %v476 = vpack.c.b16 %v462, %v461
      %v477 = vpack.c.b16 %v464, %v463
      %v478 = vpack.c.b16 %v466, %v465
      %v479 = vpack.c.b16 %v468, %v467
      %v480 = vpack.c.b16 %v470, %v469
      %v481 = vpack.c.b16 %v472, %v471
      %v482 = vpack.c.b16 %v474, %v473
      %491 = vmatprep.subr.bf16.mxu0 0
      %492 = vmatpush1.bf16.msra.mxu0 %v475
      %493 = vmatprep.subr.bf16.mxu0 0
      %494 = vmatpush1.bf16.msra.mxu0 %v476
      %495 = vmatprep.subr.bf16.mxu0 0
      %496 = vmatpush1.bf16.msra.mxu0 %v477
      %497 = vmatprep.subr.bf16.mxu0 0
      %498 = vmatpush1.bf16.msra.mxu0 %v478
      %499 = vmatprep.subr.bf16.mxu0 0
      %500 = vmatpush1.bf16.msra.mxu0 %v479
      %501 = vmatprep.subr.bf16.mxu0 0
      %502 = vmatpush1.bf16.msra.mxu0 %v480
      %503 = vmatprep.subr.bf16.mxu0 0
      %504 = vmatpush1.bf16.msra.mxu0 %v481
      %505 = vmatprep.subr.bf16.mxu0 0
      %506 = vmatpush1.bf16.msra.mxu0 %v482
      %507 = vmatprep.subr.bf16.mxu0 0
      %508 = vmatpush1.bf16.msra.mxu0 0
      %509 = vmatprep.subr.bf16.mxu0 0
      %510 = vmatpush1.bf16.msra.mxu0 0
      %511 = vmatprep.subr.bf16.mxu0 0
      %512 = vmatpush1.bf16.msra.mxu0 0
      %513 = vmatprep.subr.bf16.mxu0 0
      %514 = vmatpush1.bf16.msra.mxu0 0
      %515 = vmatprep.subr.bf16.mxu0 0
      %516 = vmatpush1.bf16.msra.mxu0 0
      %517 = vmatprep.subr.bf16.mxu0 0
      %518 = vmatpush1.bf16.msra.mxu0 0
      %519 = vmatprep.subr.bf16.mxu0 0
      %520 = vmatpush1.bf16.msra.mxu0 0
      %521 = vmatprep.subr.bf16.mxu0 0
      %522 = vmatpush1.bf16.msra.mxu0 0
      %523 = vmatprep.mubr.bf16.mxu0 0
      %524 = vmatmul.mubr.bf16.gmra.mrb[0].mxu0 %v438
      %v525 = vpop.f32.mrb[0].mxu0
      %v526 = vadd.f32 %v442, %v525
      %v527 = vpop.f32.mrb[0].mxu0
      %v528 = vpop.f32.mrb[0].mxu0
      %v529 = vadd.f32 %v442, %v528
      %v530 = vpop.f32.mrb[0].mxu0
      %531 = vdwg.mxu0
      %v532 = vmax.f32 %v526, 0.0
      %v533 = vmax.f32 %v529, 0.0
      %v534 = vadd.f32 %v311, %v532
      %v535 = vadd.f32 %v312, %v533
      %536 = vadd.xlane.f32.xlu0 %v534
      %v537 = vpop.xlane.xlu0 %536
      %538 = vadd.xlane.f32.xlu0 %v535
      %v539 = vpop.xlane.xlu0 %538
      %v540 = vmul.f32 %v537, %v327
      %v541 = vmul.f32 %v539, %v327
      %v542 = vmul.f32 %v534, %v534
      %v543 = vmul.f32 %v535, %v535
      %544 = vadd.xlane.f32.xlu0 %v542
      %v545 = vpop.xlane.xlu0 %544
      %546 = vadd.xlane.f32.xlu0 %v543
      %v547 = vpop.xlane.xlu0 %546
      %v548 = vmul.f32 %v545, %v327
      %v549 = vmul.f32 %v547, %v327
      %v550 = vmul.f32 %v540, %v540
      %v551 = vmul.f32 %v541, %v541
      %v552 = vsub.f32 %v548, %v550
      %v553 = vsub.f32 %v549, %v551
      %v554 = vmax.f32 %v552, 0.0
      %v555 = vmax.f32 %v553, 0.0
      %v556 = vsub.f32 %v534, %v540
      %v557 = vsub.f32 %v535, %v541
      %v558 = vadd.f32 %v554, 1e-06
      %v559 = vadd.f32 %v555, 1e-06
      %v560 = vrsqrt.pop %v558
      %v561 = vrsqrt.pop %v559
      %v562 = vmul.f32 %v556, %v560
      %v563 = vmul.f32 %v557, %v561
      %v564 = vlaneseq
      %v565 = vshrl.u32 %v564, 7
      %v566 = vsub.s32 1, %v565
      %v567 = vrot.slane %v313, %v566
      %v568 = vmul.f32 %v562, %v567
      %v569 = vmul.f32 %v563, %v567
      %v570 = vlaneseq
      %v571 = vshrl.u32 %v570, 7
      %v572 = vsub.s32 1, %v571
      %v573 = vrot.slane %v314, %v572
      %v574 = vadd.f32 %v568, %v573
      %v575 = vadd.f32 %v569, %v573
      %576 = vst [vmem:[#allocation2 + $0x2] sm:$0xff] %v574
      %577 = vst [vmem:[#allocation2 + $0xa] sm:$0xff] %v575
      %v578 = vld [vmem:[#allocation2] sm:$0xff]
      %v579 = vld [vmem:[#allocation2 + $0x8] sm:$0xff]
      %v580 = vlaneseq
      %v581 = vshrl.u32 %v580, 7
      %v582 = vsub.s32 0, %v581
      %v583 = vrot.slane %v316, %v582
      %v584 = vmul.f32 %v578, %v583
      %v585 = vmul.f32 %v579, %v583
      %v586 = vadd.f32 %v584, 0.0
      %v587 = vadd.f32 %v585, 0.0
      %v588 = vld [vmem:[#allocation2 + $0x1] sm:$0xff]
      %v589 = vld [vmem:[#allocation2 + $0x9] sm:$0xff]
      %v590 = vlaneseq
      %v591 = vshrl.u32 %v590, 7
      %v592 = vsub.s32 1, %v591
      %v593 = vrot.slane %v316, %v592
      %v594 = vmul.f32 %v588, %v593
      %v595 = vmul.f32 %v589, %v593
      %v596 = vadd.f32 %v586, %v594
      %v597 = vadd.f32 %v587, %v595
      %v598 = vld [vmem:[#allocation2 + $0x2] sm:$0xff]
      %v599 = vld [vmem:[#allocation2 + $0xa] sm:$0xff]
      %v600 = vlaneseq
      %v601 = vshrl.u32 %v600, 7
      %v602 = vsub.s32 2, %v601
      %v603 = vrot.slane %v316, %v602
      %v604 = vmul.f32 %v598, %v603
      %v605 = vmul.f32 %v599, %v603
      %v606 = vadd.f32 %v596, %v604
      %v607 = vadd.f32 %v597, %v605
      %v608 = vld [vmem:[#allocation2 + $0x3] sm:$0xff]
      %v609 = vld [vmem:[#allocation2 + $0xb] sm:$0xff]
      %v610 = vlaneseq
      %v611 = vshrl.u32 %v610, 7
      %v612 = vsub.s32 3, %v611
      %v613 = vrot.slane %v316, %v612
      %v614 = vmul.f32 %v608, %v613
      %v615 = vmul.f32 %v609, %v613
      %v616 = vadd.f32 %v606, %v614
      %v617 = vadd.f32 %v607, %v615
      %v618 = vld [vmem:[#allocation2 + $0x4] sm:$0xff]
      %v619 = vld [vmem:[#allocation2 + $0xc] sm:$0xff]
      %v620 = vlaneseq
      %v621 = vshrl.u32 %v620, 7
      %v622 = vsub.s32 4, %v621
      %v623 = vrot.slane %v316, %v622
      %v624 = vmul.f32 %v618, %v623
      %v625 = vmul.f32 %v619, %v623
      %v626 = vadd.f32 %v616, %v624
      %v627 = vadd.f32 %v617, %v625
      %v628 = vlaneseq
      %v629 = vshrl.u32 %v628, 7
      %v630 = vsub.s32 1, %v629
      %v631 = vrot.slane %v319, %v630
      %v632 = vadd.f32 %v626, %v631
      %v633 = vadd.f32 %v627, %v631
      %s634 = scalar_lea.vmem %s6, 64
      %v635 = vld [vmem:[%s634] sm:$0xf]
      %v636 = vld [vmem:[%s634 + $0x4] sm:$0xf]
      %v637 = vld [vmem:[%s634 + $0x8] sm:$0xf]
      %v638 = vld [vmem:[%s634 + $0xc] sm:$0xf]
      %v639 = vld [vmem:[%s634 + $0x10] sm:$0xf]
      %v640 = vld [vmem:[%s634 + $0x14] sm:$0xf]
      %v641 = vld [vmem:[%s634 + $0x18] sm:$0xf]
      %v642 = vld [vmem:[%s634 + $0x1c] sm:$0xf]
      %v643 = vld [vmem:[%s634 + $0x20] sm:$0xf]
      %v644 = vld [vmem:[%s634 + $0x24] sm:$0xf]
      %v645 = vld [vmem:[%s634 + $0x28] sm:$0xf]
      %v646 = vld [vmem:[%s634 + $0x2c] sm:$0xf]
      %v647 = vld [vmem:[%s634 + $0x30] sm:$0xf]
      %v648 = vld [vmem:[%s634 + $0x34] sm:$0xf]
      %v649 = vld [vmem:[%s634 + $0x38] sm:$0xf]
      %v650 = vld [vmem:[%s634 + $0x3c] sm:$0xf]
      %v651 = vpack.c.bf16 %v633, %v632
      %v652 = vlaneseq
      %v653 = vshrl.u32 %v652, 7
      %v654 = vsub.s32 1, %v653
      %v655 = vrot.slane %v320, %v654
      %v672 = vunpack.c.l.b16 %v635
      %v673 = vunpack.c.l.b16 %v636
      %v674 = vunpack.c.l.b16 %v637
      %v675 = vunpack.c.l.b16 %v638
      %v676 = vunpack.c.l.b16 %v639
      %v677 = vunpack.c.l.b16 %v640
      %v678 = vunpack.c.l.b16 %v641
      %v679 = vunpack.c.l.b16 %v642
      %v680 = vunpack.c.l.b16 %v643
      %v681 = vunpack.c.l.b16 %v644
      %v682 = vunpack.c.l.b16 %v645
      %v683 = vunpack.c.l.b16 %v646
      %v684 = vunpack.c.l.b16 %v647
      %v685 = vunpack.c.l.b16 %v648
      %v686 = vunpack.c.l.b16 %v649
      %v687 = vunpack.c.l.b16 %v650
      %v688 = vpack.c.b16 %v673, %v672
      %v689 = vpack.c.b16 %v675, %v674
      %v690 = vpack.c.b16 %v677, %v676
      %v691 = vpack.c.b16 %v679, %v678
      %v692 = vpack.c.b16 %v681, %v680
      %v693 = vpack.c.b16 %v683, %v682
      %v694 = vpack.c.b16 %v685, %v684
      %v695 = vpack.c.b16 %v687, %v686
      %704 = vmatprep.subr.bf16.mxu0 0
      %705 = vmatpush1.bf16.msra.mxu0 %v688
      %706 = vmatprep.subr.bf16.mxu0 0
      %707 = vmatpush1.bf16.msra.mxu0 %v689
      %708 = vmatprep.subr.bf16.mxu0 0
      %709 = vmatpush1.bf16.msra.mxu0 %v690
      %710 = vmatprep.subr.bf16.mxu0 0
      %711 = vmatpush1.bf16.msra.mxu0 %v691
      %712 = vmatprep.subr.bf16.mxu0 0
      %713 = vmatpush1.bf16.msra.mxu0 %v692
      %714 = vmatprep.subr.bf16.mxu0 0
      %715 = vmatpush1.bf16.msra.mxu0 %v693
      %716 = vmatprep.subr.bf16.mxu0 0
      %717 = vmatpush1.bf16.msra.mxu0 %v694
      %718 = vmatprep.subr.bf16.mxu0 0
      %719 = vmatpush1.bf16.msra.mxu0 %v695
      %720 = vmatprep.subr.bf16.mxu0 0
      %721 = vmatpush1.bf16.msra.mxu0 0
      %722 = vmatprep.subr.bf16.mxu0 0
      %723 = vmatpush1.bf16.msra.mxu0 0
      %724 = vmatprep.subr.bf16.mxu0 0
      %725 = vmatpush1.bf16.msra.mxu0 0
      %726 = vmatprep.subr.bf16.mxu0 0
      %727 = vmatpush1.bf16.msra.mxu0 0
      %728 = vmatprep.subr.bf16.mxu0 0
      %729 = vmatpush1.bf16.msra.mxu0 0
      %730 = vmatprep.subr.bf16.mxu0 0
      %731 = vmatpush1.bf16.msra.mxu0 0
      %732 = vmatprep.subr.bf16.mxu0 0
      %733 = vmatpush1.bf16.msra.mxu0 0
      %734 = vmatprep.subr.bf16.mxu0 0
      %735 = vmatpush1.bf16.msra.mxu0 0
      %736 = vmatprep.mubr.bf16.mxu0 0
      %737 = vmatmul.mubr.bf16.gmra.mrb[0].mxu0 %v651
      %v738 = vpop.f32.mrb[0].mxu0
      %v739 = vadd.f32 %v655, %v738
      %v740 = vpop.f32.mrb[0].mxu0
      %v741 = vpop.f32.mrb[0].mxu0
      %v742 = vadd.f32 %v655, %v741
      %v743 = vpop.f32.mrb[0].mxu0
      %744 = vdwg.mxu0
      %v745 = vmax.f32 %v739, 0.0
      %v746 = vmax.f32 %v742, 0.0
      %v747 = vadd.f32 %v534, %v745
      %v748 = vadd.f32 %v535, %v746
      %749 = vadd.xlane.f32.xlu0 %v747
      %v750 = vpop.xlane.xlu0 %749
      %751 = vadd.xlane.f32.xlu0 %v748
      %v752 = vpop.xlane.xlu0 %751
      %v753 = vmul.f32 %v750, %v327
      %v754 = vmul.f32 %v752, %v327
      %v755 = vmul.f32 %v747, %v747
      %v756 = vmul.f32 %v748, %v748
      %757 = vadd.xlane.f32.xlu0 %v755
      %v758 = vpop.xlane.xlu0 %757
      %759 = vadd.xlane.f32.xlu0 %v756
      %v760 = vpop.xlane.xlu0 %759
      %v761 = vmul.f32 %v758, %v327
      %v762 = vmul.f32 %v760, %v327
      %v763 = vmul.f32 %v753, %v753
      %v764 = vmul.f32 %v754, %v754
      %v765 = vsub.f32 %v761, %v763
      %v766 = vsub.f32 %v762, %v764
      %v767 = vmax.f32 %v765, 0.0
      %v768 = vmax.f32 %v766, 0.0
      %v769 = vsub.f32 %v747, %v753
      %v770 = vsub.f32 %v748, %v754
      %v771 = vadd.f32 %v767, 1e-06
      %v772 = vadd.f32 %v768, 1e-06
      %v773 = vrsqrt.pop %v771
      %v774 = vrsqrt.pop %v772
      %v775 = vmul.f32 %v769, %v773
      %v776 = vmul.f32 %v770, %v774
      %v777 = vlaneseq
      %v778 = vshrl.u32 %v777, 7
      %v779 = vsub.s32 2, %v778
      %v780 = vrot.slane %v313, %v779
      %v781 = vmul.f32 %v775, %v780
      %v782 = vmul.f32 %v776, %v780
      %v783 = vlaneseq
      %v784 = vshrl.u32 %v783, 7
      %v785 = vsub.s32 2, %v784
      %v786 = vrot.slane %v314, %v785
      %v787 = vadd.f32 %v781, %v786
      %v788 = vadd.f32 %v782, %v786
      %789 = vst [vmem:[#allocation2 + $0x2] sm:$0xff] %v787
      %790 = vst [vmem:[#allocation2 + $0xa] sm:$0xff] %v788
      %v791 = vld [vmem:[#allocation2] sm:$0xff]
      %v792 = vld [vmem:[#allocation2 + $0x8] sm:$0xff]
      %v793 = vlaneseq
      %v794 = vshrl.u32 %v793, 7
      %v795 = vsub.s32 0, %v794
      %v796 = vrot.slane %v317, %v795
      %v797 = vmul.f32 %v791, %v796
      %v798 = vmul.f32 %v792, %v796
      %v799 = vadd.f32 %v797, 0.0
      %v800 = vadd.f32 %v798, 0.0
      %v801 = vld [vmem:[#allocation2 + $0x1] sm:$0xff]
      %v802 = vld [vmem:[#allocation2 + $0x9] sm:$0xff]
      %v803 = vlaneseq
      %v804 = vshrl.u32 %v803, 7
      %v805 = vsub.s32 1, %v804
      %v806 = vrot.slane %v317, %v805
      %v807 = vmul.f32 %v801, %v806
      %v808 = vmul.f32 %v802, %v806
      %v809 = vadd.f32 %v799, %v807
      %v810 = vadd.f32 %v800, %v808
      %v811 = vld [vmem:[#allocation2 + $0x2] sm:$0xff]
      %v812 = vld [vmem:[#allocation2 + $0xa] sm:$0xff]
      %v813 = vlaneseq
      %v814 = vshrl.u32 %v813, 7
      %v815 = vsub.s32 2, %v814
      %v816 = vrot.slane %v317, %v815
      %v817 = vmul.f32 %v811, %v816
      %v818 = vmul.f32 %v812, %v816
      %v819 = vadd.f32 %v809, %v817
      %v820 = vadd.f32 %v810, %v818
      %v821 = vld [vmem:[#allocation2 + $0x3] sm:$0xff]
      %v822 = vld [vmem:[#allocation2 + $0xb] sm:$0xff]
      %v823 = vlaneseq
      %v824 = vshrl.u32 %v823, 7
      %v825 = vsub.s32 3, %v824
      %v826 = vrot.slane %v317, %v825
      %v827 = vmul.f32 %v821, %v826
      %v828 = vmul.f32 %v822, %v826
      %v829 = vadd.f32 %v819, %v827
      %v830 = vadd.f32 %v820, %v828
      %v831 = vld [vmem:[#allocation2 + $0x4] sm:$0xff]
      %v832 = vld [vmem:[#allocation2 + $0xc] sm:$0xff]
      %v833 = vlaneseq
      %v834 = vshrl.u32 %v833, 7
      %v835 = vsub.s32 4, %v834
      %v836 = vrot.slane %v317, %v835
      %v837 = vmul.f32 %v831, %v836
      %v838 = vmul.f32 %v832, %v836
      %v839 = vadd.f32 %v829, %v837
      %v840 = vadd.f32 %v830, %v838
      %v841 = vlaneseq
      %v842 = vshrl.u32 %v841, 7
      %v843 = vsub.s32 2, %v842
      %v844 = vrot.slane %v319, %v843
      %v845 = vadd.f32 %v839, %v844
      %v846 = vadd.f32 %v840, %v844
      %s847 = scalar_lea.vmem %s6, 128
      %v848 = vld [vmem:[%s847] sm:$0xf]
      %v849 = vld [vmem:[%s847 + $0x4] sm:$0xf]
      %v850 = vld [vmem:[%s847 + $0x8] sm:$0xf]
      %v851 = vld [vmem:[%s847 + $0xc] sm:$0xf]
      %v852 = vld [vmem:[%s847 + $0x10] sm:$0xf]
      %v853 = vld [vmem:[%s847 + $0x14] sm:$0xf]
      %v854 = vld [vmem:[%s847 + $0x18] sm:$0xf]
      %v855 = vld [vmem:[%s847 + $0x1c] sm:$0xf]
      %v856 = vld [vmem:[%s847 + $0x20] sm:$0xf]
      %v857 = vld [vmem:[%s847 + $0x24] sm:$0xf]
      %v858 = vld [vmem:[%s847 + $0x28] sm:$0xf]
      %v859 = vld [vmem:[%s847 + $0x2c] sm:$0xf]
      %v860 = vld [vmem:[%s847 + $0x30] sm:$0xf]
      %v861 = vld [vmem:[%s847 + $0x34] sm:$0xf]
      %v862 = vld [vmem:[%s847 + $0x38] sm:$0xf]
      %v863 = vld [vmem:[%s847 + $0x3c] sm:$0xf]
      %v864 = vpack.c.bf16 %v846, %v845
      %v865 = vlaneseq
      %v866 = vshrl.u32 %v865, 7
      %v867 = vsub.s32 2, %v866
      %v868 = vrot.slane %v320, %v867
      %v885 = vunpack.c.l.b16 %v848
      %v886 = vunpack.c.l.b16 %v849
      %v887 = vunpack.c.l.b16 %v850
      %v888 = vunpack.c.l.b16 %v851
      %v889 = vunpack.c.l.b16 %v852
      %v890 = vunpack.c.l.b16 %v853
      %v891 = vunpack.c.l.b16 %v854
      %v892 = vunpack.c.l.b16 %v855
      %v893 = vunpack.c.l.b16 %v856
      %v894 = vunpack.c.l.b16 %v857
      %v895 = vunpack.c.l.b16 %v858
      %v896 = vunpack.c.l.b16 %v859
      %v897 = vunpack.c.l.b16 %v860
      %v898 = vunpack.c.l.b16 %v861
      %v899 = vunpack.c.l.b16 %v862
      %v900 = vunpack.c.l.b16 %v863
      %v901 = vpack.c.b16 %v886, %v885
      %v902 = vpack.c.b16 %v888, %v887
      %v903 = vpack.c.b16 %v890, %v889
      %v904 = vpack.c.b16 %v892, %v891
      %v905 = vpack.c.b16 %v894, %v893
      %v906 = vpack.c.b16 %v896, %v895
      %v907 = vpack.c.b16 %v898, %v897
      %v908 = vpack.c.b16 %v900, %v899
      %917 = vmatprep.subr.bf16.mxu0 0
      %918 = vmatpush1.bf16.msra.mxu0 %v901
      %919 = vmatprep.subr.bf16.mxu0 0
      %920 = vmatpush1.bf16.msra.mxu0 %v902
      %921 = vmatprep.subr.bf16.mxu0 0
      %922 = vmatpush1.bf16.msra.mxu0 %v903
      %923 = vmatprep.subr.bf16.mxu0 0
      %924 = vmatpush1.bf16.msra.mxu0 %v904
      %925 = vmatprep.subr.bf16.mxu0 0
      %926 = vmatpush1.bf16.msra.mxu0 %v905
      %927 = vmatprep.subr.bf16.mxu0 0
      %928 = vmatpush1.bf16.msra.mxu0 %v906
      %929 = vmatprep.subr.bf16.mxu0 0
      %930 = vmatpush1.bf16.msra.mxu0 %v907
      %931 = vmatprep.subr.bf16.mxu0 0
      %932 = vmatpush1.bf16.msra.mxu0 %v908
      %933 = vmatprep.subr.bf16.mxu0 0
      %934 = vmatpush1.bf16.msra.mxu0 0
      %935 = vmatprep.subr.bf16.mxu0 0
      %936 = vmatpush1.bf16.msra.mxu0 0
      %937 = vmatprep.subr.bf16.mxu0 0
      %938 = vmatpush1.bf16.msra.mxu0 0
      %939 = vmatprep.subr.bf16.mxu0 0
      %940 = vmatpush1.bf16.msra.mxu0 0
      %941 = vmatprep.subr.bf16.mxu0 0
      %942 = vmatpush1.bf16.msra.mxu0 0
      %943 = vmatprep.subr.bf16.mxu0 0
      %944 = vmatpush1.bf16.msra.mxu0 0
      %945 = vmatprep.subr.bf16.mxu0 0
      %946 = vmatpush1.bf16.msra.mxu0 0
      %947 = vmatprep.subr.bf16.mxu0 0
      %948 = vmatpush1.bf16.msra.mxu0 0
      %949 = vmatprep.mubr.bf16.mxu0 0
      %950 = vmatmul.mubr.bf16.gmra.mrb[0].mxu0 %v864
      %v951 = vpop.f32.mrb[0].mxu0
      %v952 = vadd.f32 %v868, %v951
      %v953 = vpop.f32.mrb[0].mxu0
      %v954 = vpop.f32.mrb[0].mxu0
      %v955 = vadd.f32 %v868, %v954
      %v956 = vpop.f32.mrb[0].mxu0
      %957 = vdwg.mxu0
      %v958 = vmax.f32 %v952, 0.0
      %v959 = vmax.f32 %v955, 0.0
      %v960 = vadd.f32 %v747, %v958
      %v961 = vadd.f32 %v748, %v959
      %962 = vadd.xlane.f32.xlu0 %v960
      %v963 = vpop.xlane.xlu0 %962
      %964 = vadd.xlane.f32.xlu0 %v961
      %v965 = vpop.xlane.xlu0 %964
      %v966 = vmul.f32 %v963, %v327
      %v967 = vmul.f32 %v965, %v327
      %v968 = vmul.f32 %v960, %v960
      %v969 = vmul.f32 %v961, %v961
      %970 = vadd.xlane.f32.xlu0 %v968
      %v971 = vpop.xlane.xlu0 %970
      %972 = vadd.xlane.f32.xlu0 %v969
      %v973 = vpop.xlane.xlu0 %972
      %v974 = vmul.f32 %v971, %v327
      %v975 = vmul.f32 %v973, %v327
      %v976 = vmul.f32 %v966, %v966
      %v977 = vmul.f32 %v967, %v967
      %v978 = vsub.f32 %v974, %v976
      %v979 = vsub.f32 %v975, %v977
      %v980 = vmax.f32 %v978, 0.0
      %v981 = vmax.f32 %v979, 0.0
      %v982 = vsub.f32 %v960, %v966
      %v983 = vsub.f32 %v961, %v967
      %v984 = vadd.f32 %v980, 1e-06
      %v985 = vadd.f32 %v981, 1e-06
      %v986 = vrsqrt.pop %v984
      %v987 = vrsqrt.pop %v985
      %v988 = vmul.f32 %v982, %v986
      %v989 = vmul.f32 %v983, %v987
      %v990 = vlaneseq
      %v991 = vshrl.u32 %v990, 7
      %v992 = vsub.s32 3, %v991
      %v993 = vrot.slane %v313, %v992
      %v994 = vmul.f32 %v988, %v993
      %v995 = vmul.f32 %v989, %v993
      %v996 = vlaneseq
      %v997 = vshrl.u32 %v996, 7
      %v998 = vsub.s32 3, %v997
      %v999 = vrot.slane %v314, %v998
      %v1000 = vadd.f32 %v994, %v999
      %v1001 = vadd.f32 %v995, %v999
      %1002 = vst [vmem:[#allocation2 + $0x2] sm:$0xff] %v1000
      %1003 = vst [vmem:[#allocation2 + $0xa] sm:$0xff] %v1001
      %v1004 = vld [vmem:[#allocation2] sm:$0xff]
      %v1005 = vld [vmem:[#allocation2 + $0x8] sm:$0xff]
      %v1006 = vlaneseq
      %v1007 = vshrl.u32 %v1006, 7
      %v1008 = vsub.s32 0, %v1007
      %v1009 = vrot.slane %v318, %v1008
      %v1010 = vmul.f32 %v1004, %v1009
      %v1011 = vmul.f32 %v1005, %v1009
      %v1012 = vadd.f32 %v1010, 0.0
      %v1013 = vadd.f32 %v1011, 0.0
      %v1014 = vld [vmem:[#allocation2 + $0x1] sm:$0xff]
      %v1015 = vld [vmem:[#allocation2 + $0x9] sm:$0xff]
      %v1016 = vlaneseq
      %v1017 = vshrl.u32 %v1016, 7
      %v1018 = vsub.s32 1, %v1017
      %v1019 = vrot.slane %v318, %v1018
      %v1020 = vmul.f32 %v1014, %v1019
      %v1021 = vmul.f32 %v1015, %v1019
      %v1022 = vadd.f32 %v1012, %v1020
      %v1023 = vadd.f32 %v1013, %v1021
      %v1024 = vld [vmem:[#allocation2 + $0x2] sm:$0xff]
      %v1025 = vld [vmem:[#allocation2 + $0xa] sm:$0xff]
      %v1026 = vlaneseq
      %v1027 = vshrl.u32 %v1026, 7
      %v1028 = vsub.s32 2, %v1027
      %v1029 = vrot.slane %v318, %v1028
      %v1030 = vmul.f32 %v1024, %v1029
      %v1031 = vmul.f32 %v1025, %v1029
      %v1032 = vadd.f32 %v1022, %v1030
      %v1033 = vadd.f32 %v1023, %v1031
      %v1034 = vld [vmem:[#allocation2 + $0x3] sm:$0xff]
      %v1035 = vld [vmem:[#allocation2 + $0xb] sm:$0xff]
      %v1036 = vlaneseq
      %v1037 = vshrl.u32 %v1036, 7
      %v1038 = vsub.s32 3, %v1037
      %v1039 = vrot.slane %v318, %v1038
      %v1040 = vmul.f32 %v1034, %v1039
      %v1041 = vmul.f32 %v1035, %v1039
      %v1042 = vadd.f32 %v1032, %v1040
      %v1043 = vadd.f32 %v1033, %v1041
      %v1044 = vld [vmem:[#allocation2 + $0x4] sm:$0xff]
      %v1045 = vld [vmem:[#allocation2 + $0xc] sm:$0xff]
      %v1046 = vlaneseq
      %v1047 = vshrl.u32 %v1046, 7
      %v1048 = vsub.s32 4, %v1047
      %v1049 = vrot.slane %v318, %v1048
      %v1050 = vmul.f32 %v1044, %v1049
      %v1051 = vmul.f32 %v1045, %v1049
      %v1052 = vadd.f32 %v1042, %v1050
      %v1053 = vadd.f32 %v1043, %v1051
      %v1054 = vlaneseq
      %v1055 = vshrl.u32 %v1054, 7
      %v1056 = vsub.s32 3, %v1055
      %v1057 = vrot.slane %v319, %v1056
      %v1058 = vadd.f32 %v1052, %v1057
      %v1059 = vadd.f32 %v1053, %v1057
      %s1060 = scalar_lea.vmem %s6, 192
      %v1061 = vld [vmem:[%s1060] sm:$0xf]
      %v1062 = vld [vmem:[%s1060 + $0x4] sm:$0xf]
      %v1063 = vld [vmem:[%s1060 + $0x8] sm:$0xf]
      %v1064 = vld [vmem:[%s1060 + $0xc] sm:$0xf]
      %v1065 = vld [vmem:[%s1060 + $0x10] sm:$0xf]
      %v1066 = vld [vmem:[%s1060 + $0x14] sm:$0xf]
      %v1067 = vld [vmem:[%s1060 + $0x18] sm:$0xf]
      %v1068 = vld [vmem:[%s1060 + $0x1c] sm:$0xf]
      %v1069 = vld [vmem:[%s1060 + $0x20] sm:$0xf]
      %v1070 = vld [vmem:[%s1060 + $0x24] sm:$0xf]
      %v1071 = vld [vmem:[%s1060 + $0x28] sm:$0xf]
      %v1072 = vld [vmem:[%s1060 + $0x2c] sm:$0xf]
      %v1073 = vld [vmem:[%s1060 + $0x30] sm:$0xf]
      %v1074 = vld [vmem:[%s1060 + $0x34] sm:$0xf]
      %v1075 = vld [vmem:[%s1060 + $0x38] sm:$0xf]
      %v1076 = vld [vmem:[%s1060 + $0x3c] sm:$0xf]
      %v1077 = vpack.c.bf16 %v1059, %v1058
      %v1078 = vlaneseq
      %v1079 = vshrl.u32 %v1078, 7
      %v1080 = vsub.s32 3, %v1079
      %v1081 = vrot.slane %v320, %v1080
      %v1098 = vunpack.c.l.b16 %v1061
      %v1099 = vunpack.c.l.b16 %v1062
      %v1100 = vunpack.c.l.b16 %v1063
      %v1101 = vunpack.c.l.b16 %v1064
      %v1102 = vunpack.c.l.b16 %v1065
      %v1103 = vunpack.c.l.b16 %v1066
      %v1104 = vunpack.c.l.b16 %v1067
      %v1105 = vunpack.c.l.b16 %v1068
      %v1106 = vunpack.c.l.b16 %v1069
      %v1107 = vunpack.c.l.b16 %v1070
      %v1108 = vunpack.c.l.b16 %v1071
      %v1109 = vunpack.c.l.b16 %v1072
      %v1110 = vunpack.c.l.b16 %v1073
      %v1111 = vunpack.c.l.b16 %v1074
      %v1112 = vunpack.c.l.b16 %v1075
      %v1113 = vunpack.c.l.b16 %v1076
      %v1114 = vpack.c.b16 %v1099, %v1098
      %v1115 = vpack.c.b16 %v1101, %v1100
      %v1116 = vpack.c.b16 %v1103, %v1102
      %v1117 = vpack.c.b16 %v1105, %v1104
      %v1118 = vpack.c.b16 %v1107, %v1106
      %v1119 = vpack.c.b16 %v1109, %v1108
      %v1120 = vpack.c.b16 %v1111, %v1110
      %v1121 = vpack.c.b16 %v1113, %v1112
      %1130 = vmatprep.subr.bf16.mxu0 0
      %1131 = vmatpush1.bf16.msra.mxu0 %v1114
      %1132 = vmatprep.subr.bf16.mxu0 0
      %1133 = vmatpush1.bf16.msra.mxu0 %v1115
      %1134 = vmatprep.subr.bf16.mxu0 0
      %1135 = vmatpush1.bf16.msra.mxu0 %v1116
      %1136 = vmatprep.subr.bf16.mxu0 0
      %1137 = vmatpush1.bf16.msra.mxu0 %v1117
      %1138 = vmatprep.subr.bf16.mxu0 0
      %1139 = vmatpush1.bf16.msra.mxu0 %v1118
      %1140 = vmatprep.subr.bf16.mxu0 0
      %1141 = vmatpush1.bf16.msra.mxu0 %v1119
      %1142 = vmatprep.subr.bf16.mxu0 0
      %1143 = vmatpush1.bf16.msra.mxu0 %v1120
      %1144 = vmatprep.subr.bf16.mxu0 0
      %1145 = vmatpush1.bf16.msra.mxu0 %v1121
      %1146 = vmatprep.subr.bf16.mxu0 0
      %1147 = vmatpush1.bf16.msra.mxu0 0
      %1148 = vmatprep.subr.bf16.mxu0 0
      %1149 = vmatpush1.bf16.msra.mxu0 0
      %1150 = vmatprep.subr.bf16.mxu0 0
      %1151 = vmatpush1.bf16.msra.mxu0 0
      %1152 = vmatprep.subr.bf16.mxu0 0
      %1153 = vmatpush1.bf16.msra.mxu0 0
      %1154 = vmatprep.subr.bf16.mxu0 0
      %1155 = vmatpush1.bf16.msra.mxu0 0
      %1156 = vmatprep.subr.bf16.mxu0 0
      %1157 = vmatpush1.bf16.msra.mxu0 0
      %1158 = vmatprep.subr.bf16.mxu0 0
      %1159 = vmatpush1.bf16.msra.mxu0 0
      %1160 = vmatprep.subr.bf16.mxu0 0
      %1161 = vmatpush1.bf16.msra.mxu0 0
      %1162 = vmatprep.mubr.bf16.mxu0 0
      %1163 = vmatmul.mubr.bf16.gmra.mrb[0].mxu0 %v1077
      %v1164 = vpop.f32.mrb[0].mxu0
      %v1165 = vadd.f32 %v1081, %v1164
      %v1166 = vpop.f32.mrb[0].mxu0
      %v1167 = vpop.f32.mrb[0].mxu0
      %v1168 = vadd.f32 %v1081, %v1167
      %v1169 = vpop.f32.mrb[0].mxu0
      %1170 = vdwg.mxu0
      %v1171 = vmax.f32 %v1165, 0.0
      %v1172 = vmax.f32 %v1168, 0.0
      %v1173 = vadd.f32 %v960, %v1171
      %v1174 = vadd.f32 %v961, %v1172
      %1175 = vst [vmem:[%s305] sm:$0xff] %v1173
      %1176 = vst [vmem:[%s305 + $0x8] sm:$0xff] %v1174
      %p1177 = scmp.lt.s32.totalorder %s19, 1
      %s1178 = scalar_select %p1177, %s19, 1
      %s1179 = smul.addr %s1178, 2
      %s1180 = smul.addr %s1179, 8
      %s1181 = scalar_lea.vmem %s8, %s1180
      // Predicated region
      $region53: #{encoder_block_forward.3} parent=51 // pred_check
        %p1182 = pneg %p210
      $region54: #{encoder_block_forward.3} parent=51 // pred_check_branch
        %1184 = sbr.rel (%p1182) target = $region56
      $region55: #{encoder_block_forward.3} parent=51 // pred_region
        _
      $region56: #{encoder_block_forward.3} parent=51 // pred_fallthru
        _
    $region52: #{encoder_block_forward.3} parent=5 // pred_fallthru
      _
    %p1185 = scmp.le.s32.totalorder 2, %s14
    // Predicated region
    $region57: #{encoder_block_forward.3} parent=5 // pred_check
      %p1186 = pneg %p1185
    $region58: #{encoder_block_forward.3} parent=5 // pred_check_branch
      %1188 = sbr.rel (%p1186) target = $region60
    $region59: #{encoder_block_forward.3} parent=5 // pred_region
      %s1189 = ssub.s32 %s14, 2
      // Predicated region
      $region61: #{encoder_block_forward.3} parent=59 // pred_check
        %p1190 = pneg %p216
      $region62: #{encoder_block_forward.3} parent=59 // pred_check_branch
        %1192 = sbr.rel (%p1190) target = $region64
      $region63: #{encoder_block_forward.3} parent=59 // pred_region
        %p1193 = scmp.lt.s32.totalorder %s20, 1
        %s1194 = scalar_select %p1193, %s20, 1
        %s1195 = smul.addr %s1194, 2
        %s1196 = smul.addr %s1195, 8
        %s1197 = scalar_lea.vmem %s8, %s1196
      $region64: #{encoder_block_forward.3} parent=59 // pred_fallthru
        _
    $region60: #{encoder_block_forward.3} parent=5 // pred_fallthru
      _
  $region6: #{encoder_block_forward.3} parent=0 // loop_footer
    %s18 = sadd.s32 1, %s14
  $region7: #{encoder_block_forward.3} parent=0 // loop_footer_branch
    %13 = sbr.rel target = $region3
  $region8: #{encoder_block_forward.3} parent=0 // loop_exit
    _

</llo_original>
